<compile_context>
chip_gen: v7x
topology: tpu7x:2x2x1
jax: 0.10.0
libtpu: 0.0.40
codegen_flags: <defaults>
</compile_context>

<pallas_src>
import functools

import jax
import jax.numpy as jnp
from jax.experimental import pallas as pl
from jax.experimental.pallas import tpu as pltpu


def _round_up(v: int, m: int) -> int:
    return ((v + m - 1) // m) * m


def _sublane(dtype) -> int:
    # Rows per full sublane tile: 8 for 4-byte dtypes, 16 for bf16, 32 for int8.
    return max(8, 32 // jnp.dtype(dtype).itemsize)


def _fc_kernel(x_ref, w_ref, b_ref, y_ref):
    """One (class-tile, batch-tile) grid point of the fc head.

    x_ref : (tb, D)   features, compute dtype (bf16 by default)
    w_ref : (D, tc)   fc weight, pre-transposed + pre-cast outside the kernel
    b_ref : (1, tc)   fc bias, f32
    y_ref : (tb, tc)  logits tile, f32 (lane-dense: tc % 128 == 0)
    """
    acc = jnp.dot(x_ref[...], w_ref[...], preferred_element_type=jnp.float32)
    y_ref[...] = (acc + b_ref[...]).astype(y_ref.dtype)


def _softplus_kernel(x_ref, o_ref):
    """Elementwise softplus on a (tb, D) feature tile (f32 in, f32 out)."""
    x = x_ref[...].astype(jnp.float32)
    sp = jnp.maximum(x, 0.0) + jnp.log1p(jnp.exp(-jnp.abs(x)))
    o_ref[...] = sp.astype(o_ref.dtype)


@functools.partial(jax.jit, static_argnames=("block_b", "block_c", "compute_dtype"))
def res50_head_forward(feat, fc_weight, fc_bias, *, block_b=1024, block_c=512,
                       compute_dtype=jnp.bfloat16):
    """Returns (softplus(feat), feat @ fc_weight.T + fc_bias) — the (x, y) of
    Res50.forward after avgpool + flatten.

    feat:      (B, D) float32 pooled features
    fc_weight: (C, D) float32 (torch nn.Linear layout)
    fc_bias:   (C,)   float32

    The GEMV runs on the MXU in `compute_dtype` (bf16 default) with f32
    accumulation; logits and softplus are returned in f32.  In production the
    padded/cast/transposed weight should be cached rather than re-derived per
    call (it is a static parameter); here it is prepared in the wrapper.
    """
    B, D = feat.shape
    C, D2 = fc_weight.shape
    assert D == D2 and fc_bias.shape == (C,)

    cdt = jnp.dtype(compute_dtype)
    in_itemsize = cdt.itemsize

    # Lane-dense class tiles (multiples of 128); dtype-aware batch tiles.
    sub = _sublane(cdt)
    tc = min(_round_up(block_c, 128), _round_up(C, 128))
    C_pad = _round_up(C, tc)
    tb = min(_round_up(block_b, sub), _round_up(B, sub))
    B_pad = _round_up(B, tb)
    nb, nc = B_pad // tb, C_pad // tc

    # Feature copy for the MXU (cast to compute dtype, batch-padded).
    feat_c = feat.astype(cdt)
    if B_pad != B:
        feat_c = jnp.pad(feat_c, ((0, B_pad - B), (0, 0)))

    # One-time weight layout prep (outside the kernel, free for a static param):
    # pad classes, cast to compute dtype, transpose to (D, C_pad).
    w_p = fc_weight if C_pad == C else jnp.pad(fc_weight, ((0, C_pad - C), (0, 0)))
    w_t = w_p.astype(cdt).T                                     # (D, C_pad)
    b_p = fc_bias if C_pad == C else jnp.pad(fc_bias, (0, C_pad - C))
    b_p = b_p.astype(jnp.float32).reshape(1, C_pad)

    # VMEM working set (double-buffered operands + output), with headroom.
    vmem_needed = 2 * (tb * D * in_itemsize      # features
                       + D * tc * in_itemsize    # weight
                       + tc * 4                  # bias
                       + tb * tc * 4)            # logits (f32)
    vmem_limit = int(min(56 * 2**20, max(32 * 2**20, vmem_needed + (4 << 20))))

    cost_fc = pl.CostEstimate(
        flops=2 * B_pad * C_pad * D,
        transcendentals=0,
        bytes_accessed=(in_itemsize * (nc * B_pad * D   # features (per class tile)
                                       + C_pad * D)     # weight (streamed once)
                        + 4 * (B_pad * C_pad + C_pad)), # logits out + bias
    )

    # Grid: (class, batch).  The weight's block index depends only on the OUTER
    # class axis -> W is streamed exactly once even when nb > 1.  Every grid
    # point writes a disjoint logits tile -> both axes "parallel" (v7x megacore
    # splits the class sweep across its two TensorCores).
    y_pad = pl.pallas_call(
        _fc_kernel,
        out_shape=jax.ShapeDtypeStruct((B_pad, C_pad), jnp.float32),
        grid_spec=pltpu.PrefetchScalarGridSpec(
            num_scalar_prefetch=0,
            grid=(nc, nb),
            in_specs=[
                pl.BlockSpec((tb, D), lambda j, i: (i, 0)),   # features
                pl.BlockSpec((D, tc), lambda j, i: (0, j)),   # weight (outer axis)
                pl.BlockSpec((1, tc), lambda j, i: (0, j)),   # bias
            ],
            out_specs=pl.BlockSpec((tb, tc), lambda j, i: (i, j)),
        ),
        compiler_params=pltpu.CompilerParams(
            dimension_semantics=("parallel", "parallel"),
            vmem_limit_bytes=vmem_limit,
        ),
        cost_estimate=cost_fc,
    )(feat_c, w_t, b_p)

    y = y_pad[:B, :C]

    # Softplus, unfused (own tiny elementwise kernel on the original f32 feat)
    # so the fc kernel has no revisited output block and stays fully parallel.
    sub_sp = _sublane(feat.dtype)
    tb_sp = min(_round_up(block_b, sub_sp), _round_up(B, sub_sp))
    B_sp = _round_up(B, tb_sp)
    feat_sp = feat if B_sp == B else jnp.pad(feat, ((0, B_sp - B), (0, 0)))
    nb_sp = B_sp // tb_sp

    cost_sp = pl.CostEstimate(
        flops=4 * B_sp * D,
        transcendentals=2 * B_sp * D,                 # exp + log1p per element
        bytes_accessed=2 * 4 * B_sp * D,
    )
    sp_pad = pl.pallas_call(
        _softplus_kernel,
        out_shape=jax.ShapeDtypeStruct((B_sp, D), feat.dtype),
        grid_spec=pltpu.PrefetchScalarGridSpec(
            num_scalar_prefetch=0,
            grid=(nb_sp,),
            in_specs=[pl.BlockSpec((tb_sp, D), lambda i: (i, 0))],
            out_specs=pl.BlockSpec((tb_sp, D), lambda i: (i, 0)),
        ),
        compiler_params=pltpu.CompilerParams(
            dimension_semantics=("parallel",),
        ),
        cost_estimate=cost_sp,
    )(feat_sp)
    sp = sp_pad[:B]

    return sp, y


def init_fc_params(key, class_num, in_features):
    """Deterministic Xavier-normal fc weight, small random bias (torch layout)."""
    kw, kb = jax.random.split(key)
    std = (2.0 / (in_features + class_num)) ** 0.5
    w = std * jax.random.normal(kw, (class_num, in_features), dtype=jnp.float32)
    b = 0.01 * jax.random.normal(kb, (class_num,), dtype=jnp.float32)
    return w, b


if __name__ == "__main__":
    # Head shapes implied by Res50: in_features = 2048 (resnet50 fc.in_features),
    # class_num = 1000 (ImageNet fc).  Small batch.
    batch, in_features, class_num = 8, 2048, 1000

    key = jax.random.PRNGKey(0)
    kx, kp = jax.random.split(key)

    feat = jax.random.normal(kx, (batch, in_features), dtype=jnp.float32)
    fc_w, fc_b = init_fc_params(kp, class_num, in_features)

    sp, y = res50_head_forward(feat, fc_w, fc_b)
    sp, y = jax.block_until_ready((sp, y))

    assert y.shape == (batch, class_num)
    assert sp.shape == (batch, in_features)

    # References.
    sp_ref = jax.nn.softplus(feat)
    # Kernel runs the GEMM in bf16 (f32 accumulate) -> compare against the
    # bf16-cast reference tightly, and against the full-f32 reference loosely.
    feat_bf = feat.astype(jnp.bfloat16).astype(jnp.float32)
    w_bf = fc_w.astype(jnp.bfloat16).astype(jnp.float32)
    y_ref_bf = feat_bf @ w_bf.T + fc_b
    y_ref_f32 = feat @ fc_w.T + fc_b

    assert jnp.allclose(sp, sp_ref, atol=1e-4, rtol=1e-4), "softplus mismatch"
    assert jnp.allclose(y, y_ref_bf, atol=2e-3, rtol=2e-3), "fc mismatch (bf16 ref)"
    assert jnp.allclose(y, y_ref_f32, atol=1e-1, rtol=1e-1), "fc mismatch (f32 ref)"

    print("KERNEL_OK")
</pallas_src>

<mosaic_0001>
module attributes {stable_mosaic.version = 11 : i64} {
  func.func @_fc_kernel(%arg0: i32, %arg1: i32, %arg2: memref<16x2048xbf16, #tpu.memory_space<vmem>>, %arg3: memref<2048x512xbf16, #tpu.memory_space<vmem>>, %arg4: memref<1x512xf32, #tpu.memory_space<vmem>>, %arg5: memref<16x512xf32, #tpu.memory_space<vmem>>) attributes {dimension_semantics = [#tpu.dimension_semantics<parallel>, #tpu.dimension_semantics<parallel>], iteration_bounds = array<i64: 2, 1>, scalar_prefetch = 0 : i64, scratch_operands = 0 : i64, tpu.core_type = #tpu.core_type<tc>, window_params = [{transform_indices = @transform_0, window_bounds = array<i64: 16, 2048>}, {transform_indices = @transform_1, window_bounds = array<i64: 2048, 512>}, {transform_indices = @transform_2, window_bounds = array<i64: 1, 512>}, {transform_indices = @transform_3, window_bounds = array<i64: 16, 512>}]} {
    %c0 = arith.constant 0 : index
    %c0_0 = arith.constant 0 : index
    %0 = vector.load %arg2[%c0, %c0_0] : memref<16x2048xbf16, #tpu.memory_space<vmem>>, vector<16x2048xbf16>
    %c0_1 = arith.constant 0 : index
    %c0_2 = arith.constant 0 : index
    %1 = vector.load %arg3[%c0_1, %c0_2] : memref<2048x512xbf16, #tpu.memory_space<vmem>>, vector<2048x512xbf16>
    %cst = arith.constant dense<0.000000e+00> : vector<16x512xf32>
    %2 = tpu.matmul %0, %1, %cst {dimension_numbers = #tpu.dot_dimension_numbers<[1], [0], [0], [1], [0, 0, 1, 1], [], []>} : vector<16x2048xbf16>, vector<2048x512xbf16>, vector<16x512xf32> -> vector<16x512xf32>
    %c0_3 = arith.constant 0 : index
    %c0_4 = arith.constant 0 : index
    %3 = vector.load %arg4[%c0_3, %c0_4] : memref<1x512xf32, #tpu.memory_space<vmem>>, vector<1x512xf32>
    %4 = vector.broadcast %3 : vector<1x512xf32> to vector<16x512xf32>
    %5 = arith.addf %2, %4 : vector<16x512xf32>
    %c0_5 = arith.constant 0 : index
    %c0_6 = arith.constant 0 : index
    %6 = vector.load %arg5[%c0_5, %c0_6] : memref<16x512xf32, #tpu.memory_space<vmem>>, vector<16x512xf32>
    tpu.vector_store %arg5[%c0_5, %c0_6], %5 {strides = array<i32>} : memref<16x512xf32, #tpu.memory_space<vmem>>, vector<16x512xf32>,
    return
  }
  func.func @transform_0(%arg0: i32, %arg1: i32) -> (i32, i32) {
    %c0_i32 = arith.constant 0 : i32
    %c0_i32_0 = arith.constant 0 : i32
    return %arg1, %c0_i32 : i32, i32
  }
  func.func @transform_1(%arg0: i32, %arg1: i32) -> (i32, i32) {
    %c0_i32 = arith.constant 0 : i32
    %c0_i32_0 = arith.constant 0 : i32
    return %c0_i32, %arg0 : i32, i32
  }
  func.func @transform_2(%arg0: i32, %arg1: i32) -> (i32, i32) {
    %c0_i32 = arith.constant 0 : i32
    %c0_i32_0 = arith.constant 0 : i32
    return %c0_i32, %arg0 : i32, i32
  }
  func.func @transform_3(%arg0: i32, %arg1: i32) -> (i32, i32) {
    %c0_i32 = arith.constant 0 : i32
    return %arg1, %arg0 : i32, i32
  }
}

module attributes {stable_mosaic.version = 11 : i64} {
  func.func @_softplus_kernel(%arg0: i32, %arg1: memref<8x2048xf32, #tpu.memory_space<vmem>>, %arg2: memref<8x2048xf32, #tpu.memory_space<vmem>>) attributes {dimension_semantics = [#tpu.dimension_semantics<parallel>], iteration_bounds = array<i64: 1>, scalar_prefetch = 0 : i64, scratch_operands = 0 : i64, tpu.core_type = #tpu.core_type<tc>, window_params = [{transform_indices = @transform_0, window_bounds = array<i64: 8, 2048>}, {transform_indices = @transform_1, window_bounds = array<i64: 8, 2048>}]} {
    %c0 = arith.constant 0 : index
    %c0_0 = arith.constant 0 : index
    %0 = vector.load %arg1[%c0, %c0_0] : memref<8x2048xf32, #tpu.memory_space<vmem>>, vector<8x2048xf32>
    %cst = arith.constant 0.000000e+00 : f32
    %1 = vector.broadcast %cst : f32 to vector<8x2048xf32>
    %2 = arith.maximumf %0, %1 : vector<8x2048xf32>
    %3 = math.absf %0 : vector<8x2048xf32>
    %cst_1 = arith.constant 0.000000e+00 : f32
    %4 = vector.broadcast %cst_1 : f32 to vector<8x2048xf32>
    %5 = arith.subf %4, %3 : vector<8x2048xf32>
    %6 = math.exp %5 : vector<8x2048xf32>
    %7 = math.log1p %6 : vector<8x2048xf32>
    %8 = arith.addf %2, %7 : vector<8x2048xf32>
    %c0_2 = arith.constant 0 : index
    %c0_3 = arith.constant 0 : index
    %9 = vector.load %arg2[%c0_2, %c0_3] : memref<8x2048xf32, #tpu.memory_space<vmem>>, vector<8x2048xf32>
    tpu.vector_store %arg2[%c0_2, %c0_3], %8 {strides = array<i32>} : memref<8x2048xf32, #tpu.memory_space<vmem>>, vector<8x2048xf32>,
    return
  }
  func.func @transform_0(%arg0: i32) -> (i32, i32) {
    %c0_i32 = arith.constant 0 : i32
    %c0_i32_0 = arith.constant 0 : i32
    return %arg0, %c0_i32 : i32, i32
  }
  func.func @transform_1(%arg0: i32) -> (i32, i32) {
    %c0_i32 = arith.constant 0 : i32
    %c0_i32_0 = arith.constant 0 : i32
    return %arg0, %c0_i32 : i32, i32
  }
}

</mosaic_0001>

<llo_original>
// kernel: res50_head_forward.2
$region0: #{res50_head_forward.2}
  #allocation0 [shape = 'u32[]', space=smem, size = 0x4, offset = 0x4, fixed_abs, tag = 'smem constant byte address 0x4 - core index']
  #allocation1 [shape = 'u32[144,128]{1,0:T(1,128)}', space=vmem, size = 0x12000, scoped, tag = 'internal scratch']
  %s0 = inlined_call_operand.vmem [shape: bf16[16,2048], index: 0, kind: input, shape index: {}]
  %s1 = inlined_call_operand.vmem [shape: bf16[2048,1024], index: 1, kind: input, shape index: {}]
  %s2 = inlined_call_operand.vmem [shape: f32[1,1024], index: 2, kind: input, shape index: {}]
  %s3 = inlined_call_operand.vmem [shape: f32[16,1024], index: 3, kind: output, shape index: {}]
  %s4 = sld [smem:[#allocation0]]
  $region87: #{res50_head_forward.2} parent=0
    _
  %s6 = ssub.s32 1, %s4
  %s7 = scalar_select 0, %s6, %s4
  $region1: #{res50_head_forward.2} parent=0
    #allocation2 [shape = 'u8[4194304]{0}', space=vmem, size = 0x400000, scoped, tag = 'input window, operand 1']
    #allocation3 [shape = 'u8[65536]{0}', space=vmem, size = 0x10000, scoped, tag = 'output window, operand 0']
    loop: start=0, step=1, limit=4
    $region2: #{res50_head_forward.2} parent=1 // loop_pre_header
      _
    $region3: #{res50_head_forward.2} parent=1 // loop_header
      %s9 = sphi 0, %s13
      %p10 = scmp.ge.s32.totalorder %s9, 4
      %s16 = sphi 0, %s28
      %s17 = sphi 0, %s24
      %s18 = sphi 0, %s16
      %s19 = sphi 0, %s17
      %s20 = sphi 0, %s18
      %s21 = sphi 0, %s19
      %s31 = sphi 0, %s33
      %s34 = sphi 0, %s31
      %s35 = sphi 0, %s34
      %s51 = sphi 0, %s35
      %s57 = sphi 0, %s59
      %s60 = sphi 0, %s57
      %s61 = sphi 0, %s60
      %s77 = sphi 0, %s61
      %s83 = sphi 0, %s85
      %s86 = sphi 0, %s83
      %s87 = sphi 0, %s86
      %s103 = sphi 0, %s87
      %s111 = sphi 0, %s113
      %s114 = sphi 0, %s111
      %s115 = sphi 0, %s114
      %s131 = sphi 0, %s115
    $region4: #{res50_head_forward.2} parent=1 // loop_header_branch
      %12 = sbr.rel (%p10) target = $region8
    $region5: #{res50_head_forward.2} parent=1 // loop_body
      %s14 = ssub.s32 %s9, 1
      %s15 = ssub.s32 %s9, 2
      %s22 = sadd.s32 1, %s17
      %p23 = scmp.ge.s32.totalorder %s22, 1
      %s24 = scalar_select %p23, 0, %s22
      %s25 = sadd.s32 1, %s16
      %s26 = scalar_select %p23, %s25, %s16
      %p27 = scmp.ge.s32.totalorder %s26, 2
      %s28 = scalar_select %p27, 0, %s26
      %s29 = ssub.s32 %s17, %s24
      %p30 = scmp.eq.s32.totalorder %s29, 0
      %s32 = sadd.s32 %s31, 1
      %s33 = scalar_select %p30, %s31, %s32
      %p36 = pneg %p30
      %p37 = scmp.eq.s32.totalorder %s9, 1
      %p38 = por %p36, %p37
      %p39 = scmp.ne.s32.totalorder %s31, %s34
      %p40 = scmp.eq.s32.totalorder %s9, 0
      %p41 = por %p39, %p40
      %p42 = scmp.ne.s32.totalorder %s31, %s34
      %p43 = scmp.eq.s32.totalorder %s14, 1
      %p44 = por %p42, %p43
      %p45 = scmp.ne.s32.totalorder %s34, %s35
      %p46 = scmp.eq.s32.totalorder %s14, 0
      %p47 = por %p45, %p46
      %p48 = scmp.ne.s32.totalorder %s34, %s35
      %p49 = scmp.eq.s32.totalorder %s15, 1
      %p50 = por %p48, %p49
      %p52 = scmp.ne.s32.totalorder %s35, %s51
      %p53 = scmp.eq.s32.totalorder %s15, 0
      %p54 = por %p52, %p53
      %s55 = ssub.s32 %s16, %s28
      %p56 = scmp.eq.s32.totalorder %s55, 0
      %s58 = sadd.s32 %s57, 1
      %s59 = scalar_select %p56, %s57, %s58
      %p62 = pneg %p56
      %p63 = scmp.eq.s32.totalorder %s9, 1
      %p64 = por %p62, %p63
      %p65 = scmp.ne.s32.totalorder %s57, %s60
      %p66 = scmp.eq.s32.totalorder %s9, 0
      %p67 = por %p65, %p66
      %p68 = scmp.ne.s32.totalorder %s57, %s60
      %p69 = scmp.eq.s32.totalorder %s14, 1
      %p70 = por %p68, %p69
      %p71 = scmp.ne.s32.totalorder %s60, %s61
      %p72 = scmp.eq.s32.totalorder %s14, 0
      %p73 = por %p71, %p72
      %p74 = scmp.ne.s32.totalorder %s60, %s61
      %p75 = scmp.eq.s32.totalorder %s15, 1
      %p76 = por %p74, %p75
      %p78 = scmp.ne.s32.totalorder %s61, %s77
      %p79 = scmp.eq.s32.totalorder %s15, 0
      %p80 = por %p78, %p79
      %s81 = ssub.s32 %s16, %s28
      %p82 = scmp.eq.s32.totalorder %s81, 0
      %s84 = sadd.s32 %s83, 1
      %s85 = scalar_select %p82, %s83, %s84
      %p88 = pneg %p82
      %p89 = scmp.eq.s32.totalorder %s9, 1
      %p90 = por %p88, %p89
      %p91 = scmp.ne.s32.totalorder %s83, %s86
      %p92 = scmp.eq.s32.totalorder %s9, 0
      %p93 = por %p91, %p92
      %p94 = scmp.ne.s32.totalorder %s83, %s86
      %p95 = scmp.eq.s32.totalorder %s14, 1
      %p96 = por %p94, %p95
      %p97 = scmp.ne.s32.totalorder %s86, %s87
      %p98 = scmp.eq.s32.totalorder %s14, 0
      %p99 = por %p97, %p98
      %p100 = scmp.ne.s32.totalorder %s86, %s87
      %p101 = scmp.eq.s32.totalorder %s15, 1
      %p102 = por %p100, %p101
      %p104 = scmp.ne.s32.totalorder %s87, %s103
      %p105 = scmp.eq.s32.totalorder %s15, 0
      %p106 = por %p104, %p105
      %s107 = ssub.s32 %s17, %s24
      %s108 = ssub.s32 %s16, %s28
      %s109 = sor.u32 %s107, %s108
      %p110 = scmp.eq.s32.totalorder %s109, 0
      %s112 = sadd.s32 %s111, 1
      %s113 = scalar_select %p110, %s111, %s112
      %p116 = pneg %p110
      %p117 = scmp.eq.s32.totalorder %s9, 1
      %p118 = por %p116, %p117
      %p119 = scmp.ne.s32.totalorder %s111, %s114
      %p120 = scmp.eq.s32.totalorder %s9, 0
      %p121 = por %p119, %p120
      %p122 = scmp.ne.s32.totalorder %s111, %s114
      %p123 = scmp.eq.s32.totalorder %s14, 1
      %p124 = por %p122, %p123
      %p125 = scmp.ne.s32.totalorder %s114, %s115
      %p126 = scmp.eq.s32.totalorder %s14, 0
      %p127 = por %p125, %p126
      %p128 = scmp.ne.s32.totalorder %s114, %s115
      %p129 = scmp.eq.s32.totalorder %s15, 1
      %p130 = por %p128, %p129
      %p132 = scmp.ne.s32.totalorder %s115, %s131
      %p133 = scmp.eq.s32.totalorder %s15, 0
      %p134 = por %p132, %p133
      %p135 = scmp.le.s32.totalorder 1, %s9
      %p136 = scmp.lt.s32.totalorder %s9, 3
      %p137 = pnand %p135, %p136
      %p138 = pneg %p137
      // Predicated region
      $region9: #{res50_head_forward.2} parent=5 // pred_check
        _
      $region10: #{res50_head_forward.2} parent=5 // pred_check_branch
        %140 = sbr.rel (%p137) target = $region12
      $region11: #{res50_head_forward.2} parent=5 // pred_region
        %s141 = ssub.s32 %s9, 1
        // Predicated region
        $region13: #{res50_head_forward.2} parent=11 // pred_check
          %p142 = pneg %p47
        $region14: #{res50_head_forward.2} parent=11 // pred_check_branch
          %144 = sbr.rel (%p142) target = $region16
        $region15: #{res50_head_forward.2} parent=11 // pred_region
          %s145 = smul.u32 2, %s19
          %p146 = scmp.lt.s32.totalorder %s145, 1
          %s147 = scalar_select %p146, %s145, 1
          %s148 = smul.addr %s147, 16
          %s149 = smul.addr %s148, 4
          %s150 = scalar_lea.vmem %s0, %s149
          %s151 = smul.u32 2, %s19
        $region16: #{res50_head_forward.2} parent=11 // pred_fallthru
          _
      $region12: #{res50_head_forward.2} parent=5 // pred_fallthru
        _
      %p152 = scmp.lt.s32.totalorder %s9, 2
      // Predicated region
      $region17: #{res50_head_forward.2} parent=5 // pred_check
        %p153 = pneg %p152
      $region18: #{res50_head_forward.2} parent=5 // pred_check_branch
        %155 = sbr.rel (%p153) target = $region20
      $region19: #{res50_head_forward.2} parent=5 // pred_region
        // Predicated region
        $region21: #{res50_head_forward.2} parent=19 // pred_check
          %p156 = pneg %p67
        $region22: #{res50_head_forward.2} parent=19 // pred_check_branch
          %158 = sbr.rel (%p156) target = $region24
        $region23: #{res50_head_forward.2} parent=19 // pred_region
          %s159 = sand.u32 %s57, 1
          %s160 = sand.u32 %s57, 1
          %s161 = smul.addr %s160, 4096
          %s162 = scalar_lea.vmem [#allocation2], %s161
          %s163 = smul.u32 4, %s16
          %s164 = smul.addr %s163, 4
          %s165 = scalar_lea.vmem %s1, %s164
          // Predicated region
          $region25: #{res50_head_forward.2} parent=23 // pred_check
            _
          $region26: #{res50_head_forward.2} parent=23 // pred_check_branch
            %167 = sbr.rel (0) target = $region28
          $region27: #{res50_head_forward.2} parent=23 // pred_region
            // Predicated region
            $region29: #{res50_head_forward.2} parent=27 // pred_check
              _
            $region30: #{res50_head_forward.2} parent=27 // pred_check_branch
              %169 = sbr.rel (0) target = $region32
            $region31: #{res50_head_forward.2} parent=27 // pred_region
              loop: start=0, step=1, limit=1
              $region33: #{res50_head_forward.2} parent=31 // loop_pre_header
                _
              $region34: #{res50_head_forward.2} parent=31 // loop_header
                %s171 = sphi 0, %s175
                %p172 = scmp.ge.s32.totalorder %s171, 1
                %s176 = sphi %s165, %s165
                %s177 = sphi %s162, %s162
              $region35: #{res50_head_forward.2} parent=31 // loop_header_branch
                %174 = sbr.rel (%p172) target = $region39
              $region36: #{res50_head_forward.2} parent=31 // loop_body
                %v178 = vld [vmem:[%s176] sm:$0xff]
                %179 = vst [vmem:[%s177] sm:$0xff] %v178
                %v180 = vld [vmem:[%s176 + $0x8] sm:$0xff]
                %181 = vst [vmem:[%s177 + $0x8] sm:$0xff] %v180
                %v182 = vld [vmem:[%s176 + $0x20] sm:$0xff]
                %183 = vst [vmem:[%s177 + $0x10] sm:$0xff] %v182
                %v184 = vld [vmem:[%s176 + $0x28] sm:$0xff]
                %185 = vst [vmem:[%s177 + $0x18] sm:$0xff] %v184
                %v186 = vld [vmem:[%s176 + $0x40] sm:$0xff]
                %187 = vst [vmem:[%s177 + $0x20] sm:$0xff] %v186
                %v188 = vld [vmem:[%s176 + $0x48] sm:$0xff]
                %189 = vst [vmem:[%s177 + $0x28] sm:$0xff] %v188
                %v190 = vld [vmem:[%s176 + $0x60] sm:$0xff]
                %191 = vst [vmem:[%s177 + $0x30] sm:$0xff] %v190
                %v192 = vld [vmem:[%s176 + $0x68] sm:$0xff]
                %193 = vst [vmem:[%s177 + $0x38] sm:$0xff] %v192
                %v194 = vld [vmem:[%s176 + $0x80] sm:$0xff]
                %195 = vst [vmem:[%s177 + $0x40] sm:$0xff] %v194
                %v196 = vld [vmem:[%s176 + $0x88] sm:$0xff]
                %197 = vst [vmem:[%s177 + $0x48] sm:$0xff] %v196
                %v198 = vld [vmem:[%s176 + $0xa0] sm:$0xff]
                %199 = vst [vmem:[%s177 + $0x50] sm:$0xff] %v198
                %v200 = vld [vmem:[%s176 + $0xa8] sm:$0xff]
                %201 = vst [vmem:[%s177 + $0x58] sm:$0xff] %v200
                %v202 = vld [vmem:[%s176 + $0xc0] sm:$0xff]
                %203 = vst [vmem:[%s177 + $0x60] sm:$0xff] %v202
                %v204 = vld [vmem:[%s176 + $0xc8] sm:$0xff]
                %205 = vst [vmem:[%s177 + $0x68] sm:$0xff] %v204
                %v206 = vld [vmem:[%s176 + $0xe0] sm:$0xff]
                %207 = vst [vmem:[%s177 + $0x70] sm:$0xff] %v206
                %v208 = vld [vmem:[%s176 + $0xe8] sm:$0xff]
                %209 = vst [vmem:[%s177 + $0x78] sm:$0xff] %v208
                %v210 = vld [vmem:[%s176 + $0x100] sm:$0xff]
                %211 = vst [vmem:[%s177 + $0x80] sm:$0xff] %v210
                %v212 = vld [vmem:[%s176 + $0x108] sm:$0xff]
                %213 = vst [vmem:[%s177 + $0x88] sm:$0xff] %v212
                %v214 = vld [vmem:[%s176 + $0x120] sm:$0xff]
                %215 = vst [vmem:[%s177 + $0x90] sm:$0xff] %v214
                %v216 = vld [vmem:[%s176 + $0x128] sm:$0xff]
                %217 = vst [vmem:[%s177 + $0x98] sm:$0xff] %v216
                %v218 = vld [vmem:[%s176 + $0x140] sm:$0xff]
                %219 = vst [vmem:[%s177 + $0xa0] sm:$0xff] %v218
                %v220 = vld [vmem:[%s176 + $0x148] sm:$0xff]
                %221 = vst [vmem:[%s177 + $0xa8] sm:$0xff] %v220
                %v222 = vld [vmem:[%s176 + $0x160] sm:$0xff]
                %223 = vst [vmem:[%s177 + $0xb0] sm:$0xff] %v222
                %v224 = vld [vmem:[%s176 + $0x168] sm:$0xff]
                %225 = vst [vmem:[%s177 + $0xb8] sm:$0xff] %v224
                %v226 = vld [vmem:[%s176 + $0x180] sm:$0xff]
                %227 = vst [vmem:[%s177 + $0xc0] sm:$0xff] %v226
                %v228 = vld [vmem:[%s176 + $0x188] sm:$0xff]
                %229 = vst [vmem:[%s177 + $0xc8] sm:$0xff] %v228
                %v230 = vld [vmem:[%s176 + $0x1a0] sm:$0xff]
                %231 = vst [vmem:[%s177 + $0xd0] sm:$0xff] %v230
                %v232 = vld [vmem:[%s176 + $0x1a8] sm:$0xff]
                %233 = vst [vmem:[%s177 + $0xd8] sm:$0xff] %v232
                %v234 = vld [vmem:[%s176 + $0x1c0] sm:$0xff]
                %235 = vst [vmem:[%s177 + $0xe0] sm:$0xff] %v234
                %v236 = vld [vmem:[%s176 + $0x1c8] sm:$0xff]
                %237 = vst [vmem:[%s177 + $0xe8] sm:$0xff] %v236
                %v238 = vld [vmem:[%s176 + $0x1e0] sm:$0xff]
                %239 = vst [vmem:[%s177 + $0xf0] sm:$0xff] %v238
                %v240 = vld [vmem:[%s176 + $0x1e8] sm:$0xff]
                %241 = vst [vmem:[%s177 + $0xf8] sm:$0xff] %v240
                %v242 = vld [vmem:[%s176 + $0x200] sm:$0xff]
                %243 = vst [vmem:[%s177 + $0x100] sm:$0xff] %v242
                %v244 = vld [vmem:[%s176 + $0x208] sm:$0xff]
                %245 = vst [vmem:[%s177 + $0x108] sm:$0xff] %v244
                %v246 = vld [vmem:[%s176 + $0x220] sm:$0xff]
                %247 = vst [vmem:[%s177 + $0x110] sm:$0xff] %v246
                %v248 = vld [vmem:[%s176 + $0x228] sm:$0xff]
                %249 = vst [vmem:[%s177 + $0x118] sm:$0xff] %v248
                %v250 = vld [vmem:[%s176 + $0x240] sm:$0xff]
                %251 = vst [vmem:[%s177 + $0x120] sm:$0xff] %v250
                %v252 = vld [vmem:[%s176 + $0x248] sm:$0xff]
                %253 = vst [vmem:[%s177 + $0x128] sm:$0xff] %v252
                %v254 = vld [vmem:[%s176 + $0x260] sm:$0xff]
                %255 = vst [vmem:[%s177 + $0x130] sm:$0xff] %v254
                %v256 = vld [vmem:[%s176 + $0x268] sm:$0xff]
                %257 = vst [vmem:[%s177 + $0x138] sm:$0xff] %v256
                %v258 = vld [vmem:[%s176 + $0x280] sm:$0xff]
                %259 = vst [vmem:[%s177 + $0x140] sm:$0xff] %v258
                %v260 = vld [vmem:[%s176 + $0x288] sm:$0xff]
                %261 = vst [vmem:[%s177 + $0x148] sm:$0xff] %v260
                %v262 = vld [vmem:[%s176 + $0x2a0] sm:$0xff]
                %263 = vst [vmem:[%s177 + $0x150] sm:$0xff] %v262
                %v264 = vld [vmem:[%s176 + $0x2a8] sm:$0xff]
                %265 = vst [vmem:[%s177 + $0x158] sm:$0xff] %v264
                %v266 = vld [vmem:[%s176 + $0x2c0] sm:$0xff]
                %267 = vst [vmem:[%s177 + $0x160] sm:$0xff] %v266
                %v268 = vld [vmem:[%s176 + $0x2c8] sm:$0xff]
                %269 = vst [vmem:[%s177 + $0x168] sm:$0xff] %v268
                %v270 = vld [vmem:[%s176 + $0x2e0] sm:$0xff]
                %271 = vst [vmem:[%s177 + $0x170] sm:$0xff] %v270
                %v272 = vld [vmem:[%s176 + $0x2e8] sm:$0xff]
                %273 = vst [vmem:[%s177 + $0x178] sm:$0xff] %v272
                %v274 = vld [vmem:[%s176 + $0x300] sm:$0xff]
                %275 = vst [vmem:[%s177 + $0x180] sm:$0xff] %v274
                %v276 = vld [vmem:[%s176 + $0x308] sm:$0xff]
                %277 = vst [vmem:[%s177 + $0x188] sm:$0xff] %v276
                %v278 = vld [vmem:[%s176 + $0x320] sm:$0xff]
                %279 = vst [vmem:[%s177 + $0x190] sm:$0xff] %v278
                %v280 = vld [vmem:[%s176 + $0x328] sm:$0xff]
                %281 = vst [vmem:[%s177 + $0x198] sm:$0xff] %v280
                %v282 = vld [vmem:[%s176 + $0x340] sm:$0xff]
                %283 = vst [vmem:[%s177 + $0x1a0] sm:$0xff] %v282
                %v284 = vld [vmem:[%s176 + $0x348] sm:$0xff]
                %285 = vst [vmem:[%s177 + $0x1a8] sm:$0xff] %v284
                %v286 = vld [vmem:[%s176 + $0x360] sm:$0xff]
                %287 = vst [vmem:[%s177 + $0x1b0] sm:$0xff] %v286
                %v288 = vld [vmem:[%s176 + $0x368] sm:$0xff]
                %289 = vst [vmem:[%s177 + $0x1b8] sm:$0xff] %v288
                %v290 = vld [vmem:[%s176 + $0x380] sm:$0xff]
                %291 = vst [vmem:[%s177 + $0x1c0] sm:$0xff] %v290
                %v292 = vld [vmem:[%s176 + $0x388] sm:$0xff]
                %293 = vst [vmem:[%s177 + $0x1c8] sm:$0xff] %v292
                %v294 = vld [vmem:[%s176 + $0x3a0] sm:$0xff]
                %295 = vst [vmem:[%s177 + $0x1d0] sm:$0xff] %v294
                %v296 = vld [vmem:[%s176 + $0x3a8] sm:$0xff]
                %297 = vst [vmem:[%s177 + $0x1d8] sm:$0xff] %v296
                %v298 = vld [vmem:[%s176 + $0x3c0] sm:$0xff]
                %299 = vst [vmem:[%s177 + $0x1e0] sm:$0xff] %v298
                %v300 = vld [vmem:[%s176 + $0x3c8] sm:$0xff]
                %301 = vst [vmem:[%s177 + $0x1e8] sm:$0xff] %v300
                %v302 = vld [vmem:[%s176 + $0x3e0] sm:$0xff]
                %303 = vst [vmem:[%s177 + $0x1f0] sm:$0xff] %v302
                %v304 = vld [vmem:[%s176 + $0x3e8] sm:$0xff]
                %305 = vst [vmem:[%s177 + $0x1f8] sm:$0xff] %v304
                %v306 = vld [vmem:[%s176 + $0x400] sm:$0xff]
                %307 = vst [vmem:[%s177 + $0x200] sm:$0xff] %v306
                %v308 = vld [vmem:[%s176 + $0x408] sm:$0xff]
                %309 = vst [vmem:[%s177 + $0x208] sm:$0xff] %v308
                %v310 = vld [vmem:[%s176 + $0x420] sm:$0xff]
                %311 = vst [vmem:[%s177 + $0x210] sm:$0xff] %v310
                %v312 = vld [vmem:[%s176 + $0x428] sm:$0xff]
                %313 = vst [vmem:[%s177 + $0x218] sm:$0xff] %v312
                %v314 = vld [vmem:[%s176 + $0x440] sm:$0xff]
                %315 = vst [vmem:[%s177 + $0x220] sm:$0xff] %v314
                %v316 = vld [vmem:[%s176 + $0x448] sm:$0xff]
                %317 = vst [vmem:[%s177 + $0x228] sm:$0xff] %v316
                %v318 = vld [vmem:[%s176 + $0x460] sm:$0xff]
                %319 = vst [vmem:[%s177 + $0x230] sm:$0xff] %v318
                %v320 = vld [vmem:[%s176 + $0x468] sm:$0xff]
                %321 = vst [vmem:[%s177 + $0x238] sm:$0xff] %v320
                %v322 = vld [vmem:[%s176 + $0x480] sm:$0xff]
                %323 = vst [vmem:[%s177 + $0x240] sm:$0xff] %v322
                %v324 = vld [vmem:[%s176 + $0x488] sm:$0xff]
                %325 = vst [vmem:[%s177 + $0x248] sm:$0xff] %v324
                %v326 = vld [vmem:[%s176 + $0x4a0] sm:$0xff]
                %327 = vst [vmem:[%s177 + $0x250] sm:$0xff] %v326
                %v328 = vld [vmem:[%s176 + $0x4a8] sm:$0xff]
                %329 = vst [vmem:[%s177 + $0x258] sm:$0xff] %v328
                %v330 = vld [vmem:[%s176 + $0x4c0] sm:$0xff]
                %331 = vst [vmem:[%s177 + $0x260] sm:$0xff] %v330
                %v332 = vld [vmem:[%s176 + $0x4c8] sm:$0xff]
                %333 = vst [vmem:[%s177 + $0x268] sm:$0xff] %v332
                %v334 = vld [vmem:[%s176 + $0x4e0] sm:$0xff]
                %335 = vst [vmem:[%s177 + $0x270] sm:$0xff] %v334
                %v336 = vld [vmem:[%s176 + $0x4e8] sm:$0xff]
                %337 = vst [vmem:[%s177 + $0x278] sm:$0xff] %v336
                %v338 = vld [vmem:[%s176 + $0x500] sm:$0xff]
                %339 = vst [vmem:[%s177 + $0x280] sm:$0xff] %v338
                %v340 = vld [vmem:[%s176 + $0x508] sm:$0xff]
                %341 = vst [vmem:[%s177 + $0x288] sm:$0xff] %v340
                %v342 = vld [vmem:[%s176 + $0x520] sm:$0xff]
                %343 = vst [vmem:[%s177 + $0x290] sm:$0xff] %v342
                %v344 = vld [vmem:[%s176 + $0x528] sm:$0xff]
                %345 = vst [vmem:[%s177 + $0x298] sm:$0xff] %v344
                %v346 = vld [vmem:[%s176 + $0x540] sm:$0xff]
                %347 = vst [vmem:[%s177 + $0x2a0] sm:$0xff] %v346
                %v348 = vld [vmem:[%s176 + $0x548] sm:$0xff]
                %349 = vst [vmem:[%s177 + $0x2a8] sm:$0xff] %v348
                %v350 = vld [vmem:[%s176 + $0x560] sm:$0xff]
                %351 = vst [vmem:[%s177 + $0x2b0] sm:$0xff] %v350
                %v352 = vld [vmem:[%s176 + $0x568] sm:$0xff]
                %353 = vst [vmem:[%s177 + $0x2b8] sm:$0xff] %v352
                %v354 = vld [vmem:[%s176 + $0x580] sm:$0xff]
                %355 = vst [vmem:[%s177 + $0x2c0] sm:$0xff] %v354
                %v356 = vld [vmem:[%s176 + $0x588] sm:$0xff]
                %357 = vst [vmem:[%s177 + $0x2c8] sm:$0xff] %v356
                %v358 = vld [vmem:[%s176 + $0x5a0] sm:$0xff]
                %359 = vst [vmem:[%s177 + $0x2d0] sm:$0xff] %v358
                %v360 = vld [vmem:[%s176 + $0x5a8] sm:$0xff]
                %361 = vst [vmem:[%s177 + $0x2d8] sm:$0xff] %v360
                %v362 = vld [vmem:[%s176 + $0x5c0] sm:$0xff]
                %363 = vst [vmem:[%s177 + $0x2e0] sm:$0xff] %v362
                %v364 = vld [vmem:[%s176 + $0x5c8] sm:$0xff]
                %365 = vst [vmem:[%s177 + $0x2e8] sm:$0xff] %v364
                %v366 = vld [vmem:[%s176 + $0x5e0] sm:$0xff]
                %367 = vst [vmem:[%s177 + $0x2f0] sm:$0xff] %v366
                %v368 = vld [vmem:[%s176 + $0x5e8] sm:$0xff]
                %369 = vst [vmem:[%s177 + $0x2f8] sm:$0xff] %v368
                %v370 = vld [vmem:[%s176 + $0x600] sm:$0xff]
                %371 = vst [vmem:[%s177 + $0x300] sm:$0xff] %v370
                %v372 = vld [vmem:[%s176 + $0x608] sm:$0xff]
                %373 = vst [vmem:[%s177 + $0x308] sm:$0xff] %v372
                %v374 = vld [vmem:[%s176 + $0x620] sm:$0xff]
                %375 = vst [vmem:[%s177 + $0x310] sm:$0xff] %v374
                %v376 = vld [vmem:[%s176 + $0x628] sm:$0xff]
                %377 = vst [vmem:[%s177 + $0x318] sm:$0xff] %v376
                %v378 = vld [vmem:[%s176 + $0x640] sm:$0xff]
                %379 = vst [vmem:[%s177 + $0x320] sm:$0xff] %v378
                %v380 = vld [vmem:[%s176 + $0x648] sm:$0xff]
                %381 = vst [vmem:[%s177 + $0x328] sm:$0xff] %v380
                %v382 = vld [vmem:[%s176 + $0x660] sm:$0xff]
                %383 = vst [vmem:[%s177 + $0x330] sm:$0xff] %v382
                %v384 = vld [vmem:[%s176 + $0x668] sm:$0xff]
                %385 = vst [vmem:[%s177 + $0x338] sm:$0xff] %v384
                %v386 = vld [vmem:[%s176 + $0x680] sm:$0xff]
                %387 = vst [vmem:[%s177 + $0x340] sm:$0xff] %v386
                %v388 = vld [vmem:[%s176 + $0x688] sm:$0xff]
                %389 = vst [vmem:[%s177 + $0x348] sm:$0xff] %v388
                %v390 = vld [vmem:[%s176 + $0x6a0] sm:$0xff]
                %391 = vst [vmem:[%s177 + $0x350] sm:$0xff] %v390
                %v392 = vld [vmem:[%s176 + $0x6a8] sm:$0xff]
                %393 = vst [vmem:[%s177 + $0x358] sm:$0xff] %v392
                %v394 = vld [vmem:[%s176 + $0x6c0] sm:$0xff]
                %395 = vst [vmem:[%s177 + $0x360] sm:$0xff] %v394
                %v396 = vld [vmem:[%s176 + $0x6c8] sm:$0xff]
                %397 = vst [vmem:[%s177 + $0x368] sm:$0xff] %v396
                %v398 = vld [vmem:[%s176 + $0x6e0] sm:$0xff]
                %399 = vst [vmem:[%s177 + $0x370] sm:$0xff] %v398
                %v400 = vld [vmem:[%s176 + $0x6e8] sm:$0xff]
                %401 = vst [vmem:[%s177 + $0x378] sm:$0xff] %v400
                %v402 = vld [vmem:[%s176 + $0x700] sm:$0xff]
                %403 = vst [vmem:[%s177 + $0x380] sm:$0xff] %v402
                %v404 = vld [vmem:[%s176 + $0x708] sm:$0xff]
                %405 = vst [vmem:[%s177 + $0x388] sm:$0xff] %v404
                %v406 = vld [vmem:[%s176 + $0x720] sm:$0xff]
                %407 = vst [vmem:[%s177 + $0x390] sm:$0xff] %v406
                %v408 = vld [vmem:[%s176 + $0x728] sm:$0xff]
                %409 = vst [vmem:[%s177 + $0x398] sm:$0xff] %v408
                %v410 = vld [vmem:[%s176 + $0x740] sm:$0xff]
                %411 = vst [vmem:[%s177 + $0x3a0] sm:$0xff] %v410
                %v412 = vld [vmem:[%s176 + $0x748] sm:$0xff]
                %413 = vst [vmem:[%s177 + $0x3a8] sm:$0xff] %v412
                %v414 = vld [vmem:[%s176 + $0x760] sm:$0xff]
                %415 = vst [vmem:[%s177 + $0x3b0] sm:$0xff] %v414
                %v416 = vld [vmem:[%s176 + $0x768] sm:$0xff]
                %417 = vst [vmem:[%s177 + $0x3b8] sm:$0xff] %v416
                %v418 = vld [vmem:[%s176 + $0x780] sm:$0xff]
                %419 = vst [vmem:[%s177 + $0x3c0] sm:$0xff] %v418
                %v420 = vld [vmem:[%s176 + $0x788] sm:$0xff]
                %421 = vst [vmem:[%s177 + $0x3c8] sm:$0xff] %v420
                %v422 = vld [vmem:[%s176 + $0x7a0] sm:$0xff]
                %423 = vst [vmem:[%s177 + $0x3d0] sm:$0xff] %v422
                %v424 = vld [vmem:[%s176 + $0x7a8] sm:$0xff]
                %425 = vst [vmem:[%s177 + $0x3d8] sm:$0xff] %v424
                %v426 = vld [vmem:[%s176 + $0x7c0] sm:$0xff]
                %427 = vst [vmem:[%s177 + $0x3e0] sm:$0xff] %v426
                %v428 = vld [vmem:[%s176 + $0x7c8] sm:$0xff]
                %429 = vst [vmem:[%s177 + $0x3e8] sm:$0xff] %v428
                %v430 = vld [vmem:[%s176 + $0x7e0] sm:$0xff]
                %431 = vst [vmem:[%s177 + $0x3f0] sm:$0xff] %v430
                %v432 = vld [vmem:[%s176 + $0x7e8] sm:$0xff]
                %433 = vst [vmem:[%s177 + $0x3f8] sm:$0xff] %v432
                %v434 = vld [vmem:[%s176 + $0x800] sm:$0xff]
                %435 = vst [vmem:[%s177 + $0x400] sm:$0xff] %v434
                %v436 = vld [vmem:[%s176 + $0x808] sm:$0xff]
                %437 = vst [vmem:[%s177 + $0x408] sm:$0xff] %v436
                %v438 = vld [vmem:[%s176 + $0x820] sm:$0xff]
                %439 = vst [vmem:[%s177 + $0x410] sm:$0xff] %v438
                %v440 = vld [vmem:[%s176 + $0x828] sm:$0xff]
                %441 = vst [vmem:[%s177 + $0x418] sm:$0xff] %v440
                %v442 = vld [vmem:[%s176 + $0x840] sm:$0xff]
                %443 = vst [vmem:[%s177 + $0x420] sm:$0xff] %v442
                %v444 = vld [vmem:[%s176 + $0x848] sm:$0xff]
                %445 = vst [vmem:[%s177 + $0x428] sm:$0xff] %v444
                %v446 = vld [vmem:[%s176 + $0x860] sm:$0xff]
                %447 = vst [vmem:[%s177 + $0x430] sm:$0xff] %v446
                %v448 = vld [vmem:[%s176 + $0x868] sm:$0xff]
                %449 = vst [vmem:[%s177 + $0x438] sm:$0xff] %v448
                %v450 = vld [vmem:[%s176 + $0x880] sm:$0xff]
                %451 = vst [vmem:[%s177 + $0x440] sm:$0xff] %v450
                %v452 = vld [vmem:[%s176 + $0x888] sm:$0xff]
                %453 = vst [vmem:[%s177 + $0x448] sm:$0xff] %v452
                %v454 = vld [vmem:[%s176 + $0x8a0] sm:$0xff]
                %455 = vst [vmem:[%s177 + $0x450] sm:$0xff] %v454
                %v456 = vld [vmem:[%s176 + $0x8a8] sm:$0xff]
                %457 = vst [vmem:[%s177 + $0x458] sm:$0xff] %v456
                %v458 = vld [vmem:[%s176 + $0x8c0] sm:$0xff]
                %459 = vst [vmem:[%s177 + $0x460] sm:$0xff] %v458
                %v460 = vld [vmem:[%s176 + $0x8c8] sm:$0xff]
                %461 = vst [vmem:[%s177 + $0x468] sm:$0xff] %v460
                %v462 = vld [vmem:[%s176 + $0x8e0] sm:$0xff]
                %463 = vst [vmem:[%s177 + $0x470] sm:$0xff] %v462
                %v464 = vld [vmem:[%s176 + $0x8e8] sm:$0xff]
                %465 = vst [vmem:[%s177 + $0x478] sm:$0xff] %v464
                %v466 = vld [vmem:[%s176 + $0x900] sm:$0xff]
                %467 = vst [vmem:[%s177 + $0x480] sm:$0xff] %v466
                %v468 = vld [vmem:[%s176 + $0x908] sm:$0xff]
                %469 = vst [vmem:[%s177 + $0x488] sm:$0xff] %v468
                %v470 = vld [vmem:[%s176 + $0x920] sm:$0xff]
                %471 = vst [vmem:[%s177 + $0x490] sm:$0xff] %v470
                %v472 = vld [vmem:[%s176 + $0x928] sm:$0xff]
                %473 = vst [vmem:[%s177 + $0x498] sm:$0xff] %v472
                %v474 = vld [vmem:[%s176 + $0x940] sm:$0xff]
                %475 = vst [vmem:[%s177 + $0x4a0] sm:$0xff] %v474
                %v476 = vld [vmem:[%s176 + $0x948] sm:$0xff]
                %477 = vst [vmem:[%s177 + $0x4a8] sm:$0xff] %v476
                %v478 = vld [vmem:[%s176 + $0x960] sm:$0xff]
                %479 = vst [vmem:[%s177 + $0x4b0] sm:$0xff] %v478
                %v480 = vld [vmem:[%s176 + $0x968] sm:$0xff]
                %481 = vst [vmem:[%s177 + $0x4b8] sm:$0xff] %v480
                %v482 = vld [vmem:[%s176 + $0x980] sm:$0xff]
                %483 = vst [vmem:[%s177 + $0x4c0] sm:$0xff] %v482
                %v484 = vld [vmem:[%s176 + $0x988] sm:$0xff]
                %485 = vst [vmem:[%s177 + $0x4c8] sm:$0xff] %v484
                %v486 = vld [vmem:[%s176 + $0x9a0] sm:$0xff]
                %487 = vst [vmem:[%s177 + $0x4d0] sm:$0xff] %v486
                %v488 = vld [vmem:[%s176 + $0x9a8] sm:$0xff]
                %489 = vst [vmem:[%s177 + $0x4d8] sm:$0xff] %v488
                %v490 = vld [vmem:[%s176 + $0x9c0] sm:$0xff]
                %491 = vst [vmem:[%s177 + $0x4e0] sm:$0xff] %v490
                %v492 = vld [vmem:[%s176 + $0x9c8] sm:$0xff]
                %493 = vst [vmem:[%s177 + $0x4e8] sm:$0xff] %v492
                %v494 = vld [vmem:[%s176 + $0x9e0] sm:$0xff]
                %495 = vst [vmem:[%s177 + $0x4f0] sm:$0xff] %v494
                %v496 = vld [vmem:[%s176 + $0x9e8] sm:$0xff]
                %497 = vst [vmem:[%s177 + $0x4f8] sm:$0xff] %v496
                %v498 = vld [vmem:[%s176 + $0xa00] sm:$0xff]
                %499 = vst [vmem:[%s177 + $0x500] sm:$0xff] %v498
                %v500 = vld [vmem:[%s176 + $0xa08] sm:$0xff]
                %501 = vst [vmem:[%s177 + $0x508] sm:$0xff] %v500
                %v502 = vld [vmem:[%s176 + $0xa20] sm:$0xff]
                %503 = vst [vmem:[%s177 + $0x510] sm:$0xff] %v502
                %v504 = vld [vmem:[%s176 + $0xa28] sm:$0xff]
                %505 = vst [vmem:[%s177 + $0x518] sm:$0xff] %v504
                %v506 = vld [vmem:[%s176 + $0xa40] sm:$0xff]
                %507 = vst [vmem:[%s177 + $0x520] sm:$0xff] %v506
                %v508 = vld [vmem:[%s176 + $0xa48] sm:$0xff]
                %509 = vst [vmem:[%s177 + $0x528] sm:$0xff] %v508
                %v510 = vld [vmem:[%s176 + $0xa60] sm:$0xff]
                %511 = vst [vmem:[%s177 + $0x530] sm:$0xff] %v510
                %v512 = vld [vmem:[%s176 + $0xa68] sm:$0xff]
                %513 = vst [vmem:[%s177 + $0x538] sm:$0xff] %v512
                %v514 = vld [vmem:[%s176 + $0xa80] sm:$0xff]
                %515 = vst [vmem:[%s177 + $0x540] sm:$0xff] %v514
                %v516 = vld [vmem:[%s176 + $0xa88] sm:$0xff]
                %517 = vst [vmem:[%s177 + $0x548] sm:$0xff] %v516
                %v518 = vld [vmem:[%s176 + $0xaa0] sm:$0xff]
                %519 = vst [vmem:[%s177 + $0x550] sm:$0xff] %v518
                %v520 = vld [vmem:[%s176 + $0xaa8] sm:$0xff]
                %521 = vst [vmem:[%s177 + $0x558] sm:$0xff] %v520
                %v522 = vld [vmem:[%s176 + $0xac0] sm:$0xff]
                %523 = vst [vmem:[%s177 + $0x560] sm:$0xff] %v522
                %v524 = vld [vmem:[%s176 + $0xac8] sm:$0xff]
                %525 = vst [vmem:[%s177 + $0x568] sm:$0xff] %v524
                %v526 = vld [vmem:[%s176 + $0xae0] sm:$0xff]
                %527 = vst [vmem:[%s177 + $0x570] sm:$0xff] %v526
                %v528 = vld [vmem:[%s176 + $0xae8] sm:$0xff]
                %529 = vst [vmem:[%s177 + $0x578] sm:$0xff] %v528
                %v530 = vld [vmem:[%s176 + $0xb00] sm:$0xff]
                %531 = vst [vmem:[%s177 + $0x580] sm:$0xff] %v530
                %v532 = vld [vmem:[%s176 + $0xb08] sm:$0xff]
                %533 = vst [vmem:[%s177 + $0x588] sm:$0xff] %v532
                %v534 = vld [vmem:[%s176 + $0xb20] sm:$0xff]
                %535 = vst [vmem:[%s177 + $0x590] sm:$0xff] %v534
                %v536 = vld [vmem:[%s176 + $0xb28] sm:$0xff]
                %537 = vst [vmem:[%s177 + $0x598] sm:$0xff] %v536
                %v538 = vld [vmem:[%s176 + $0xb40] sm:$0xff]
                %539 = vst [vmem:[%s177 + $0x5a0] sm:$0xff] %v538
                %v540 = vld [vmem:[%s176 + $0xb48] sm:$0xff]
                %541 = vst [vmem:[%s177 + $0x5a8] sm:$0xff] %v540
                %v542 = vld [vmem:[%s176 + $0xb60] sm:$0xff]
                %543 = vst [vmem:[%s177 + $0x5b0] sm:$0xff] %v542
                %v544 = vld [vmem:[%s176 + $0xb68] sm:$0xff]
                %545 = vst [vmem:[%s177 + $0x5b8] sm:$0xff] %v544
                %v546 = vld [vmem:[%s176 + $0xb80] sm:$0xff]
                %547 = vst [vmem:[%s177 + $0x5c0] sm:$0xff] %v546
                %v548 = vld [vmem:[%s176 + $0xb88] sm:$0xff]
                %549 = vst [vmem:[%s177 + $0x5c8] sm:$0xff] %v548
                %v550 = vld [vmem:[%s176 + $0xba0] sm:$0xff]
                %551 = vst [vmem:[%s177 + $0x5d0] sm:$0xff] %v550
                %v552 = vld [vmem:[%s176 + $0xba8] sm:$0xff]
                %553 = vst [vmem:[%s177 + $0x5d8] sm:$0xff] %v552
                %v554 = vld [vmem:[%s176 + $0xbc0] sm:$0xff]
                %555 = vst [vmem:[%s177 + $0x5e0] sm:$0xff] %v554
                %v556 = vld [vmem:[%s176 + $0xbc8] sm:$0xff]
                %557 = vst [vmem:[%s177 + $0x5e8] sm:$0xff] %v556
                %v558 = vld [vmem:[%s176 + $0xbe0] sm:$0xff]
                %559 = vst [vmem:[%s177 + $0x5f0] sm:$0xff] %v558
                %v560 = vld [vmem:[%s176 + $0xbe8] sm:$0xff]
                %561 = vst [vmem:[%s177 + $0x5f8] sm:$0xff] %v560
                %v562 = vld [vmem:[%s176 + $0xc00] sm:$0xff]
                %563 = vst [vmem:[%s177 + $0x600] sm:$0xff] %v562
                %v564 = vld [vmem:[%s176 + $0xc08] sm:$0xff]
                %565 = vst [vmem:[%s177 + $0x608] sm:$0xff] %v564
                %v566 = vld [vmem:[%s176 + $0xc20] sm:$0xff]
                %567 = vst [vmem:[%s177 + $0x610] sm:$0xff] %v566
                %v568 = vld [vmem:[%s176 + $0xc28] sm:$0xff]
                %569 = vst [vmem:[%s177 + $0x618] sm:$0xff] %v568
                %v570 = vld [vmem:[%s176 + $0xc40] sm:$0xff]
                %571 = vst [vmem:[%s177 + $0x620] sm:$0xff] %v570
                %v572 = vld [vmem:[%s176 + $0xc48] sm:$0xff]
                %573 = vst [vmem:[%s177 + $0x628] sm:$0xff] %v572
                %v574 = vld [vmem:[%s176 + $0xc60] sm:$0xff]
                %575 = vst [vmem:[%s177 + $0x630] sm:$0xff] %v574
                %v576 = vld [vmem:[%s176 + $0xc68] sm:$0xff]
                %577 = vst [vmem:[%s177 + $0x638] sm:$0xff] %v576
                %v578 = vld [vmem:[%s176 + $0xc80] sm:$0xff]
                %579 = vst [vmem:[%s177 + $0x640] sm:$0xff] %v578
                %v580 = vld [vmem:[%s176 + $0xc88] sm:$0xff]
                %581 = vst [vmem:[%s177 + $0x648] sm:$0xff] %v580
                %v582 = vld [vmem:[%s176 + $0xca0] sm:$0xff]
                %583 = vst [vmem:[%s177 + $0x650] sm:$0xff] %v582
                %v584 = vld [vmem:[%s176 + $0xca8] sm:$0xff]
                %585 = vst [vmem:[%s177 + $0x658] sm:$0xff] %v584
                %v586 = vld [vmem:[%s176 + $0xcc0] sm:$0xff]
                %587 = vst [vmem:[%s177 + $0x660] sm:$0xff] %v586
                %v588 = vld [vmem:[%s176 + $0xcc8] sm:$0xff]
                %589 = vst [vmem:[%s177 + $0x668] sm:$0xff] %v588
                %v590 = vld [vmem:[%s176 + $0xce0] sm:$0xff]
                %591 = vst [vmem:[%s177 + $0x670] sm:$0xff] %v590
                %v592 = vld [vmem:[%s176 + $0xce8] sm:$0xff]
                %593 = vst [vmem:[%s177 + $0x678] sm:$0xff] %v592
                %v594 = vld [vmem:[%s176 + $0xd00] sm:$0xff]
                %595 = vst [vmem:[%s177 + $0x680] sm:$0xff] %v594
                %v596 = vld [vmem:[%s176 + $0xd08] sm:$0xff]
                %597 = vst [vmem:[%s177 + $0x688] sm:$0xff] %v596
                %v598 = vld [vmem:[%s176 + $0xd20] sm:$0xff]
                %599 = vst [vmem:[%s177 + $0x690] sm:$0xff] %v598
                %v600 = vld [vmem:[%s176 + $0xd28] sm:$0xff]
                %601 = vst [vmem:[%s177 + $0x698] sm:$0xff] %v600
                %v602 = vld [vmem:[%s176 + $0xd40] sm:$0xff]
                %603 = vst [vmem:[%s177 + $0x6a0] sm:$0xff] %v602
                %v604 = vld [vmem:[%s176 + $0xd48] sm:$0xff]
                %605 = vst [vmem:[%s177 + $0x6a8] sm:$0xff] %v604
                %v606 = vld [vmem:[%s176 + $0xd60] sm:$0xff]
                %607 = vst [vmem:[%s177 + $0x6b0] sm:$0xff] %v606
                %v608 = vld [vmem:[%s176 + $0xd68] sm:$0xff]
                %609 = vst [vmem:[%s177 + $0x6b8] sm:$0xff] %v608
                %v610 = vld [vmem:[%s176 + $0xd80] sm:$0xff]
                %611 = vst [vmem:[%s177 + $0x6c0] sm:$0xff] %v610
                %v612 = vld [vmem:[%s176 + $0xd88] sm:$0xff]
                %613 = vst [vmem:[%s177 + $0x6c8] sm:$0xff] %v612
                %v614 = vld [vmem:[%s176 + $0xda0] sm:$0xff]
                %615 = vst [vmem:[%s177 + $0x6d0] sm:$0xff] %v614
                %v616 = vld [vmem:[%s176 + $0xda8] sm:$0xff]
                %617 = vst [vmem:[%s177 + $0x6d8] sm:$0xff] %v616
                %v618 = vld [vmem:[%s176 + $0xdc0] sm:$0xff]
                %619 = vst [vmem:[%s177 + $0x6e0] sm:$0xff] %v618
                %v620 = vld [vmem:[%s176 + $0xdc8] sm:$0xff]
                %621 = vst [vmem:[%s177 + $0x6e8] sm:$0xff] %v620
                %v622 = vld [vmem:[%s176 + $0xde0] sm:$0xff]
                %623 = vst [vmem:[%s177 + $0x6f0] sm:$0xff] %v622
                %v624 = vld [vmem:[%s176 + $0xde8] sm:$0xff]
                %625 = vst [vmem:[%s177 + $0x6f8] sm:$0xff] %v624
                %v626 = vld [vmem:[%s176 + $0xe00] sm:$0xff]
                %627 = vst [vmem:[%s177 + $0x700] sm:$0xff] %v626
                %v628 = vld [vmem:[%s176 + $0xe08] sm:$0xff]
                %629 = vst [vmem:[%s177 + $0x708] sm:$0xff] %v628
                %v630 = vld [vmem:[%s176 + $0xe20] sm:$0xff]
                %631 = vst [vmem:[%s177 + $0x710] sm:$0xff] %v630
                %v632 = vld [vmem:[%s176 + $0xe28] sm:$0xff]
                %633 = vst [vmem:[%s177 + $0x718] sm:$0xff] %v632
                %v634 = vld [vmem:[%s176 + $0xe40] sm:$0xff]
                %635 = vst [vmem:[%s177 + $0x720] sm:$0xff] %v634
                %v636 = vld [vmem:[%s176 + $0xe48] sm:$0xff]
                %637 = vst [vmem:[%s177 + $0x728] sm:$0xff] %v636
                %v638 = vld [vmem:[%s176 + $0xe60] sm:$0xff]
                %639 = vst [vmem:[%s177 + $0x730] sm:$0xff] %v638
                %v640 = vld [vmem:[%s176 + $0xe68] sm:$0xff]
                %641 = vst [vmem:[%s177 + $0x738] sm:$0xff] %v640
                %v642 = vld [vmem:[%s176 + $0xe80] sm:$0xff]
                %643 = vst [vmem:[%s177 + $0x740] sm:$0xff] %v642
                %v644 = vld [vmem:[%s176 + $0xe88] sm:$0xff]
                %645 = vst [vmem:[%s177 + $0x748] sm:$0xff] %v644
                %v646 = vld [vmem:[%s176 + $0xea0] sm:$0xff]
                %647 = vst [vmem:[%s177 + $0x750] sm:$0xff] %v646
                %v648 = vld [vmem:[%s176 + $0xea8] sm:$0xff]
                %649 = vst [vmem:[%s177 + $0x758] sm:$0xff] %v648
                %v650 = vld [vmem:[%s176 + $0xec0] sm:$0xff]
                %651 = vst [vmem:[%s177 + $0x760] sm:$0xff] %v650
                %v652 = vld [vmem:[%s176 + $0xec8] sm:$0xff]
                %653 = vst [vmem:[%s177 + $0x768] sm:$0xff] %v652
                %v654 = vld [vmem:[%s176 + $0xee0] sm:$0xff]
                %655 = vst [vmem:[%s177 + $0x770] sm:$0xff] %v654
                %v656 = vld [vmem:[%s176 + $0xee8] sm:$0xff]
                %657 = vst [vmem:[%s177 + $0x778] sm:$0xff] %v656
                %v658 = vld [vmem:[%s176 + $0xf00] sm:$0xff]
                %659 = vst [vmem:[%s177 + $0x780] sm:$0xff] %v658
                %v660 = vld [vmem:[%s176 + $0xf08] sm:$0xff]
                %661 = vst [vmem:[%s177 + $0x788] sm:$0xff] %v660
                %v662 = vld [vmem:[%s176 + $0xf20] sm:$0xff]
                %663 = vst [vmem:[%s177 + $0x790] sm:$0xff] %v662
                %v664 = vld [vmem:[%s176 + $0xf28] sm:$0xff]
                %665 = vst [vmem:[%s177 + $0x798] sm:$0xff] %v664
                %v666 = vld [vmem:[%s176 + $0xf40] sm:$0xff]
                %667 = vst [vmem:[%s177 + $0x7a0] sm:$0xff] %v666
                %v668 = vld [vmem:[%s176 + $0xf48] sm:$0xff]
                %669 = vst [vmem:[%s177 + $0x7a8] sm:$0xff] %v668
                %v670 = vld [vmem:[%s176 + $0xf60] sm:$0xff]
                %671 = vst [vmem:[%s177 + $0x7b0] sm:$0xff] %v670
                %v672 = vld [vmem:[%s176 + $0xf68] sm:$0xff]
                %673 = vst [vmem:[%s177 + $0x7b8] sm:$0xff] %v672
                %v674 = vld [vmem:[%s176 + $0xf80] sm:$0xff]
                %675 = vst [vmem:[%s177 + $0x7c0] sm:$0xff] %v674
                %v676 = vld [vmem:[%s176 + $0xf88] sm:$0xff]
                %677 = vst [vmem:[%s177 + $0x7c8] sm:$0xff] %v676
                %v678 = vld [vmem:[%s176 + $0xfa0] sm:$0xff]
                %679 = vst [vmem:[%s177 + $0x7d0] sm:$0xff] %v678
                %v680 = vld [vmem:[%s176 + $0xfa8] sm:$0xff]
                %681 = vst [vmem:[%s177 + $0x7d8] sm:$0xff] %v680
                %v682 = vld [vmem:[%s176 + $0xfc0] sm:$0xff]
                %683 = vst [vmem:[%s177 + $0x7e0] sm:$0xff] %v682
                %v684 = vld [vmem:[%s176 + $0xfc8] sm:$0xff]
                %685 = vst [vmem:[%s177 + $0x7e8] sm:$0xff] %v684
                %v686 = vld [vmem:[%s176 + $0xfe0] sm:$0xff]
                %687 = vst [vmem:[%s177 + $0x7f0] sm:$0xff] %v686
                %v688 = vld [vmem:[%s176 + $0xfe8] sm:$0xff]
                %689 = vst [vmem:[%s177 + $0x7f8] sm:$0xff] %v688
                %v690 = vld [vmem:[%s176 + $0x1000] sm:$0xff]
                %691 = vst [vmem:[%s177 + $0x800] sm:$0xff] %v690
                %v692 = vld [vmem:[%s176 + $0x1008] sm:$0xff]
                %693 = vst [vmem:[%s177 + $0x808] sm:$0xff] %v692
                %v694 = vld [vmem:[%s176 + $0x1020] sm:$0xff]
                %695 = vst [vmem:[%s177 + $0x810] sm:$0xff] %v694
                %v696 = vld [vmem:[%s176 + $0x1028] sm:$0xff]
                %697 = vst [vmem:[%s177 + $0x818] sm:$0xff] %v696
                %v698 = vld [vmem:[%s176 + $0x1040] sm:$0xff]
                %699 = vst [vmem:[%s177 + $0x820] sm:$0xff] %v698
                %v700 = vld [vmem:[%s176 + $0x1048] sm:$0xff]
                %701 = vst [vmem:[%s177 + $0x828] sm:$0xff] %v700
                %v702 = vld [vmem:[%s176 + $0x1060] sm:$0xff]
                %703 = vst [vmem:[%s177 + $0x830] sm:$0xff] %v702
                %v704 = vld [vmem:[%s176 + $0x1068] sm:$0xff]
                %705 = vst [vmem:[%s177 + $0x838] sm:$0xff] %v704
                %v706 = vld [vmem:[%s176 + $0x1080] sm:$0xff]
                %707 = vst [vmem:[%s177 + $0x840] sm:$0xff] %v706
                %v708 = vld [vmem:[%s176 + $0x1088] sm:$0xff]
                %709 = vst [vmem:[%s177 + $0x848] sm:$0xff] %v708
                %v710 = vld [vmem:[%s176 + $0x10a0] sm:$0xff]
                %711 = vst [vmem:[%s177 + $0x850] sm:$0xff] %v710
                %v712 = vld [vmem:[%s176 + $0x10a8] sm:$0xff]
                %713 = vst [vmem:[%s177 + $0x858] sm:$0xff] %v712
                %v714 = vld [vmem:[%s176 + $0x10c0] sm:$0xff]
                %715 = vst [vmem:[%s177 + $0x860] sm:$0xff] %v714
                %v716 = vld [vmem:[%s176 + $0x10c8] sm:$0xff]
                %717 = vst [vmem:[%s177 + $0x868] sm:$0xff] %v716
                %v718 = vld [vmem:[%s176 + $0x10e0] sm:$0xff]
                %719 = vst [vmem:[%s177 + $0x870] sm:$0xff] %v718
                %v720 = vld [vmem:[%s176 + $0x10e8] sm:$0xff]
                %721 = vst [vmem:[%s177 + $0x878] sm:$0xff] %v720
                %v722 = vld [vmem:[%s176 + $0x1100] sm:$0xff]
                %723 = vst [vmem:[%s177 + $0x880] sm:$0xff] %v722
                %v724 = vld [vmem:[%s176 + $0x1108] sm:$0xff]
                %725 = vst [vmem:[%s177 + $0x888] sm:$0xff] %v724
                %v726 = vld [vmem:[%s176 + $0x1120] sm:$0xff]
                %727 = vst [vmem:[%s177 + $0x890] sm:$0xff] %v726
                %v728 = vld [vmem:[%s176 + $0x1128] sm:$0xff]
                %729 = vst [vmem:[%s177 + $0x898] sm:$0xff] %v728
                %v730 = vld [vmem:[%s176 + $0x1140] sm:$0xff]
                %731 = vst [vmem:[%s177 + $0x8a0] sm:$0xff] %v730
                %v732 = vld [vmem:[%s176 + $0x1148] sm:$0xff]
                %733 = vst [vmem:[%s177 + $0x8a8] sm:$0xff] %v732
                %v734 = vld [vmem:[%s176 + $0x1160] sm:$0xff]
                %735 = vst [vmem:[%s177 + $0x8b0] sm:$0xff] %v734
                %v736 = vld [vmem:[%s176 + $0x1168] sm:$0xff]
                %737 = vst [vmem:[%s177 + $0x8b8] sm:$0xff] %v736
                %v738 = vld [vmem:[%s176 + $0x1180] sm:$0xff]
                %739 = vst [vmem:[%s177 + $0x8c0] sm:$0xff] %v738
                %v740 = vld [vmem:[%s176 + $0x1188] sm:$0xff]
                %741 = vst [vmem:[%s177 + $0x8c8] sm:$0xff] %v740
                %v742 = vld [vmem:[%s176 + $0x11a0] sm:$0xff]
                %743 = vst [vmem:[%s177 + $0x8d0] sm:$0xff] %v742
                %v744 = vld [vmem:[%s176 + $0x11a8] sm:$0xff]
                %745 = vst [vmem:[%s177 + $0x8d8] sm:$0xff] %v744
                %v746 = vld [vmem:[%s176 + $0x11c0] sm:$0xff]
                %747 = vst [vmem:[%s177 + $0x8e0] sm:$0xff] %v746
                %v748 = vld [vmem:[%s176 + $0x11c8] sm:$0xff]
                %749 = vst [vmem:[%s177 + $0x8e8] sm:$0xff] %v748
                %v750 = vld [vmem:[%s176 + $0x11e0] sm:$0xff]
                %751 = vst [vmem:[%s177 + $0x8f0] sm:$0xff] %v750
                %v752 = vld [vmem:[%s176 + $0x11e8] sm:$0xff]
                %753 = vst [vmem:[%s177 + $0x8f8] sm:$0xff] %v752
                %v754 = vld [vmem:[%s176 + $0x1200] sm:$0xff]
                %755 = vst [vmem:[%s177 + $0x900] sm:$0xff] %v754
                %v756 = vld [vmem:[%s176 + $0x1208] sm:$0xff]
                %757 = vst [vmem:[%s177 + $0x908] sm:$0xff] %v756
                %v758 = vld [vmem:[%s176 + $0x1220] sm:$0xff]
                %759 = vst [vmem:[%s177 + $0x910] sm:$0xff] %v758
                %v760 = vld [vmem:[%s176 + $0x1228] sm:$0xff]
                %761 = vst [vmem:[%s177 + $0x918] sm:$0xff] %v760
                %v762 = vld [vmem:[%s176 + $0x1240] sm:$0xff]
                %763 = vst [vmem:[%s177 + $0x920] sm:$0xff] %v762
                %v764 = vld [vmem:[%s176 + $0x1248] sm:$0xff]
                %765 = vst [vmem:[%s177 + $0x928] sm:$0xff] %v764
                %v766 = vld [vmem:[%s176 + $0x1260] sm:$0xff]
                %767 = vst [vmem:[%s177 + $0x930] sm:$0xff] %v766
                %v768 = vld [vmem:[%s176 + $0x1268] sm:$0xff]
                %769 = vst [vmem:[%s177 + $0x938] sm:$0xff] %v768
                %v770 = vld [vmem:[%s176 + $0x1280] sm:$0xff]
                %771 = vst [vmem:[%s177 + $0x940] sm:$0xff] %v770
                %v772 = vld [vmem:[%s176 + $0x1288] sm:$0xff]
                %773 = vst [vmem:[%s177 + $0x948] sm:$0xff] %v772
                %v774 = vld [vmem:[%s176 + $0x12a0] sm:$0xff]
                %775 = vst [vmem:[%s177 + $0x950] sm:$0xff] %v774
                %v776 = vld [vmem:[%s176 + $0x12a8] sm:$0xff]
                %777 = vst [vmem:[%s177 + $0x958] sm:$0xff] %v776
                %v778 = vld [vmem:[%s176 + $0x12c0] sm:$0xff]
                %779 = vst [vmem:[%s177 + $0x960] sm:$0xff] %v778
                %v780 = vld [vmem:[%s176 + $0x12c8] sm:$0xff]
                %781 = vst [vmem:[%s177 + $0x968] sm:$0xff] %v780
                %v782 = vld [vmem:[%s176 + $0x12e0] sm:$0xff]
                %783 = vst [vmem:[%s177 + $0x970] sm:$0xff] %v782
                %v784 = vld [vmem:[%s176 + $0x12e8] sm:$0xff]
                %785 = vst [vmem:[%s177 + $0x978] sm:$0xff] %v784
                %v786 = vld [vmem:[%s176 + $0x1300] sm:$0xff]
                %787 = vst [vmem:[%s177 + $0x980] sm:$0xff] %v786
                %v788 = vld [vmem:[%s176 + $0x1308] sm:$0xff]
                %789 = vst [vmem:[%s177 + $0x988] sm:$0xff] %v788
                %v790 = vld [vmem:[%s176 + $0x1320] sm:$0xff]
                %791 = vst [vmem:[%s177 + $0x990] sm:$0xff] %v790
                %v792 = vld [vmem:[%s176 + $0x1328] sm:$0xff]
                %793 = vst [vmem:[%s177 + $0x998] sm:$0xff] %v792
                %v794 = vld [vmem:[%s176 + $0x1340] sm:$0xff]
                %795 = vst [vmem:[%s177 + $0x9a0] sm:$0xff] %v794
                %v796 = vld [vmem:[%s176 + $0x1348] sm:$0xff]
                %797 = vst [vmem:[%s177 + $0x9a8] sm:$0xff] %v796
                %v798 = vld [vmem:[%s176 + $0x1360] sm:$0xff]
                %799 = vst [vmem:[%s177 + $0x9b0] sm:$0xff] %v798
                %v800 = vld [vmem:[%s176 + $0x1368] sm:$0xff]
                %801 = vst [vmem:[%s177 + $0x9b8] sm:$0xff] %v800
                %v802 = vld [vmem:[%s176 + $0x1380] sm:$0xff]
                %803 = vst [vmem:[%s177 + $0x9c0] sm:$0xff] %v802
                %v804 = vld [vmem:[%s176 + $0x1388] sm:$0xff]
                %805 = vst [vmem:[%s177 + $0x9c8] sm:$0xff] %v804
                %v806 = vld [vmem:[%s176 + $0x13a0] sm:$0xff]
                %807 = vst [vmem:[%s177 + $0x9d0] sm:$0xff] %v806
                %v808 = vld [vmem:[%s176 + $0x13a8] sm:$0xff]
                %809 = vst [vmem:[%s177 + $0x9d8] sm:$0xff] %v808
                %v810 = vld [vmem:[%s176 + $0x13c0] sm:$0xff]
                %811 = vst [vmem:[%s177 + $0x9e0] sm:$0xff] %v810
                %v812 = vld [vmem:[%s176 + $0x13c8] sm:$0xff]
                %813 = vst [vmem:[%s177 + $0x9e8] sm:$0xff] %v812
                %v814 = vld [vmem:[%s176 + $0x13e0] sm:$0xff]
                %815 = vst [vmem:[%s177 + $0x9f0] sm:$0xff] %v814
                %v816 = vld [vmem:[%s176 + $0x13e8] sm:$0xff]
                %817 = vst [vmem:[%s177 + $0x9f8] sm:$0xff] %v816
                %v818 = vld [vmem:[%s176 + $0x1400] sm:$0xff]
                %819 = vst [vmem:[%s177 + $0xa00] sm:$0xff] %v818
                %v820 = vld [vmem:[%s176 + $0x1408] sm:$0xff]
                %821 = vst [vmem:[%s177 + $0xa08] sm:$0xff] %v820
                %v822 = vld [vmem:[%s176 + $0x1420] sm:$0xff]
                %823 = vst [vmem:[%s177 + $0xa10] sm:$0xff] %v822
                %v824 = vld [vmem:[%s176 + $0x1428] sm:$0xff]
                %825 = vst [vmem:[%s177 + $0xa18] sm:$0xff] %v824
                %v826 = vld [vmem:[%s176 + $0x1440] sm:$0xff]
                %827 = vst [vmem:[%s177 + $0xa20] sm:$0xff] %v826
                %v828 = vld [vmem:[%s176 + $0x1448] sm:$0xff]
                %829 = vst [vmem:[%s177 + $0xa28] sm:$0xff] %v828
                %v830 = vld [vmem:[%s176 + $0x1460] sm:$0xff]
                %831 = vst [vmem:[%s177 + $0xa30] sm:$0xff] %v830
                %v832 = vld [vmem:[%s176 + $0x1468] sm:$0xff]
                %833 = vst [vmem:[%s177 + $0xa38] sm:$0xff] %v832
                %v834 = vld [vmem:[%s176 + $0x1480] sm:$0xff]
                %835 = vst [vmem:[%s177 + $0xa40] sm:$0xff] %v834
                %v836 = vld [vmem:[%s176 + $0x1488] sm:$0xff]
                %837 = vst [vmem:[%s177 + $0xa48] sm:$0xff] %v836
                %v838 = vld [vmem:[%s176 + $0x14a0] sm:$0xff]
                %839 = vst [vmem:[%s177 + $0xa50] sm:$0xff] %v838
                %v840 = vld [vmem:[%s176 + $0x14a8] sm:$0xff]
                %841 = vst [vmem:[%s177 + $0xa58] sm:$0xff] %v840
                %v842 = vld [vmem:[%s176 + $0x14c0] sm:$0xff]
                %843 = vst [vmem:[%s177 + $0xa60] sm:$0xff] %v842
                %v844 = vld [vmem:[%s176 + $0x14c8] sm:$0xff]
                %845 = vst [vmem:[%s177 + $0xa68] sm:$0xff] %v844
                %v846 = vld [vmem:[%s176 + $0x14e0] sm:$0xff]
                %847 = vst [vmem:[%s177 + $0xa70] sm:$0xff] %v846
                %v848 = vld [vmem:[%s176 + $0x14e8] sm:$0xff]
                %849 = vst [vmem:[%s177 + $0xa78] sm:$0xff] %v848
                %v850 = vld [vmem:[%s176 + $0x1500] sm:$0xff]
                %851 = vst [vmem:[%s177 + $0xa80] sm:$0xff] %v850
                %v852 = vld [vmem:[%s176 + $0x1508] sm:$0xff]
                %853 = vst [vmem:[%s177 + $0xa88] sm:$0xff] %v852
                %v854 = vld [vmem:[%s176 + $0x1520] sm:$0xff]
                %855 = vst [vmem:[%s177 + $0xa90] sm:$0xff] %v854
                %v856 = vld [vmem:[%s176 + $0x1528] sm:$0xff]
                %857 = vst [vmem:[%s177 + $0xa98] sm:$0xff] %v856
                %v858 = vld [vmem:[%s176 + $0x1540] sm:$0xff]
                %859 = vst [vmem:[%s177 + $0xaa0] sm:$0xff] %v858
                %v860 = vld [vmem:[%s176 + $0x1548] sm:$0xff]
                %861 = vst [vmem:[%s177 + $0xaa8] sm:$0xff] %v860
                %v862 = vld [vmem:[%s176 + $0x1560] sm:$0xff]
                %863 = vst [vmem:[%s177 + $0xab0] sm:$0xff] %v862
                %v864 = vld [vmem:[%s176 + $0x1568] sm:$0xff]
                %865 = vst [vmem:[%s177 + $0xab8] sm:$0xff] %v864
                %v866 = vld [vmem:[%s176 + $0x1580] sm:$0xff]
                %867 = vst [vmem:[%s177 + $0xac0] sm:$0xff] %v866
                %v868 = vld [vmem:[%s176 + $0x1588] sm:$0xff]
                %869 = vst [vmem:[%s177 + $0xac8] sm:$0xff] %v868
                %v870 = vld [vmem:[%s176 + $0x15a0] sm:$0xff]
                %871 = vst [vmem:[%s177 + $0xad0] sm:$0xff] %v870
                %v872 = vld [vmem:[%s176 + $0x15a8] sm:$0xff]
                %873 = vst [vmem:[%s177 + $0xad8] sm:$0xff] %v872
                %v874 = vld [vmem:[%s176 + $0x15c0] sm:$0xff]
                %875 = vst [vmem:[%s177 + $0xae0] sm:$0xff] %v874
                %v876 = vld [vmem:[%s176 + $0x15c8] sm:$0xff]
                %877 = vst [vmem:[%s177 + $0xae8] sm:$0xff] %v876
                %v878 = vld [vmem:[%s176 + $0x15e0] sm:$0xff]
                %879 = vst [vmem:[%s177 + $0xaf0] sm:$0xff] %v878
                %v880 = vld [vmem:[%s176 + $0x15e8] sm:$0xff]
                %881 = vst [vmem:[%s177 + $0xaf8] sm:$0xff] %v880
                %v882 = vld [vmem:[%s176 + $0x1600] sm:$0xff]
                %883 = vst [vmem:[%s177 + $0xb00] sm:$0xff] %v882
                %v884 = vld [vmem:[%s176 + $0x1608] sm:$0xff]
                %885 = vst [vmem:[%s177 + $0xb08] sm:$0xff] %v884
                %v886 = vld [vmem:[%s176 + $0x1620] sm:$0xff]
                %887 = vst [vmem:[%s177 + $0xb10] sm:$0xff] %v886
                %v888 = vld [vmem:[%s176 + $0x1628] sm:$0xff]
                %889 = vst [vmem:[%s177 + $0xb18] sm:$0xff] %v888
                %v890 = vld [vmem:[%s176 + $0x1640] sm:$0xff]
                %891 = vst [vmem:[%s177 + $0xb20] sm:$0xff] %v890
                %v892 = vld [vmem:[%s176 + $0x1648] sm:$0xff]
                %893 = vst [vmem:[%s177 + $0xb28] sm:$0xff] %v892
                %v894 = vld [vmem:[%s176 + $0x1660] sm:$0xff]
                %895 = vst [vmem:[%s177 + $0xb30] sm:$0xff] %v894
                %v896 = vld [vmem:[%s176 + $0x1668] sm:$0xff]
                %897 = vst [vmem:[%s177 + $0xb38] sm:$0xff] %v896
                %v898 = vld [vmem:[%s176 + $0x1680] sm:$0xff]
                %899 = vst [vmem:[%s177 + $0xb40] sm:$0xff] %v898
                %v900 = vld [vmem:[%s176 + $0x1688] sm:$0xff]
                %901 = vst [vmem:[%s177 + $0xb48] sm:$0xff] %v900
                %v902 = vld [vmem:[%s176 + $0x16a0] sm:$0xff]
                %903 = vst [vmem:[%s177 + $0xb50] sm:$0xff] %v902
                %v904 = vld [vmem:[%s176 + $0x16a8] sm:$0xff]
                %905 = vst [vmem:[%s177 + $0xb58] sm:$0xff] %v904
                %v906 = vld [vmem:[%s176 + $0x16c0] sm:$0xff]
                %907 = vst [vmem:[%s177 + $0xb60] sm:$0xff] %v906
                %v908 = vld [vmem:[%s176 + $0x16c8] sm:$0xff]
                %909 = vst [vmem:[%s177 + $0xb68] sm:$0xff] %v908
                %v910 = vld [vmem:[%s176 + $0x16e0] sm:$0xff]
                %911 = vst [vmem:[%s177 + $0xb70] sm:$0xff] %v910
                %v912 = vld [vmem:[%s176 + $0x16e8] sm:$0xff]
                %913 = vst [vmem:[%s177 + $0xb78] sm:$0xff] %v912
                %v914 = vld [vmem:[%s176 + $0x1700] sm:$0xff]
                %915 = vst [vmem:[%s177 + $0xb80] sm:$0xff] %v914
                %v916 = vld [vmem:[%s176 + $0x1708] sm:$0xff]
                %917 = vst [vmem:[%s177 + $0xb88] sm:$0xff] %v916
                %v918 = vld [vmem:[%s176 + $0x1720] sm:$0xff]
                %919 = vst [vmem:[%s177 + $0xb90] sm:$0xff] %v918
                %v920 = vld [vmem:[%s176 + $0x1728] sm:$0xff]
                %921 = vst [vmem:[%s177 + $0xb98] sm:$0xff] %v920
                %v922 = vld [vmem:[%s176 + $0x1740] sm:$0xff]
                %923 = vst [vmem:[%s177 + $0xba0] sm:$0xff] %v922
                %v924 = vld [vmem:[%s176 + $0x1748] sm:$0xff]
                %925 = vst [vmem:[%s177 + $0xba8] sm:$0xff] %v924
                %v926 = vld [vmem:[%s176 + $0x1760] sm:$0xff]
                %927 = vst [vmem:[%s177 + $0xbb0] sm:$0xff] %v926
                %v928 = vld [vmem:[%s176 + $0x1768] sm:$0xff]
                %929 = vst [vmem:[%s177 + $0xbb8] sm:$0xff] %v928
                %v930 = vld [vmem:[%s176 + $0x1780] sm:$0xff]
                %931 = vst [vmem:[%s177 + $0xbc0] sm:$0xff] %v930
                %v932 = vld [vmem:[%s176 + $0x1788] sm:$0xff]
                %933 = vst [vmem:[%s177 + $0xbc8] sm:$0xff] %v932
                %v934 = vld [vmem:[%s176 + $0x17a0] sm:$0xff]
                %935 = vst [vmem:[%s177 + $0xbd0] sm:$0xff] %v934
                %v936 = vld [vmem:[%s176 + $0x17a8] sm:$0xff]
                %937 = vst [vmem:[%s177 + $0xbd8] sm:$0xff] %v936
                %v938 = vld [vmem:[%s176 + $0x17c0] sm:$0xff]
                %939 = vst [vmem:[%s177 + $0xbe0] sm:$0xff] %v938
                %v940 = vld [vmem:[%s176 + $0x17c8] sm:$0xff]
                %941 = vst [vmem:[%s177 + $0xbe8] sm:$0xff] %v940
                %v942 = vld [vmem:[%s176 + $0x17e0] sm:$0xff]
                %943 = vst [vmem:[%s177 + $0xbf0] sm:$0xff] %v942
                %v944 = vld [vmem:[%s176 + $0x17e8] sm:$0xff]
                %945 = vst [vmem:[%s177 + $0xbf8] sm:$0xff] %v944
                %v946 = vld [vmem:[%s176 + $0x1800] sm:$0xff]
                %947 = vst [vmem:[%s177 + $0xc00] sm:$0xff] %v946
                %v948 = vld [vmem:[%s176 + $0x1808] sm:$0xff]
                %949 = vst [vmem:[%s177 + $0xc08] sm:$0xff] %v948
                %v950 = vld [vmem:[%s176 + $0x1820] sm:$0xff]
                %951 = vst [vmem:[%s177 + $0xc10] sm:$0xff] %v950
                %v952 = vld [vmem:[%s176 + $0x1828] sm:$0xff]
                %953 = vst [vmem:[%s177 + $0xc18] sm:$0xff] %v952
                %v954 = vld [vmem:[%s176 + $0x1840] sm:$0xff]
                %955 = vst [vmem:[%s177 + $0xc20] sm:$0xff] %v954
                %v956 = vld [vmem:[%s176 + $0x1848] sm:$0xff]
                %957 = vst [vmem:[%s177 + $0xc28] sm:$0xff] %v956
                %v958 = vld [vmem:[%s176 + $0x1860] sm:$0xff]
                %959 = vst [vmem:[%s177 + $0xc30] sm:$0xff] %v958
                %v960 = vld [vmem:[%s176 + $0x1868] sm:$0xff]
                %961 = vst [vmem:[%s177 + $0xc38] sm:$0xff] %v960
                %v962 = vld [vmem:[%s176 + $0x1880] sm:$0xff]
                %963 = vst [vmem:[%s177 + $0xc40] sm:$0xff] %v962
                %v964 = vld [vmem:[%s176 + $0x1888] sm:$0xff]
                %965 = vst [vmem:[%s177 + $0xc48] sm:$0xff] %v964
                %v966 = vld [vmem:[%s176 + $0x18a0] sm:$0xff]
                %967 = vst [vmem:[%s177 + $0xc50] sm:$0xff] %v966
                %v968 = vld [vmem:[%s176 + $0x18a8] sm:$0xff]
                %969 = vst [vmem:[%s177 + $0xc58] sm:$0xff] %v968
                %v970 = vld [vmem:[%s176 + $0x18c0] sm:$0xff]
                %971 = vst [vmem:[%s177 + $0xc60] sm:$0xff] %v970
                %v972 = vld [vmem:[%s176 + $0x18c8] sm:$0xff]
                %973 = vst [vmem:[%s177 + $0xc68] sm:$0xff] %v972
                %v974 = vld [vmem:[%s176 + $0x18e0] sm:$0xff]
                %975 = vst [vmem:[%s177 + $0xc70] sm:$0xff] %v974
                %v976 = vld [vmem:[%s176 + $0x18e8] sm:$0xff]
                %977 = vst [vmem:[%s177 + $0xc78] sm:$0xff] %v976
                %v978 = vld [vmem:[%s176 + $0x1900] sm:$0xff]
                %979 = vst [vmem:[%s177 + $0xc80] sm:$0xff] %v978
                %v980 = vld [vmem:[%s176 + $0x1908] sm:$0xff]
                %981 = vst [vmem:[%s177 + $0xc88] sm:$0xff] %v980
                %v982 = vld [vmem:[%s176 + $0x1920] sm:$0xff]
                %983 = vst [vmem:[%s177 + $0xc90] sm:$0xff] %v982
                %v984 = vld [vmem:[%s176 + $0x1928] sm:$0xff]
                %985 = vst [vmem:[%s177 + $0xc98] sm:$0xff] %v984
                %v986 = vld [vmem:[%s176 + $0x1940] sm:$0xff]
                %987 = vst [vmem:[%s177 + $0xca0] sm:$0xff] %v986
                %v988 = vld [vmem:[%s176 + $0x1948] sm:$0xff]
                %989 = vst [vmem:[%s177 + $0xca8] sm:$0xff] %v988
                %v990 = vld [vmem:[%s176 + $0x1960] sm:$0xff]
                %991 = vst [vmem:[%s177 + $0xcb0] sm:$0xff] %v990
                %v992 = vld [vmem:[%s176 + $0x1968] sm:$0xff]
                %993 = vst [vmem:[%s177 + $0xcb8] sm:$0xff] %v992
                %v994 = vld [vmem:[%s176 + $0x1980] sm:$0xff]
                %995 = vst [vmem:[%s177 + $0xcc0] sm:$0xff] %v994
                %v996 = vld [vmem:[%s176 + $0x1988] sm:$0xff]
                %997 = vst [vmem:[%s177 + $0xcc8] sm:$0xff] %v996
                %v998 = vld [vmem:[%s176 + $0x19a0] sm:$0xff]
                %999 = vst [vmem:[%s177 + $0xcd0] sm:$0xff] %v998
                %v1000 = vld [vmem:[%s176 + $0x19a8] sm:$0xff]
                %1001 = vst [vmem:[%s177 + $0xcd8] sm:$0xff] %v1000
                %v1002 = vld [vmem:[%s176 + $0x19c0] sm:$0xff]
                %1003 = vst [vmem:[%s177 + $0xce0] sm:$0xff] %v1002
                %v1004 = vld [vmem:[%s176 + $0x19c8] sm:$0xff]
                %1005 = vst [vmem:[%s177 + $0xce8] sm:$0xff] %v1004
                %v1006 = vld [vmem:[%s176 + $0x19e0] sm:$0xff]
                %1007 = vst [vmem:[%s177 + $0xcf0] sm:$0xff] %v1006
                %v1008 = vld [vmem:[%s176 + $0x19e8] sm:$0xff]
                %1009 = vst [vmem:[%s177 + $0xcf8] sm:$0xff] %v1008
                %v1010 = vld [vmem:[%s176 + $0x1a00] sm:$0xff]
                %1011 = vst [vmem:[%s177 + $0xd00] sm:$0xff] %v1010
                %v1012 = vld [vmem:[%s176 + $0x1a08] sm:$0xff]
                %1013 = vst [vmem:[%s177 + $0xd08] sm:$0xff] %v1012
                %v1014 = vld [vmem:[%s176 + $0x1a20] sm:$0xff]
                %1015 = vst [vmem:[%s177 + $0xd10] sm:$0xff] %v1014
                %v1016 = vld [vmem:[%s176 + $0x1a28] sm:$0xff]
                %1017 = vst [vmem:[%s177 + $0xd18] sm:$0xff] %v1016
                %v1018 = vld [vmem:[%s176 + $0x1a40] sm:$0xff]
                %1019 = vst [vmem:[%s177 + $0xd20] sm:$0xff] %v1018
                %v1020 = vld [vmem:[%s176 + $0x1a48] sm:$0xff]
                %1021 = vst [vmem:[%s177 + $0xd28] sm:$0xff] %v1020
                %v1022 = vld [vmem:[%s176 + $0x1a60] sm:$0xff]
                %1023 = vst [vmem:[%s177 + $0xd30] sm:$0xff] %v1022
                %v1024 = vld [vmem:[%s176 + $0x1a68] sm:$0xff]
                %1025 = vst [vmem:[%s177 + $0xd38] sm:$0xff] %v1024
                %v1026 = vld [vmem:[%s176 + $0x1a80] sm:$0xff]
                %1027 = vst [vmem:[%s177 + $0xd40] sm:$0xff] %v1026
                %v1028 = vld [vmem:[%s176 + $0x1a88] sm:$0xff]
                %1029 = vst [vmem:[%s177 + $0xd48] sm:$0xff] %v1028
                %v1030 = vld [vmem:[%s176 + $0x1aa0] sm:$0xff]
                %1031 = vst [vmem:[%s177 + $0xd50] sm:$0xff] %v1030
                %v1032 = vld [vmem:[%s176 + $0x1aa8] sm:$0xff]
                %1033 = vst [vmem:[%s177 + $0xd58] sm:$0xff] %v1032
                %v1034 = vld [vmem:[%s176 + $0x1ac0] sm:$0xff]
                %1035 = vst [vmem:[%s177 + $0xd60] sm:$0xff] %v1034
                %v1036 = vld [vmem:[%s176 + $0x1ac8] sm:$0xff]
                %1037 = vst [vmem:[%s177 + $0xd68] sm:$0xff] %v1036
                %v1038 = vld [vmem:[%s176 + $0x1ae0] sm:$0xff]
                %1039 = vst [vmem:[%s177 + $0xd70] sm:$0xff] %v1038
                %v1040 = vld [vmem:[%s176 + $0x1ae8] sm:$0xff]
                %1041 = vst [vmem:[%s177 + $0xd78] sm:$0xff] %v1040
                %v1042 = vld [vmem:[%s176 + $0x1b00] sm:$0xff]
                %1043 = vst [vmem:[%s177 + $0xd80] sm:$0xff] %v1042
                %v1044 = vld [vmem:[%s176 + $0x1b08] sm:$0xff]
                %1045 = vst [vmem:[%s177 + $0xd88] sm:$0xff] %v1044
                %v1046 = vld [vmem:[%s176 + $0x1b20] sm:$0xff]
                %1047 = vst [vmem:[%s177 + $0xd90] sm:$0xff] %v1046
                %v1048 = vld [vmem:[%s176 + $0x1b28] sm:$0xff]
                %1049 = vst [vmem:[%s177 + $0xd98] sm:$0xff] %v1048
                %v1050 = vld [vmem:[%s176 + $0x1b40] sm:$0xff]
                %1051 = vst [vmem:[%s177 + $0xda0] sm:$0xff] %v1050
                %v1052 = vld [vmem:[%s176 + $0x1b48] sm:$0xff]
                %1053 = vst [vmem:[%s177 + $0xda8] sm:$0xff] %v1052
                %v1054 = vld [vmem:[%s176 + $0x1b60] sm:$0xff]
                %1055 = vst [vmem:[%s177 + $0xdb0] sm:$0xff] %v1054
                %v1056 = vld [vmem:[%s176 + $0x1b68] sm:$0xff]
                %1057 = vst [vmem:[%s177 + $0xdb8] sm:$0xff] %v1056
                %v1058 = vld [vmem:[%s176 + $0x1b80] sm:$0xff]
                %1059 = vst [vmem:[%s177 + $0xdc0] sm:$0xff] %v1058
                %v1060 = vld [vmem:[%s176 + $0x1b88] sm:$0xff]
                %1061 = vst [vmem:[%s177 + $0xdc8] sm:$0xff] %v1060
                %v1062 = vld [vmem:[%s176 + $0x1ba0] sm:$0xff]
                %1063 = vst [vmem:[%s177 + $0xdd0] sm:$0xff] %v1062
                %v1064 = vld [vmem:[%s176 + $0x1ba8] sm:$0xff]
                %1065 = vst [vmem:[%s177 + $0xdd8] sm:$0xff] %v1064
                %v1066 = vld [vmem:[%s176 + $0x1bc0] sm:$0xff]
                %1067 = vst [vmem:[%s177 + $0xde0] sm:$0xff] %v1066
                %v1068 = vld [vmem:[%s176 + $0x1bc8] sm:$0xff]
                %1069 = vst [vmem:[%s177 + $0xde8] sm:$0xff] %v1068
                %v1070 = vld [vmem:[%s176 + $0x1be0] sm:$0xff]
                %1071 = vst [vmem:[%s177 + $0xdf0] sm:$0xff] %v1070
                %v1072 = vld [vmem:[%s176 + $0x1be8] sm:$0xff]
                %1073 = vst [vmem:[%s177 + $0xdf8] sm:$0xff] %v1072
                %v1074 = vld [vmem:[%s176 + $0x1c00] sm:$0xff]
                %1075 = vst [vmem:[%s177 + $0xe00] sm:$0xff] %v1074
                %v1076 = vld [vmem:[%s176 + $0x1c08] sm:$0xff]
                %1077 = vst [vmem:[%s177 + $0xe08] sm:$0xff] %v1076
                %v1078 = vld [vmem:[%s176 + $0x1c20] sm:$0xff]
                %1079 = vst [vmem:[%s177 + $0xe10] sm:$0xff] %v1078
                %v1080 = vld [vmem:[%s176 + $0x1c28] sm:$0xff]
                %1081 = vst [vmem:[%s177 + $0xe18] sm:$0xff] %v1080
                %v1082 = vld [vmem:[%s176 + $0x1c40] sm:$0xff]
                %1083 = vst [vmem:[%s177 + $0xe20] sm:$0xff] %v1082
                %v1084 = vld [vmem:[%s176 + $0x1c48] sm:$0xff]
                %1085 = vst [vmem:[%s177 + $0xe28] sm:$0xff] %v1084
                %v1086 = vld [vmem:[%s176 + $0x1c60] sm:$0xff]
                %1087 = vst [vmem:[%s177 + $0xe30] sm:$0xff] %v1086
                %v1088 = vld [vmem:[%s176 + $0x1c68] sm:$0xff]
                %1089 = vst [vmem:[%s177 + $0xe38] sm:$0xff] %v1088
                %v1090 = vld [vmem:[%s176 + $0x1c80] sm:$0xff]
                %1091 = vst [vmem:[%s177 + $0xe40] sm:$0xff] %v1090
                %v1092 = vld [vmem:[%s176 + $0x1c88] sm:$0xff]
                %1093 = vst [vmem:[%s177 + $0xe48] sm:$0xff] %v1092
                %v1094 = vld [vmem:[%s176 + $0x1ca0] sm:$0xff]
                %1095 = vst [vmem:[%s177 + $0xe50] sm:$0xff] %v1094
                %v1096 = vld [vmem:[%s176 + $0x1ca8] sm:$0xff]
                %1097 = vst [vmem:[%s177 + $0xe58] sm:$0xff] %v1096
                %v1098 = vld [vmem:[%s176 + $0x1cc0] sm:$0xff]
                %1099 = vst [vmem:[%s177 + $0xe60] sm:$0xff] %v1098
                %v1100 = vld [vmem:[%s176 + $0x1cc8] sm:$0xff]
                %1101 = vst [vmem:[%s177 + $0xe68] sm:$0xff] %v1100
                %v1102 = vld [vmem:[%s176 + $0x1ce0] sm:$0xff]
                %1103 = vst [vmem:[%s177 + $0xe70] sm:$0xff] %v1102
                %v1104 = vld [vmem:[%s176 + $0x1ce8] sm:$0xff]
                %1105 = vst [vmem:[%s177 + $0xe78] sm:$0xff] %v1104
                %v1106 = vld [vmem:[%s176 + $0x1d00] sm:$0xff]
                %1107 = vst [vmem:[%s177 + $0xe80] sm:$0xff] %v1106
                %v1108 = vld [vmem:[%s176 + $0x1d08] sm:$0xff]
                %1109 = vst [vmem:[%s177 + $0xe88] sm:$0xff] %v1108
                %v1110 = vld [vmem:[%s176 + $0x1d20] sm:$0xff]
                %1111 = vst [vmem:[%s177 + $0xe90] sm:$0xff] %v1110
                %v1112 = vld [vmem:[%s176 + $0x1d28] sm:$0xff]
                %1113 = vst [vmem:[%s177 + $0xe98] sm:$0xff] %v1112
                %v1114 = vld [vmem:[%s176 + $0x1d40] sm:$0xff]
                %1115 = vst [vmem:[%s177 + $0xea0] sm:$0xff] %v1114
                %v1116 = vld [vmem:[%s176 + $0x1d48] sm:$0xff]
                %1117 = vst [vmem:[%s177 + $0xea8] sm:$0xff] %v1116
                %v1118 = vld [vmem:[%s176 + $0x1d60] sm:$0xff]
                %1119 = vst [vmem:[%s177 + $0xeb0] sm:$0xff] %v1118
                %v1120 = vld [vmem:[%s176 + $0x1d68] sm:$0xff]
                %1121 = vst [vmem:[%s177 + $0xeb8] sm:$0xff] %v1120
                %v1122 = vld [vmem:[%s176 + $0x1d80] sm:$0xff]
                %1123 = vst [vmem:[%s177 + $0xec0] sm:$0xff] %v1122
                %v1124 = vld [vmem:[%s176 + $0x1d88] sm:$0xff]
                %1125 = vst [vmem:[%s177 + $0xec8] sm:$0xff] %v1124
                %v1126 = vld [vmem:[%s176 + $0x1da0] sm:$0xff]
                %1127 = vst [vmem:[%s177 + $0xed0] sm:$0xff] %v1126
                %v1128 = vld [vmem:[%s176 + $0x1da8] sm:$0xff]
                %1129 = vst [vmem:[%s177 + $0xed8] sm:$0xff] %v1128
                %v1130 = vld [vmem:[%s176 + $0x1dc0] sm:$0xff]
                %1131 = vst [vmem:[%s177 + $0xee0] sm:$0xff] %v1130
                %v1132 = vld [vmem:[%s176 + $0x1dc8] sm:$0xff]
                %1133 = vst [vmem:[%s177 + $0xee8] sm:$0xff] %v1132
                %v1134 = vld [vmem:[%s176 + $0x1de0] sm:$0xff]
                %1135 = vst [vmem:[%s177 + $0xef0] sm:$0xff] %v1134
                %v1136 = vld [vmem:[%s176 + $0x1de8] sm:$0xff]
                %1137 = vst [vmem:[%s177 + $0xef8] sm:$0xff] %v1136
                %v1138 = vld [vmem:[%s176 + $0x1e00] sm:$0xff]
                %1139 = vst [vmem:[%s177 + $0xf00] sm:$0xff] %v1138
                %v1140 = vld [vmem:[%s176 + $0x1e08] sm:$0xff]
                %1141 = vst [vmem:[%s177 + $0xf08] sm:$0xff] %v1140
                %v1142 = vld [vmem:[%s176 + $0x1e20] sm:$0xff]
                %1143 = vst [vmem:[%s177 + $0xf10] sm:$0xff] %v1142
                %v1144 = vld [vmem:[%s176 + $0x1e28] sm:$0xff]
                %1145 = vst [vmem:[%s177 + $0xf18] sm:$0xff] %v1144
                %v1146 = vld [vmem:[%s176 + $0x1e40] sm:$0xff]
                %1147 = vst [vmem:[%s177 + $0xf20] sm:$0xff] %v1146
                %v1148 = vld [vmem:[%s176 + $0x1e48] sm:$0xff]
                %1149 = vst [vmem:[%s177 + $0xf28] sm:$0xff] %v1148
                %v1150 = vld [vmem:[%s176 + $0x1e60] sm:$0xff]
                %1151 = vst [vmem:[%s177 + $0xf30] sm:$0xff] %v1150
                %v1152 = vld [vmem:[%s176 + $0x1e68] sm:$0xff]
                %1153 = vst [vmem:[%s177 + $0xf38] sm:$0xff] %v1152
                %v1154 = vld [vmem:[%s176 + $0x1e80] sm:$0xff]
                %1155 = vst [vmem:[%s177 + $0xf40] sm:$0xff] %v1154
                %v1156 = vld [vmem:[%s176 + $0x1e88] sm:$0xff]
                %1157 = vst [vmem:[%s177 + $0xf48] sm:$0xff] %v1156
                %v1158 = vld [vmem:[%s176 + $0x1ea0] sm:$0xff]
                %1159 = vst [vmem:[%s177 + $0xf50] sm:$0xff] %v1158
                %v1160 = vld [vmem:[%s176 + $0x1ea8] sm:$0xff]
                %1161 = vst [vmem:[%s177 + $0xf58] sm:$0xff] %v1160
                %v1162 = vld [vmem:[%s176 + $0x1ec0] sm:$0xff]
                %1163 = vst [vmem:[%s177 + $0xf60] sm:$0xff] %v1162
                %v1164 = vld [vmem:[%s176 + $0x1ec8] sm:$0xff]
                %1165 = vst [vmem:[%s177 + $0xf68] sm:$0xff] %v1164
                %v1166 = vld [vmem:[%s176 + $0x1ee0] sm:$0xff]
                %1167 = vst [vmem:[%s177 + $0xf70] sm:$0xff] %v1166
                %v1168 = vld [vmem:[%s176 + $0x1ee8] sm:$0xff]
                %1169 = vst [vmem:[%s177 + $0xf78] sm:$0xff] %v1168
                %v1170 = vld [vmem:[%s176 + $0x1f00] sm:$0xff]
                %1171 = vst [vmem:[%s177 + $0xf80] sm:$0xff] %v1170
                %v1172 = vld [vmem:[%s176 + $0x1f08] sm:$0xff]
                %1173 = vst [vmem:[%s177 + $0xf88] sm:$0xff] %v1172
                %v1174 = vld [vmem:[%s176 + $0x1f20] sm:$0xff]
                %1175 = vst [vmem:[%s177 + $0xf90] sm:$0xff] %v1174
                %v1176 = vld [vmem:[%s176 + $0x1f28] sm:$0xff]
                %1177 = vst [vmem:[%s177 + $0xf98] sm:$0xff] %v1176
                %v1178 = vld [vmem:[%s176 + $0x1f40] sm:$0xff]
                %1179 = vst [vmem:[%s177 + $0xfa0] sm:$0xff] %v1178
                %v1180 = vld [vmem:[%s176 + $0x1f48] sm:$0xff]
                %1181 = vst [vmem:[%s177 + $0xfa8] sm:$0xff] %v1180
                %v1182 = vld [vmem:[%s176 + $0x1f60] sm:$0xff]
                %1183 = vst [vmem:[%s177 + $0xfb0] sm:$0xff] %v1182
                %v1184 = vld [vmem:[%s176 + $0x1f68] sm:$0xff]
                %1185 = vst [vmem:[%s177 + $0xfb8] sm:$0xff] %v1184
                %v1186 = vld [vmem:[%s176 + $0x1f80] sm:$0xff]
                %1187 = vst [vmem:[%s177 + $0xfc0] sm:$0xff] %v1186
                %v1188 = vld [vmem:[%s176 + $0x1f88] sm:$0xff]
                %1189 = vst [vmem:[%s177 + $0xfc8] sm:$0xff] %v1188
                %v1190 = vld [vmem:[%s176 + $0x1fa0] sm:$0xff]
                %1191 = vst [vmem:[%s177 + $0xfd0] sm:$0xff] %v1190
                %v1192 = vld [vmem:[%s176 + $0x1fa8] sm:$0xff]
                %1193 = vst [vmem:[%s177 + $0xfd8] sm:$0xff] %v1192
                %v1194 = vld [vmem:[%s176 + $0x1fc0] sm:$0xff]
                %1195 = vst [vmem:[%s177 + $0xfe0] sm:$0xff] %v1194
                %v1196 = vld [vmem:[%s176 + $0x1fc8] sm:$0xff]
                %1197 = vst [vmem:[%s177 + $0xfe8] sm:$0xff] %v1196
                %v1198 = vld [vmem:[%s176 + $0x1fe0] sm:$0xff]
                %1199 = vst [vmem:[%s177 + $0xff0] sm:$0xff] %v1198
                %v1200 = vld [vmem:[%s176 + $0x1fe8] sm:$0xff]
                %1201 = vst [vmem:[%s177 + $0xff8] sm:$0xff] %v1200
              $region37: #{res50_head_forward.2} parent=31 // loop_footer
                %s175 = sadd.s32 1, %s171
              $region38: #{res50_head_forward.2} parent=31 // loop_footer_branch
                %170 = sbr.rel target = $region34
              $region39: #{res50_head_forward.2} parent=31 // loop_exit
                _
            $region32: #{res50_head_forward.2} parent=27 // pred_fallthru
              _
            // Predicated region
            $region40: #{res50_head_forward.2} parent=27 // pred_check
              _
            $region41: #{res50_head_forward.2} parent=27 // pred_check_branch
              %1203 = sbr.rel target = $region43
            $region42: #{res50_head_forward.2} parent=27 // pred_region
              _
            $region43: #{res50_head_forward.2} parent=27 // pred_fallthru
              _
          $region28: #{res50_head_forward.2} parent=23 // pred_fallthru
            _
          %1204 = vnop
        $region24: #{res50_head_forward.2} parent=19 // pred_fallthru
          _
        // Predicated region
        $region44: #{res50_head_forward.2} parent=19 // pred_check
          %p1205 = pneg %p93
        $region45: #{res50_head_forward.2} parent=19 // pred_check_branch
          %1207 = sbr.rel (%p1205) target = $region47
        $region46: #{res50_head_forward.2} parent=19 // pred_region
          %s1208 = smul.u32 4, %s16
          %p1209 = scmp.lt.s32.totalorder %s1208, 7
          %s1210 = scalar_select %p1209, %s1208, 7
          %s1211 = scalar_lea.vmem %s2, %s1210
          %s1212 = smul.u32 4, %s16
        $region47: #{res50_head_forward.2} parent=19 // pred_fallthru
          _
      $region20: #{res50_head_forward.2} parent=5 // pred_fallthru
        _
      %p1213 = scmp.le.s32.totalorder 1, %s9
      %p1214 = scmp.lt.s32.totalorder %s9, 3
      %p1215 = pnand %p1213, %p1214
      %p1216 = pneg %p1215
      // Predicated region
      $region48: #{res50_head_forward.2} parent=5 // pred_check
        _
      $region49: #{res50_head_forward.2} parent=5 // pred_check_branch
        %1218 = sbr.rel (%p1215) target = $region51
      $region50: #{res50_head_forward.2} parent=5 // pred_region
        %s1219 = ssub.s32 %s9, 1
        %s1220 = sand.u32 %s60, 1
        %s1221 = sand.u32 %s60, 1
        %s1222 = smul.addr %s1221, 4096
        %s1223 = scalar_lea.vmem [#allocation2], %s1222
        // Predicated region
        $region52: #{res50_head_forward.2} parent=50 // pred_check
          %p1224 = pneg %p73
        $region53: #{res50_head_forward.2} parent=50 // pred_check_branch
          %1226 = sbr.rel (%p1224) target = $region55
        $region54: #{res50_head_forward.2} parent=50 // pred_region
          _
        $region55: #{res50_head_forward.2} parent=50 // pred_fallthru
          _
        %s1227 = smul.u32 2, %s19
        %p1228 = scmp.lt.s32.totalorder %s1227, 1
        %s1229 = scalar_select %p1228, %s1227, 1
        %s1230 = smul.addr %s1229, 16
        %s1231 = smul.addr %s1230, 4
        %s1232 = scalar_lea.vmem %s0, %s1231
        %p1233 = pneg %p47
        %p1234 = pneg %p44
        %s1235 = sand.u32 %s60, 1
        %s1236 = sand.u32 %s60, 1
        %s1237 = smul.addr %s1236, 4096
        %s1238 = scalar_lea.vmem [#allocation2], %s1237
        %p1239 = pneg %p73
        %p1240 = pneg %p70
        %s1241 = smul.u32 4, %s18
        %p1242 = scmp.lt.s32.totalorder %s1241, 7
        %s1243 = scalar_select %p1242, %s1241, 7
        %s1244 = scalar_lea.vmem %s2, %s1243
        %p1245 = pneg %p99
        %p1246 = pneg %p96
        %p1247 = pneg %p127
        %p1248 = pneg %p124
        %s1249 = sand.u32 %s114, 1
        %s1250 = sand.u32 %s114, 1
        %s1251 = smul.addr %s1250, 64
        %s1252 = scalar_lea.vmem [#allocation3], %s1251
        %s1253 = smul.u32 2, %s19
        %p1254 = scmp.lt.s32.totalorder %s1253, 1
        %s1255 = scalar_select %p1254, %s1253, 1
        %s1256 = smul.addr %s1255, 16
        %s1257 = smul.addr %s1256, 4
        %s1258 = scalar_lea.vmem %s0, %s1257
        %s1259 = smul.u32 2, %s19
        %s1260 = smul.u32 4, %s18
        %s1261 = smul.u32 4, %s18
        %p1262 = scmp.lt.s32.totalorder %s1261, 7
        %s1263 = scalar_select %p1262, %s1261, 7
        %s1264 = scalar_lea.vmem %s2, %s1263
        %s1265 = smul.u32 4, %s18
        %s1266 = smul.u32 2, %s19
        %s1267 = smul.u32 4, %s18
        %v1268 = vld [vmem:[%s1258] sm:$0xff]
        %v1269 = vld [vmem:[%s1258 + $0x8] sm:$0xff]
        %v1270 = vld [vmem:[%s1258 + $0x10] sm:$0xff]
        %v1271 = vld [vmem:[%s1258 + $0x18] sm:$0xff]
        %v1272 = vld [vmem:[%s1258 + $0x20] sm:$0xff]
        %v1273 = vld [vmem:[%s1258 + $0x28] sm:$0xff]
        %v1274 = vld [vmem:[%s1258 + $0x30] sm:$0xff]
        %v1275 = vld [vmem:[%s1258 + $0x38] sm:$0xff]
        %v1276 = vld [vmem:[%s1258 + $0x40] sm:$0xff]
        %v1277 = vld [vmem:[%s1258 + $0x48] sm:$0xff]
        %v1278 = vld [vmem:[%s1258 + $0x50] sm:$0xff]
        %v1279 = vld [vmem:[%s1258 + $0x58] sm:$0xff]
        %v1280 = vld [vmem:[%s1258 + $0x60] sm:$0xff]
        %v1281 = vld [vmem:[%s1258 + $0x68] sm:$0xff]
        %v1282 = vld [vmem:[%s1258 + $0x70] sm:$0xff]
        %v1283 = vld [vmem:[%s1258 + $0x78] sm:$0xff]
        %v1284 = vld [vmem:[%s1223] sm:$0xff]
        %v1285 = vld [vmem:[%s1223 + $0x8] sm:$0xff]
        %v1286 = vld [vmem:[%s1223 + $0x10] sm:$0xff]
        %v1287 = vld [vmem:[%s1223 + $0x18] sm:$0xff]
        %v1288 = vld [vmem:[%s1223 + $0x20] sm:$0xff]
        %v1289 = vld [vmem:[%s1223 + $0x28] sm:$0xff]
        %v1290 = vld [vmem:[%s1223 + $0x30] sm:$0xff]
        %v1291 = vld [vmem:[%s1223 + $0x38] sm:$0xff]
        %v1292 = vld [vmem:[%s1223 + $0x40] sm:$0xff]
        %v1293 = vld [vmem:[%s1223 + $0x48] sm:$0xff]
        %v1294 = vld [vmem:[%s1223 + $0x50] sm:$0xff]
        %v1295 = vld [vmem:[%s1223 + $0x58] sm:$0xff]
        %v1296 = vld [vmem:[%s1223 + $0x60] sm:$0xff]
        %v1297 = vld [vmem:[%s1223 + $0x68] sm:$0xff]
        %v1298 = vld [vmem:[%s1223 + $0x70] sm:$0xff]
        %v1299 = vld [vmem:[%s1223 + $0x78] sm:$0xff]
        %v1300 = vld [vmem:[%s1223 + $0x80] sm:$0xff]
        %v1301 = vld [vmem:[%s1223 + $0x88] sm:$0xff]
        %v1302 = vld [vmem:[%s1223 + $0x90] sm:$0xff]
        %v1303 = vld [vmem:[%s1223 + $0x98] sm:$0xff]
        %v1304 = vld [vmem:[%s1223 + $0xa0] sm:$0xff]
        %v1305 = vld [vmem:[%s1223 + $0xa8] sm:$0xff]
        %v1306 = vld [vmem:[%s1223 + $0xb0] sm:$0xff]
        %v1307 = vld [vmem:[%s1223 + $0xb8] sm:$0xff]
        %v1308 = vld [vmem:[%s1223 + $0xc0] sm:$0xff]
        %v1309 = vld [vmem:[%s1223 + $0xc8] sm:$0xff]
        %v1310 = vld [vmem:[%s1223 + $0xd0] sm:$0xff]
        %v1311 = vld [vmem:[%s1223 + $0xd8] sm:$0xff]
        %v1312 = vld [vmem:[%s1223 + $0xe0] sm:$0xff]
        %v1313 = vld [vmem:[%s1223 + $0xe8] sm:$0xff]
        %v1314 = vld [vmem:[%s1223 + $0xf0] sm:$0xff]
        %v1315 = vld [vmem:[%s1223 + $0xf8] sm:$0xff]
        %v1316 = vld [vmem:[%s1223 + $0x100] sm:$0xff]
        %v1317 = vld [vmem:[%s1223 + $0x108] sm:$0xff]
        %v1318 = vld [vmem:[%s1223 + $0x110] sm:$0xff]
        %v1319 = vld [vmem:[%s1223 + $0x118] sm:$0xff]
        %v1320 = vld [vmem:[%s1223 + $0x120] sm:$0xff]
        %v1321 = vld [vmem:[%s1223 + $0x128] sm:$0xff]
        %v1322 = vld [vmem:[%s1223 + $0x130] sm:$0xff]
        %v1323 = vld [vmem:[%s1223 + $0x138] sm:$0xff]
        %v1324 = vld [vmem:[%s1223 + $0x140] sm:$0xff]
        %v1325 = vld [vmem:[%s1223 + $0x148] sm:$0xff]
        %v1326 = vld [vmem:[%s1223 + $0x150] sm:$0xff]
        %v1327 = vld [vmem:[%s1223 + $0x158] sm:$0xff]
        %v1328 = vld [vmem:[%s1223 + $0x160] sm:$0xff]
        %v1329 = vld [vmem:[%s1223 + $0x168] sm:$0xff]
        %v1330 = vld [vmem:[%s1223 + $0x170] sm:$0xff]
        %v1331 = vld [vmem:[%s1223 + $0x178] sm:$0xff]
        %v1332 = vld [vmem:[%s1223 + $0x180] sm:$0xff]
        %v1333 = vld [vmem:[%s1223 + $0x188] sm:$0xff]
        %v1334 = vld [vmem:[%s1223 + $0x190] sm:$0xff]
        %v1335 = vld [vmem:[%s1223 + $0x198] sm:$0xff]
        %v1336 = vld [vmem:[%s1223 + $0x1a0] sm:$0xff]
        %v1337 = vld [vmem:[%s1223 + $0x1a8] sm:$0xff]
        %v1338 = vld [vmem:[%s1223 + $0x1b0] sm:$0xff]
        %v1339 = vld [vmem:[%s1223 + $0x1b8] sm:$0xff]
        %v1340 = vld [vmem:[%s1223 + $0x1c0] sm:$0xff]
        %v1341 = vld [vmem:[%s1223 + $0x1c8] sm:$0xff]
        %v1342 = vld [vmem:[%s1223 + $0x1d0] sm:$0xff]
        %v1343 = vld [vmem:[%s1223 + $0x1d8] sm:$0xff]
        %v1344 = vld [vmem:[%s1223 + $0x1e0] sm:$0xff]
        %v1345 = vld [vmem:[%s1223 + $0x1e8] sm:$0xff]
        %v1346 = vld [vmem:[%s1223 + $0x1f0] sm:$0xff]
        %v1347 = vld [vmem:[%s1223 + $0x1f8] sm:$0xff]
        %v1348 = vld [vmem:[%s1223 + $0x200] sm:$0xff]
        %v1349 = vld [vmem:[%s1223 + $0x208] sm:$0xff]
        %v1350 = vld [vmem:[%s1223 + $0x210] sm:$0xff]
        %v1351 = vld [vmem:[%s1223 + $0x218] sm:$0xff]
        %v1352 = vld [vmem:[%s1223 + $0x220] sm:$0xff]
        %v1353 = vld [vmem:[%s1223 + $0x228] sm:$0xff]
        %v1354 = vld [vmem:[%s1223 + $0x230] sm:$0xff]
        %v1355 = vld [vmem:[%s1223 + $0x238] sm:$0xff]
        %v1356 = vld [vmem:[%s1223 + $0x240] sm:$0xff]
        %v1357 = vld [vmem:[%s1223 + $0x248] sm:$0xff]
        %v1358 = vld [vmem:[%s1223 + $0x250] sm:$0xff]
        %v1359 = vld [vmem:[%s1223 + $0x258] sm:$0xff]
        %v1360 = vld [vmem:[%s1223 + $0x260] sm:$0xff]
        %v1361 = vld [vmem:[%s1223 + $0x268] sm:$0xff]
        %v1362 = vld [vmem:[%s1223 + $0x270] sm:$0xff]
        %v1363 = vld [vmem:[%s1223 + $0x278] sm:$0xff]
        %v1364 = vld [vmem:[%s1223 + $0x280] sm:$0xff]
        %v1365 = vld [vmem:[%s1223 + $0x288] sm:$0xff]
        %v1366 = vld [vmem:[%s1223 + $0x290] sm:$0xff]
        %v1367 = vld [vmem:[%s1223 + $0x298] sm:$0xff]
        %v1368 = vld [vmem:[%s1223 + $0x2a0] sm:$0xff]
        %v1369 = vld [vmem:[%s1223 + $0x2a8] sm:$0xff]
        %v1370 = vld [vmem:[%s1223 + $0x2b0] sm:$0xff]
        %v1371 = vld [vmem:[%s1223 + $0x2b8] sm:$0xff]
        %v1372 = vld [vmem:[%s1223 + $0x2c0] sm:$0xff]
        %v1373 = vld [vmem:[%s1223 + $0x2c8] sm:$0xff]
        %v1374 = vld [vmem:[%s1223 + $0x2d0] sm:$0xff]
        %v1375 = vld [vmem:[%s1223 + $0x2d8] sm:$0xff]
        %v1376 = vld [vmem:[%s1223 + $0x2e0] sm:$0xff]
        %v1377 = vld [vmem:[%s1223 + $0x2e8] sm:$0xff]
        %v1378 = vld [vmem:[%s1223 + $0x2f0] sm:$0xff]
        %v1379 = vld [vmem:[%s1223 + $0x2f8] sm:$0xff]
        %v1380 = vld [vmem:[%s1223 + $0x300] sm:$0xff]
        %v1381 = vld [vmem:[%s1223 + $0x308] sm:$0xff]
        %v1382 = vld [vmem:[%s1223 + $0x310] sm:$0xff]
        %v1383 = vld [vmem:[%s1223 + $0x318] sm:$0xff]
        %v1384 = vld [vmem:[%s1223 + $0x320] sm:$0xff]
        %v1385 = vld [vmem:[%s1223 + $0x328] sm:$0xff]
        %v1386 = vld [vmem:[%s1223 + $0x330] sm:$0xff]
        %v1387 = vld [vmem:[%s1223 + $0x338] sm:$0xff]
        %v1388 = vld [vmem:[%s1223 + $0x340] sm:$0xff]
        %v1389 = vld [vmem:[%s1223 + $0x348] sm:$0xff]
        %v1390 = vld [vmem:[%s1223 + $0x350] sm:$0xff]
        %v1391 = vld [vmem:[%s1223 + $0x358] sm:$0xff]
        %v1392 = vld [vmem:[%s1223 + $0x360] sm:$0xff]
        %v1393 = vld [vmem:[%s1223 + $0x368] sm:$0xff]
        %v1394 = vld [vmem:[%s1223 + $0x370] sm:$0xff]
        %v1395 = vld [vmem:[%s1223 + $0x378] sm:$0xff]
        %v1396 = vld [vmem:[%s1223 + $0x380] sm:$0xff]
        %v1397 = vld [vmem:[%s1223 + $0x388] sm:$0xff]
        %v1398 = vld [vmem:[%s1223 + $0x390] sm:$0xff]
        %v1399 = vld [vmem:[%s1223 + $0x398] sm:$0xff]
        %v1400 = vld [vmem:[%s1223 + $0x3a0] sm:$0xff]
        %v1401 = vld [vmem:[%s1223 + $0x3a8] sm:$0xff]
        %v1402 = vld [vmem:[%s1223 + $0x3b0] sm:$0xff]
        %v1403 = vld [vmem:[%s1223 + $0x3b8] sm:$0xff]
        %v1404 = vld [vmem:[%s1223 + $0x3c0] sm:$0xff]
        %v1405 = vld [vmem:[%s1223 + $0x3c8] sm:$0xff]
        %v1406 = vld [vmem:[%s1223 + $0x3d0] sm:$0xff]
        %v1407 = vld [vmem:[%s1223 + $0x3d8] sm:$0xff]
        %v1408 = vld [vmem:[%s1223 + $0x3e0] sm:$0xff]
        %v1409 = vld [vmem:[%s1223 + $0x3e8] sm:$0xff]
        %v1410 = vld [vmem:[%s1223 + $0x3f0] sm:$0xff]
        %v1411 = vld [vmem:[%s1223 + $0x3f8] sm:$0xff]
        %v1412 = vld [vmem:[%s1223 + $0x400] sm:$0xff]
        %v1413 = vld [vmem:[%s1223 + $0x408] sm:$0xff]
        %v1414 = vld [vmem:[%s1223 + $0x410] sm:$0xff]
        %v1415 = vld [vmem:[%s1223 + $0x418] sm:$0xff]
        %v1416 = vld [vmem:[%s1223 + $0x420] sm:$0xff]
        %v1417 = vld [vmem:[%s1223 + $0x428] sm:$0xff]
        %v1418 = vld [vmem:[%s1223 + $0x430] sm:$0xff]
        %v1419 = vld [vmem:[%s1223 + $0x438] sm:$0xff]
        %v1420 = vld [vmem:[%s1223 + $0x440] sm:$0xff]
        %v1421 = vld [vmem:[%s1223 + $0x448] sm:$0xff]
        %v1422 = vld [vmem:[%s1223 + $0x450] sm:$0xff]
        %v1423 = vld [vmem:[%s1223 + $0x458] sm:$0xff]
        %v1424 = vld [vmem:[%s1223 + $0x460] sm:$0xff]
        %v1425 = vld [vmem:[%s1223 + $0x468] sm:$0xff]
        %v1426 = vld [vmem:[%s1223 + $0x470] sm:$0xff]
        %v1427 = vld [vmem:[%s1223 + $0x478] sm:$0xff]
        %v1428 = vld [vmem:[%s1223 + $0x480] sm:$0xff]
        %v1429 = vld [vmem:[%s1223 + $0x488] sm:$0xff]
        %v1430 = vld [vmem:[%s1223 + $0x490] sm:$0xff]
        %v1431 = vld [vmem:[%s1223 + $0x498] sm:$0xff]
        %v1432 = vld [vmem:[%s1223 + $0x4a0] sm:$0xff]
        %v1433 = vld [vmem:[%s1223 + $0x4a8] sm:$0xff]
        %v1434 = vld [vmem:[%s1223 + $0x4b0] sm:$0xff]
        %v1435 = vld [vmem:[%s1223 + $0x4b8] sm:$0xff]
        %v1436 = vld [vmem:[%s1223 + $0x4c0] sm:$0xff]
        %v1437 = vld [vmem:[%s1223 + $0x4c8] sm:$0xff]
        %v1438 = vld [vmem:[%s1223 + $0x4d0] sm:$0xff]
        %v1439 = vld [vmem:[%s1223 + $0x4d8] sm:$0xff]
        %v1440 = vld [vmem:[%s1223 + $0x4e0] sm:$0xff]
        %v1441 = vld [vmem:[%s1223 + $0x4e8] sm:$0xff]
        %v1442 = vld [vmem:[%s1223 + $0x4f0] sm:$0xff]
        %v1443 = vld [vmem:[%s1223 + $0x4f8] sm:$0xff]
        %v1444 = vld [vmem:[%s1223 + $0x500] sm:$0xff]
        %v1445 = vld [vmem:[%s1223 + $0x508] sm:$0xff]
        %v1446 = vld [vmem:[%s1223 + $0x510] sm:$0xff]
        %v1447 = vld [vmem:[%s1223 + $0x518] sm:$0xff]
        %v1448 = vld [vmem:[%s1223 + $0x520] sm:$0xff]
        %v1449 = vld [vmem:[%s1223 + $0x528] sm:$0xff]
        %v1450 = vld [vmem:[%s1223 + $0x530] sm:$0xff]
        %v1451 = vld [vmem:[%s1223 + $0x538] sm:$0xff]
        %v1452 = vld [vmem:[%s1223 + $0x540] sm:$0xff]
        %v1453 = vld [vmem:[%s1223 + $0x548] sm:$0xff]
        %v1454 = vld [vmem:[%s1223 + $0x550] sm:$0xff]
        %v1455 = vld [vmem:[%s1223 + $0x558] sm:$0xff]
        %v1456 = vld [vmem:[%s1223 + $0x560] sm:$0xff]
        %v1457 = vld [vmem:[%s1223 + $0x568] sm:$0xff]
        %v1458 = vld [vmem:[%s1223 + $0x570] sm:$0xff]
        %v1459 = vld [vmem:[%s1223 + $0x578] sm:$0xff]
        %v1460 = vld [vmem:[%s1223 + $0x580] sm:$0xff]
        %v1461 = vld [vmem:[%s1223 + $0x588] sm:$0xff]
        %v1462 = vld [vmem:[%s1223 + $0x590] sm:$0xff]
        %v1463 = vld [vmem:[%s1223 + $0x598] sm:$0xff]
        %v1464 = vld [vmem:[%s1223 + $0x5a0] sm:$0xff]
        %v1465 = vld [vmem:[%s1223 + $0x5a8] sm:$0xff]
        %v1466 = vld [vmem:[%s1223 + $0x5b0] sm:$0xff]
        %v1467 = vld [vmem:[%s1223 + $0x5b8] sm:$0xff]
        %v1468 = vld [vmem:[%s1223 + $0x5c0] sm:$0xff]
        %v1469 = vld [vmem:[%s1223 + $0x5c8] sm:$0xff]
        %v1470 = vld [vmem:[%s1223 + $0x5d0] sm:$0xff]
        %v1471 = vld [vmem:[%s1223 + $0x5d8] sm:$0xff]
        %v1472 = vld [vmem:[%s1223 + $0x5e0] sm:$0xff]
        %v1473 = vld [vmem:[%s1223 + $0x5e8] sm:$0xff]
        %v1474 = vld [vmem:[%s1223 + $0x5f0] sm:$0xff]
        %v1475 = vld [vmem:[%s1223 + $0x5f8] sm:$0xff]
        %v1476 = vld [vmem:[%s1223 + $0x600] sm:$0xff]
        %v1477 = vld [vmem:[%s1223 + $0x608] sm:$0xff]
        %v1478 = vld [vmem:[%s1223 + $0x610] sm:$0xff]
        %v1479 = vld [vmem:[%s1223 + $0x618] sm:$0xff]
        %v1480 = vld [vmem:[%s1223 + $0x620] sm:$0xff]
        %v1481 = vld [vmem:[%s1223 + $0x628] sm:$0xff]
        %v1482 = vld [vmem:[%s1223 + $0x630] sm:$0xff]
        %v1483 = vld [vmem:[%s1223 + $0x638] sm:$0xff]
        %v1484 = vld [vmem:[%s1223 + $0x640] sm:$0xff]
        %v1485 = vld [vmem:[%s1223 + $0x648] sm:$0xff]
        %v1486 = vld [vmem:[%s1223 + $0x650] sm:$0xff]
        %v1487 = vld [vmem:[%s1223 + $0x658] sm:$0xff]
        %v1488 = vld [vmem:[%s1223 + $0x660] sm:$0xff]
        %v1489 = vld [vmem:[%s1223 + $0x668] sm:$0xff]
        %v1490 = vld [vmem:[%s1223 + $0x670] sm:$0xff]
        %v1491 = vld [vmem:[%s1223 + $0x678] sm:$0xff]
        %v1492 = vld [vmem:[%s1223 + $0x680] sm:$0xff]
        %v1493 = vld [vmem:[%s1223 + $0x688] sm:$0xff]
        %v1494 = vld [vmem:[%s1223 + $0x690] sm:$0xff]
        %v1495 = vld [vmem:[%s1223 + $0x698] sm:$0xff]
        %v1496 = vld [vmem:[%s1223 + $0x6a0] sm:$0xff]
        %v1497 = vld [vmem:[%s1223 + $0x6a8] sm:$0xff]
        %v1498 = vld [vmem:[%s1223 + $0x6b0] sm:$0xff]
        %v1499 = vld [vmem:[%s1223 + $0x6b8] sm:$0xff]
        %v1500 = vld [vmem:[%s1223 + $0x6c0] sm:$0xff]
        %v1501 = vld [vmem:[%s1223 + $0x6c8] sm:$0xff]
        %v1502 = vld [vmem:[%s1223 + $0x6d0] sm:$0xff]
        %v1503 = vld [vmem:[%s1223 + $0x6d8] sm:$0xff]
        %v1504 = vld [vmem:[%s1223 + $0x6e0] sm:$0xff]
        %v1505 = vld [vmem:[%s1223 + $0x6e8] sm:$0xff]
        %v1506 = vld [vmem:[%s1223 + $0x6f0] sm:$0xff]
        %v1507 = vld [vmem:[%s1223 + $0x6f8] sm:$0xff]
        %v1508 = vld [vmem:[%s1223 + $0x700] sm:$0xff]
        %v1509 = vld [vmem:[%s1223 + $0x708] sm:$0xff]
        %v1510 = vld [vmem:[%s1223 + $0x710] sm:$0xff]
        %v1511 = vld [vmem:[%s1223 + $0x718] sm:$0xff]
        %v1512 = vld [vmem:[%s1223 + $0x720] sm:$0xff]
        %v1513 = vld [vmem:[%s1223 + $0x728] sm:$0xff]
        %v1514 = vld [vmem:[%s1223 + $0x730] sm:$0xff]
        %v1515 = vld [vmem:[%s1223 + $0x738] sm:$0xff]
        %v1516 = vld [vmem:[%s1223 + $0x740] sm:$0xff]
        %v1517 = vld [vmem:[%s1223 + $0x748] sm:$0xff]
        %v1518 = vld [vmem:[%s1223 + $0x750] sm:$0xff]
        %v1519 = vld [vmem:[%s1223 + $0x758] sm:$0xff]
        %v1520 = vld [vmem:[%s1223 + $0x760] sm:$0xff]
        %v1521 = vld [vmem:[%s1223 + $0x768] sm:$0xff]
        %v1522 = vld [vmem:[%s1223 + $0x770] sm:$0xff]
        %v1523 = vld [vmem:[%s1223 + $0x778] sm:$0xff]
        %v1524 = vld [vmem:[%s1223 + $0x780] sm:$0xff]
        %v1525 = vld [vmem:[%s1223 + $0x788] sm:$0xff]
        %v1526 = vld [vmem:[%s1223 + $0x790] sm:$0xff]
        %v1527 = vld [vmem:[%s1223 + $0x798] sm:$0xff]
        %v1528 = vld [vmem:[%s1223 + $0x7a0] sm:$0xff]
        %v1529 = vld [vmem:[%s1223 + $0x7a8] sm:$0xff]
        %v1530 = vld [vmem:[%s1223 + $0x7b0] sm:$0xff]
        %v1531 = vld [vmem:[%s1223 + $0x7b8] sm:$0xff]
        %v1532 = vld [vmem:[%s1223 + $0x7c0] sm:$0xff]
        %v1533 = vld [vmem:[%s1223 + $0x7c8] sm:$0xff]
        %v1534 = vld [vmem:[%s1223 + $0x7d0] sm:$0xff]
        %v1535 = vld [vmem:[%s1223 + $0x7d8] sm:$0xff]
        %v1536 = vld [vmem:[%s1223 + $0x7e0] sm:$0xff]
        %v1537 = vld [vmem:[%s1223 + $0x7e8] sm:$0xff]
        %v1538 = vld [vmem:[%s1223 + $0x7f0] sm:$0xff]
        %v1539 = vld [vmem:[%s1223 + $0x7f8] sm:$0xff]
        %v1540 = vld [vmem:[%s1223 + $0x800] sm:$0xff]
        %v1541 = vld [vmem:[%s1223 + $0x808] sm:$0xff]
        %v1542 = vld [vmem:[%s1223 + $0x810] sm:$0xff]
        %v1543 = vld [vmem:[%s1223 + $0x818] sm:$0xff]
        %v1544 = vld [vmem:[%s1223 + $0x820] sm:$0xff]
        %v1545 = vld [vmem:[%s1223 + $0x828] sm:$0xff]
        %v1546 = vld [vmem:[%s1223 + $0x830] sm:$0xff]
        %v1547 = vld [vmem:[%s1223 + $0x838] sm:$0xff]
        %v1548 = vld [vmem:[%s1223 + $0x840] sm:$0xff]
        %v1549 = vld [vmem:[%s1223 + $0x848] sm:$0xff]
        %v1550 = vld [vmem:[%s1223 + $0x850] sm:$0xff]
        %v1551 = vld [vmem:[%s1223 + $0x858] sm:$0xff]
        %v1552 = vld [vmem:[%s1223 + $0x860] sm:$0xff]
        %v1553 = vld [vmem:[%s1223 + $0x868] sm:$0xff]
        %v1554 = vld [vmem:[%s1223 + $0x870] sm:$0xff]
        %v1555 = vld [vmem:[%s1223 + $0x878] sm:$0xff]
        %v1556 = vld [vmem:[%s1223 + $0x880] sm:$0xff]
        %v1557 = vld [vmem:[%s1223 + $0x888] sm:$0xff]
        %v1558 = vld [vmem:[%s1223 + $0x890] sm:$0xff]
        %v1559 = vld [vmem:[%s1223 + $0x898] sm:$0xff]
        %v1560 = vld [vmem:[%s1223 + $0x8a0] sm:$0xff]
        %v1561 = vld [vmem:[%s1223 + $0x8a8] sm:$0xff]
        %v1562 = vld [vmem:[%s1223 + $0x8b0] sm:$0xff]
        %v1563 = vld [vmem:[%s1223 + $0x8b8] sm:$0xff]
        %v1564 = vld [vmem:[%s1223 + $0x8c0] sm:$0xff]
        %v1565 = vld [vmem:[%s1223 + $0x8c8] sm:$0xff]
        %v1566 = vld [vmem:[%s1223 + $0x8d0] sm:$0xff]
        %v1567 = vld [vmem:[%s1223 + $0x8d8] sm:$0xff]
        %v1568 = vld [vmem:[%s1223 + $0x8e0] sm:$0xff]
        %v1569 = vld [vmem:[%s1223 + $0x8e8] sm:$0xff]
        %v1570 = vld [vmem:[%s1223 + $0x8f0] sm:$0xff]
        %v1571 = vld [vmem:[%s1223 + $0x8f8] sm:$0xff]
        %v1572 = vld [vmem:[%s1223 + $0x900] sm:$0xff]
        %v1573 = vld [vmem:[%s1223 + $0x908] sm:$0xff]
        %v1574 = vld [vmem:[%s1223 + $0x910] sm:$0xff]
        %v1575 = vld [vmem:[%s1223 + $0x918] sm:$0xff]
        %v1576 = vld [vmem:[%s1223 + $0x920] sm:$0xff]
        %v1577 = vld [vmem:[%s1223 + $0x928] sm:$0xff]
        %v1578 = vld [vmem:[%s1223 + $0x930] sm:$0xff]
        %v1579 = vld [vmem:[%s1223 + $0x938] sm:$0xff]
        %v1580 = vld [vmem:[%s1223 + $0x940] sm:$0xff]
        %v1581 = vld [vmem:[%s1223 + $0x948] sm:$0xff]
        %v1582 = vld [vmem:[%s1223 + $0x950] sm:$0xff]
        %v1583 = vld [vmem:[%s1223 + $0x958] sm:$0xff]
        %v1584 = vld [vmem:[%s1223 + $0x960] sm:$0xff]
        %v1585 = vld [vmem:[%s1223 + $0x968] sm:$0xff]
        %v1586 = vld [vmem:[%s1223 + $0x970] sm:$0xff]
        %v1587 = vld [vmem:[%s1223 + $0x978] sm:$0xff]
        %v1588 = vld [vmem:[%s1223 + $0x980] sm:$0xff]
        %v1589 = vld [vmem:[%s1223 + $0x988] sm:$0xff]
        %v1590 = vld [vmem:[%s1223 + $0x990] sm:$0xff]
        %v1591 = vld [vmem:[%s1223 + $0x998] sm:$0xff]
        %v1592 = vld [vmem:[%s1223 + $0x9a0] sm:$0xff]
        %v1593 = vld [vmem:[%s1223 + $0x9a8] sm:$0xff]
        %v1594 = vld [vmem:[%s1223 + $0x9b0] sm:$0xff]
        %v1595 = vld [vmem:[%s1223 + $0x9b8] sm:$0xff]
        %v1596 = vld [vmem:[%s1223 + $0x9c0] sm:$0xff]
        %v1597 = vld [vmem:[%s1223 + $0x9c8] sm:$0xff]
        %v1598 = vld [vmem:[%s1223 + $0x9d0] sm:$0xff]
        %v1599 = vld [vmem:[%s1223 + $0x9d8] sm:$0xff]
        %v1600 = vld [vmem:[%s1223 + $0x9e0] sm:$0xff]
        %v1601 = vld [vmem:[%s1223 + $0x9e8] sm:$0xff]
        %v1602 = vld [vmem:[%s1223 + $0x9f0] sm:$0xff]
        %v1603 = vld [vmem:[%s1223 + $0x9f8] sm:$0xff]
        %v1604 = vld [vmem:[%s1223 + $0xa00] sm:$0xff]
        %v1605 = vld [vmem:[%s1223 + $0xa08] sm:$0xff]
        %v1606 = vld [vmem:[%s1223 + $0xa10] sm:$0xff]
        %v1607 = vld [vmem:[%s1223 + $0xa18] sm:$0xff]
        %v1608 = vld [vmem:[%s1223 + $0xa20] sm:$0xff]
        %v1609 = vld [vmem:[%s1223 + $0xa28] sm:$0xff]
        %v1610 = vld [vmem:[%s1223 + $0xa30] sm:$0xff]
        %v1611 = vld [vmem:[%s1223 + $0xa38] sm:$0xff]
        %v1612 = vld [vmem:[%s1223 + $0xa40] sm:$0xff]
        %v1613 = vld [vmem:[%s1223 + $0xa48] sm:$0xff]
        %v1614 = vld [vmem:[%s1223 + $0xa50] sm:$0xff]
        %v1615 = vld [vmem:[%s1223 + $0xa58] sm:$0xff]
        %v1616 = vld [vmem:[%s1223 + $0xa60] sm:$0xff]
        %v1617 = vld [vmem:[%s1223 + $0xa68] sm:$0xff]
        %v1618 = vld [vmem:[%s1223 + $0xa70] sm:$0xff]
        %v1619 = vld [vmem:[%s1223 + $0xa78] sm:$0xff]
        %v1620 = vld [vmem:[%s1223 + $0xa80] sm:$0xff]
        %v1621 = vld [vmem:[%s1223 + $0xa88] sm:$0xff]
        %v1622 = vld [vmem:[%s1223 + $0xa90] sm:$0xff]
        %v1623 = vld [vmem:[%s1223 + $0xa98] sm:$0xff]
        %v1624 = vld [vmem:[%s1223 + $0xaa0] sm:$0xff]
        %v1625 = vld [vmem:[%s1223 + $0xaa8] sm:$0xff]
        %v1626 = vld [vmem:[%s1223 + $0xab0] sm:$0xff]
        %v1627 = vld [vmem:[%s1223 + $0xab8] sm:$0xff]
        %v1628 = vld [vmem:[%s1223 + $0xac0] sm:$0xff]
        %v1629 = vld [vmem:[%s1223 + $0xac8] sm:$0xff]
        %v1630 = vld [vmem:[%s1223 + $0xad0] sm:$0xff]
        %v1631 = vld [vmem:[%s1223 + $0xad8] sm:$0xff]
        %v1632 = vld [vmem:[%s1223 + $0xae0] sm:$0xff]
        %v1633 = vld [vmem:[%s1223 + $0xae8] sm:$0xff]
        %v1634 = vld [vmem:[%s1223 + $0xaf0] sm:$0xff]
        %v1635 = vld [vmem:[%s1223 + $0xaf8] sm:$0xff]
        %v1636 = vld [vmem:[%s1223 + $0xb00] sm:$0xff]
        %v1637 = vld [vmem:[%s1223 + $0xb08] sm:$0xff]
        %v1638 = vld [vmem:[%s1223 + $0xb10] sm:$0xff]
        %v1639 = vld [vmem:[%s1223 + $0xb18] sm:$0xff]
        %v1640 = vld [vmem:[%s1223 + $0xb20] sm:$0xff]
        %v1641 = vld [vmem:[%s1223 + $0xb28] sm:$0xff]
        %v1642 = vld [vmem:[%s1223 + $0xb30] sm:$0xff]
        %v1643 = vld [vmem:[%s1223 + $0xb38] sm:$0xff]
        %v1644 = vld [vmem:[%s1223 + $0xb40] sm:$0xff]
        %v1645 = vld [vmem:[%s1223 + $0xb48] sm:$0xff]
        %v1646 = vld [vmem:[%s1223 + $0xb50] sm:$0xff]
        %v1647 = vld [vmem:[%s1223 + $0xb58] sm:$0xff]
        %v1648 = vld [vmem:[%s1223 + $0xb60] sm:$0xff]
        %v1649 = vld [vmem:[%s1223 + $0xb68] sm:$0xff]
        %v1650 = vld [vmem:[%s1223 + $0xb70] sm:$0xff]
        %v1651 = vld [vmem:[%s1223 + $0xb78] sm:$0xff]
        %v1652 = vld [vmem:[%s1223 + $0xb80] sm:$0xff]
        %v1653 = vld [vmem:[%s1223 + $0xb88] sm:$0xff]
        %v1654 = vld [vmem:[%s1223 + $0xb90] sm:$0xff]
        %v1655 = vld [vmem:[%s1223 + $0xb98] sm:$0xff]
        %v1656 = vld [vmem:[%s1223 + $0xba0] sm:$0xff]
        %v1657 = vld [vmem:[%s1223 + $0xba8] sm:$0xff]
        %v1658 = vld [vmem:[%s1223 + $0xbb0] sm:$0xff]
        %v1659 = vld [vmem:[%s1223 + $0xbb8] sm:$0xff]
        %v1660 = vld [vmem:[%s1223 + $0xbc0] sm:$0xff]
        %v1661 = vld [vmem:[%s1223 + $0xbc8] sm:$0xff]
        %v1662 = vld [vmem:[%s1223 + $0xbd0] sm:$0xff]
        %v1663 = vld [vmem:[%s1223 + $0xbd8] sm:$0xff]
        %v1664 = vld [vmem:[%s1223 + $0xbe0] sm:$0xff]
        %v1665 = vld [vmem:[%s1223 + $0xbe8] sm:$0xff]
        %v1666 = vld [vmem:[%s1223 + $0xbf0] sm:$0xff]
        %v1667 = vld [vmem:[%s1223 + $0xbf8] sm:$0xff]
        %v1668 = vld [vmem:[%s1223 + $0xc00] sm:$0xff]
        %v1669 = vld [vmem:[%s1223 + $0xc08] sm:$0xff]
        %v1670 = vld [vmem:[%s1223 + $0xc10] sm:$0xff]
        %v1671 = vld [vmem:[%s1223 + $0xc18] sm:$0xff]
        %v1672 = vld [vmem:[%s1223 + $0xc20] sm:$0xff]
        %v1673 = vld [vmem:[%s1223 + $0xc28] sm:$0xff]
        %v1674 = vld [vmem:[%s1223 + $0xc30] sm:$0xff]
        %v1675 = vld [vmem:[%s1223 + $0xc38] sm:$0xff]
        %v1676 = vld [vmem:[%s1223 + $0xc40] sm:$0xff]
        %v1677 = vld [vmem:[%s1223 + $0xc48] sm:$0xff]
        %v1678 = vld [vmem:[%s1223 + $0xc50] sm:$0xff]
        %v1679 = vld [vmem:[%s1223 + $0xc58] sm:$0xff]
        %v1680 = vld [vmem:[%s1223 + $0xc60] sm:$0xff]
        %v1681 = vld [vmem:[%s1223 + $0xc68] sm:$0xff]
        %v1682 = vld [vmem:[%s1223 + $0xc70] sm:$0xff]
        %v1683 = vld [vmem:[%s1223 + $0xc78] sm:$0xff]
        %v1684 = vld [vmem:[%s1223 + $0xc80] sm:$0xff]
        %v1685 = vld [vmem:[%s1223 + $0xc88] sm:$0xff]
        %v1686 = vld [vmem:[%s1223 + $0xc90] sm:$0xff]
        %v1687 = vld [vmem:[%s1223 + $0xc98] sm:$0xff]
        %v1688 = vld [vmem:[%s1223 + $0xca0] sm:$0xff]
        %v1689 = vld [vmem:[%s1223 + $0xca8] sm:$0xff]
        %v1690 = vld [vmem:[%s1223 + $0xcb0] sm:$0xff]
        %v1691 = vld [vmem:[%s1223 + $0xcb8] sm:$0xff]
        %v1692 = vld [vmem:[%s1223 + $0xcc0] sm:$0xff]
        %v1693 = vld [vmem:[%s1223 + $0xcc8] sm:$0xff]
        %v1694 = vld [vmem:[%s1223 + $0xcd0] sm:$0xff]
        %v1695 = vld [vmem:[%s1223 + $0xcd8] sm:$0xff]
        %v1696 = vld [vmem:[%s1223 + $0xce0] sm:$0xff]
        %v1697 = vld [vmem:[%s1223 + $0xce8] sm:$0xff]
        %v1698 = vld [vmem:[%s1223 + $0xcf0] sm:$0xff]
        %v1699 = vld [vmem:[%s1223 + $0xcf8] sm:$0xff]
        %v1700 = vld [vmem:[%s1223 + $0xd00] sm:$0xff]
        %v1701 = vld [vmem:[%s1223 + $0xd08] sm:$0xff]
        %v1702 = vld [vmem:[%s1223 + $0xd10] sm:$0xff]
        %v1703 = vld [vmem:[%s1223 + $0xd18] sm:$0xff]
        %v1704 = vld [vmem:[%s1223 + $0xd20] sm:$0xff]
        %v1705 = vld [vmem:[%s1223 + $0xd28] sm:$0xff]
        %v1706 = vld [vmem:[%s1223 + $0xd30] sm:$0xff]
        %v1707 = vld [vmem:[%s1223 + $0xd38] sm:$0xff]
        %v1708 = vld [vmem:[%s1223 + $0xd40] sm:$0xff]
        %v1709 = vld [vmem:[%s1223 + $0xd48] sm:$0xff]
        %v1710 = vld [vmem:[%s1223 + $0xd50] sm:$0xff]
        %v1711 = vld [vmem:[%s1223 + $0xd58] sm:$0xff]
        %v1712 = vld [vmem:[%s1223 + $0xd60] sm:$0xff]
        %v1713 = vld [vmem:[%s1223 + $0xd68] sm:$0xff]
        %v1714 = vld [vmem:[%s1223 + $0xd70] sm:$0xff]
        %v1715 = vld [vmem:[%s1223 + $0xd78] sm:$0xff]
        %v1716 = vld [vmem:[%s1223 + $0xd80] sm:$0xff]
        %v1717 = vld [vmem:[%s1223 + $0xd88] sm:$0xff]
        %v1718 = vld [vmem:[%s1223 + $0xd90] sm:$0xff]
        %v1719 = vld [vmem:[%s1223 + $0xd98] sm:$0xff]
        %v1720 = vld [vmem:[%s1223 + $0xda0] sm:$0xff]
        %v1721 = vld [vmem:[%s1223 + $0xda8] sm:$0xff]
        %v1722 = vld [vmem:[%s1223 + $0xdb0] sm:$0xff]
        %v1723 = vld [vmem:[%s1223 + $0xdb8] sm:$0xff]
        %v1724 = vld [vmem:[%s1223 + $0xdc0] sm:$0xff]
        %v1725 = vld [vmem:[%s1223 + $0xdc8] sm:$0xff]
        %v1726 = vld [vmem:[%s1223 + $0xdd0] sm:$0xff]
        %v1727 = vld [vmem:[%s1223 + $0xdd8] sm:$0xff]
        %v1728 = vld [vmem:[%s1223 + $0xde0] sm:$0xff]
        %v1729 = vld [vmem:[%s1223 + $0xde8] sm:$0xff]
        %v1730 = vld [vmem:[%s1223 + $0xdf0] sm:$0xff]
        %v1731 = vld [vmem:[%s1223 + $0xdf8] sm:$0xff]
        %v1732 = vld [vmem:[%s1223 + $0xe00] sm:$0xff]
        %v1733 = vld [vmem:[%s1223 + $0xe08] sm:$0xff]
        %v1734 = vld [vmem:[%s1223 + $0xe10] sm:$0xff]
        %v1735 = vld [vmem:[%s1223 + $0xe18] sm:$0xff]
        %v1736 = vld [vmem:[%s1223 + $0xe20] sm:$0xff]
        %v1737 = vld [vmem:[%s1223 + $0xe28] sm:$0xff]
        %v1738 = vld [vmem:[%s1223 + $0xe30] sm:$0xff]
        %v1739 = vld [vmem:[%s1223 + $0xe38] sm:$0xff]
        %v1740 = vld [vmem:[%s1223 + $0xe40] sm:$0xff]
        %v1741 = vld [vmem:[%s1223 + $0xe48] sm:$0xff]
        %v1742 = vld [vmem:[%s1223 + $0xe50] sm:$0xff]
        %v1743 = vld [vmem:[%s1223 + $0xe58] sm:$0xff]
        %v1744 = vld [vmem:[%s1223 + $0xe60] sm:$0xff]
        %v1745 = vld [vmem:[%s1223 + $0xe68] sm:$0xff]
        %v1746 = vld [vmem:[%s1223 + $0xe70] sm:$0xff]
        %v1747 = vld [vmem:[%s1223 + $0xe78] sm:$0xff]
        %v1748 = vld [vmem:[%s1223 + $0xe80] sm:$0xff]
        %v1749 = vld [vmem:[%s1223 + $0xe88] sm:$0xff]
        %v1750 = vld [vmem:[%s1223 + $0xe90] sm:$0xff]
        %v1751 = vld [vmem:[%s1223 + $0xe98] sm:$0xff]
        %v1752 = vld [vmem:[%s1223 + $0xea0] sm:$0xff]
        %v1753 = vld [vmem:[%s1223 + $0xea8] sm:$0xff]
        %v1754 = vld [vmem:[%s1223 + $0xeb0] sm:$0xff]
        %v1755 = vld [vmem:[%s1223 + $0xeb8] sm:$0xff]
        %v1756 = vld [vmem:[%s1223 + $0xec0] sm:$0xff]
        %v1757 = vld [vmem:[%s1223 + $0xec8] sm:$0xff]
        %v1758 = vld [vmem:[%s1223 + $0xed0] sm:$0xff]
        %v1759 = vld [vmem:[%s1223 + $0xed8] sm:$0xff]
        %v1760 = vld [vmem:[%s1223 + $0xee0] sm:$0xff]
        %v1761 = vld [vmem:[%s1223 + $0xee8] sm:$0xff]
        %v1762 = vld [vmem:[%s1223 + $0xef0] sm:$0xff]
        %v1763 = vld [vmem:[%s1223 + $0xef8] sm:$0xff]
        %v1764 = vld [vmem:[%s1223 + $0xf00] sm:$0xff]
        %v1765 = vld [vmem:[%s1223 + $0xf08] sm:$0xff]
        %v1766 = vld [vmem:[%s1223 + $0xf10] sm:$0xff]
        %v1767 = vld [vmem:[%s1223 + $0xf18] sm:$0xff]
        %v1768 = vld [vmem:[%s1223 + $0xf20] sm:$0xff]
        %v1769 = vld [vmem:[%s1223 + $0xf28] sm:$0xff]
        %v1770 = vld [vmem:[%s1223 + $0xf30] sm:$0xff]
        %v1771 = vld [vmem:[%s1223 + $0xf38] sm:$0xff]
        %v1772 = vld [vmem:[%s1223 + $0xf40] sm:$0xff]
        %v1773 = vld [vmem:[%s1223 + $0xf48] sm:$0xff]
        %v1774 = vld [vmem:[%s1223 + $0xf50] sm:$0xff]
        %v1775 = vld [vmem:[%s1223 + $0xf58] sm:$0xff]
        %v1776 = vld [vmem:[%s1223 + $0xf60] sm:$0xff]
        %v1777 = vld [vmem:[%s1223 + $0xf68] sm:$0xff]
        %v1778 = vld [vmem:[%s1223 + $0xf70] sm:$0xff]
        %v1779 = vld [vmem:[%s1223 + $0xf78] sm:$0xff]
        %v1780 = vld [vmem:[%s1223 + $0xf80] sm:$0xff]
        %v1781 = vld [vmem:[%s1223 + $0xf88] sm:$0xff]
        %v1782 = vld [vmem:[%s1223 + $0xf90] sm:$0xff]
        %v1783 = vld [vmem:[%s1223 + $0xf98] sm:$0xff]
        %v1784 = vld [vmem:[%s1223 + $0xfa0] sm:$0xff]
        %v1785 = vld [vmem:[%s1223 + $0xfa8] sm:$0xff]
        %v1786 = vld [vmem:[%s1223 + $0xfb0] sm:$0xff]
        %v1787 = vld [vmem:[%s1223 + $0xfb8] sm:$0xff]
        %v1788 = vld [vmem:[%s1223 + $0xfc0] sm:$0xff]
        %v1789 = vld [vmem:[%s1223 + $0xfc8] sm:$0xff]
        %v1790 = vld [vmem:[%s1223 + $0xfd0] sm:$0xff]
        %v1791 = vld [vmem:[%s1223 + $0xfd8] sm:$0xff]
        %v1792 = vld [vmem:[%s1223 + $0xfe0] sm:$0xff]
        %v1793 = vld [vmem:[%s1223 + $0xfe8] sm:$0xff]
        %v1794 = vld [vmem:[%s1223 + $0xff0] sm:$0xff]
        %v1795 = vld [vmem:[%s1223 + $0xff8] sm:$0xff]
        %v1796 = vld [vmem:[%s1264] sm:$0xf]
        %v1798 = vlaneseq
        %v1799 = vshrl.u32 %v1798, 7
        %v1800 = vsub.s32 0, %v1799
        %v1801 = vrot.slane %v1796, %v1800
        %v1802 = vlaneseq
        %v1803 = vshrl.u32 %v1802, 7
        %v1804 = vsub.s32 1, %v1803
        %v1805 = vrot.slane %v1796, %v1804
        %v1806 = vlaneseq
        %v1807 = vshrl.u32 %v1806, 7
        %v1808 = vsub.s32 2, %v1807
        %v1809 = vrot.slane %v1796, %v1808
        %v1810 = vlaneseq
        %v1811 = vshrl.u32 %v1810, 7
        %v1812 = vsub.s32 3, %v1811
        %v1813 = vrot.slane %v1796, %v1812
        %v1834 = vunpack.c.l.b16 %v1268
        %v1835 = vunpack.c.h.b16 %v1268
        %v1836 = vunpack.c.l.b16 %v1269
        %v1837 = vunpack.c.h.b16 %v1269
        %v1838 = vunpack.c.l.b16 %v1270
        %v1839 = vunpack.c.h.b16 %v1270
        %v1840 = vunpack.c.l.b16 %v1271
        %v1841 = vunpack.c.h.b16 %v1271
        %v1842 = vunpack.c.l.b16 %v1272
        %v1843 = vunpack.c.h.b16 %v1272
        %v1844 = vunpack.c.l.b16 %v1273
        %v1845 = vunpack.c.h.b16 %v1273
        %v1846 = vunpack.c.l.b16 %v1274
        %v1847 = vunpack.c.h.b16 %v1274
        %v1848 = vunpack.c.l.b16 %v1275
        %v1849 = vunpack.c.h.b16 %v1275
        %v1850 = vunpack.c.l.b16 %v1276
        %v1851 = vunpack.c.h.b16 %v1276
        %v1852 = vunpack.c.l.b16 %v1277
        %v1853 = vunpack.c.h.b16 %v1277
        %v1854 = vunpack.c.l.b16 %v1278
        %v1855 = vunpack.c.h.b16 %v1278
        %v1856 = vunpack.c.l.b16 %v1279
        %v1857 = vunpack.c.h.b16 %v1279
        %v1858 = vunpack.c.l.b16 %v1280
        %v1859 = vunpack.c.h.b16 %v1280
        %v1860 = vunpack.c.l.b16 %v1281
        %v1861 = vunpack.c.h.b16 %v1281
        %v1862 = vunpack.c.l.b16 %v1282
        %v1863 = vunpack.c.h.b16 %v1282
        %v1864 = vunpack.c.l.b16 %v1283
        %v1865 = vunpack.c.h.b16 %v1283
        %v1866 = vpack.c.b16 %v1850, %v1834
        %v1867 = vpack.c.b16 %v1851, %v1835
        %v1868 = vpack.c.b16 %v1852, %v1836
        %v1869 = vpack.c.b16 %v1853, %v1837
        %v1870 = vpack.c.b16 %v1854, %v1838
        %v1871 = vpack.c.b16 %v1855, %v1839
        %v1872 = vpack.c.b16 %v1856, %v1840
        %v1873 = vpack.c.b16 %v1857, %v1841
        %v1874 = vpack.c.b16 %v1858, %v1842
        %v1875 = vpack.c.b16 %v1859, %v1843
        %v1876 = vpack.c.b16 %v1860, %v1844
        %v1877 = vpack.c.b16 %v1861, %v1845
        %v1878 = vpack.c.b16 %v1862, %v1846
        %v1879 = vpack.c.b16 %v1863, %v1847
        %v1880 = vpack.c.b16 %v1864, %v1848
        %v1881 = vpack.c.b16 %v1865, %v1849
        %v2410 = vunpack.c.l.b16 %v1284
        %v2411 = vunpack.c.h.b16 %v1284
        %v2412 = vunpack.c.l.b16 %v1285
        %v2413 = vunpack.c.h.b16 %v1285
        %v2414 = vunpack.c.l.b16 %v1286
        %v2415 = vunpack.c.h.b16 %v1286
        %v2416 = vunpack.c.l.b16 %v1287
        %v2417 = vunpack.c.h.b16 %v1287
        %v2418 = vunpack.c.l.b16 %v1288
        %v2419 = vunpack.c.h.b16 %v1288
        %v2420 = vunpack.c.l.b16 %v1289
        %v2421 = vunpack.c.h.b16 %v1289
        %v2422 = vunpack.c.l.b16 %v1290
        %v2423 = vunpack.c.h.b16 %v1290
        %v2424 = vunpack.c.l.b16 %v1291
        %v2425 = vunpack.c.h.b16 %v1291
        %v2426 = vunpack.c.l.b16 %v1292
        %v2427 = vunpack.c.h.b16 %v1292
        %v2428 = vunpack.c.l.b16 %v1293
        %v2429 = vunpack.c.h.b16 %v1293
        %v2430 = vunpack.c.l.b16 %v1294
        %v2431 = vunpack.c.h.b16 %v1294
        %v2432 = vunpack.c.l.b16 %v1295
        %v2433 = vunpack.c.h.b16 %v1295
        %v2434 = vunpack.c.l.b16 %v1296
        %v2435 = vunpack.c.h.b16 %v1296
        %v2436 = vunpack.c.l.b16 %v1297
        %v2437 = vunpack.c.h.b16 %v1297
        %v2438 = vunpack.c.l.b16 %v1298
        %v2439 = vunpack.c.h.b16 %v1298
        %v2440 = vunpack.c.l.b16 %v1299
        %v2441 = vunpack.c.h.b16 %v1299
        %v2442 = vunpack.c.l.b16 %v1300
        %v2443 = vunpack.c.h.b16 %v1300
        %v2444 = vunpack.c.l.b16 %v1301
        %v2445 = vunpack.c.h.b16 %v1301
        %v2446 = vunpack.c.l.b16 %v1302
        %v2447 = vunpack.c.h.b16 %v1302
        %v2448 = vunpack.c.l.b16 %v1303
        %v2449 = vunpack.c.h.b16 %v1303
        %v2450 = vunpack.c.l.b16 %v1304
        %v2451 = vunpack.c.h.b16 %v1304
        %v2452 = vunpack.c.l.b16 %v1305
        %v2453 = vunpack.c.h.b16 %v1305
        %v2454 = vunpack.c.l.b16 %v1306
        %v2455 = vunpack.c.h.b16 %v1306
        %v2456 = vunpack.c.l.b16 %v1307
        %v2457 = vunpack.c.h.b16 %v1307
        %v2458 = vunpack.c.l.b16 %v1308
        %v2459 = vunpack.c.h.b16 %v1308
        %v2460 = vunpack.c.l.b16 %v1309
        %v2461 = vunpack.c.h.b16 %v1309
        %v2462 = vunpack.c.l.b16 %v1310
        %v2463 = vunpack.c.h.b16 %v1310
        %v2464 = vunpack.c.l.b16 %v1311
        %v2465 = vunpack.c.h.b16 %v1311
        %v2466 = vunpack.c.l.b16 %v1312
        %v2467 = vunpack.c.h.b16 %v1312
        %v2468 = vunpack.c.l.b16 %v1313
        %v2469 = vunpack.c.h.b16 %v1313
        %v2470 = vunpack.c.l.b16 %v1314
        %v2471 = vunpack.c.h.b16 %v1314
        %v2472 = vunpack.c.l.b16 %v1315
        %v2473 = vunpack.c.h.b16 %v1315
        %v2474 = vunpack.c.l.b16 %v1316
        %v2475 = vunpack.c.h.b16 %v1316
        %v2476 = vunpack.c.l.b16 %v1317
        %v2477 = vunpack.c.h.b16 %v1317
        %v2478 = vunpack.c.l.b16 %v1318
        %v2479 = vunpack.c.h.b16 %v1318
        %v2480 = vunpack.c.l.b16 %v1319
        %v2481 = vunpack.c.h.b16 %v1319
        %v2482 = vunpack.c.l.b16 %v1320
        %v2483 = vunpack.c.h.b16 %v1320
        %v2484 = vunpack.c.l.b16 %v1321
        %v2485 = vunpack.c.h.b16 %v1321
        %v2486 = vunpack.c.l.b16 %v1322
        %v2487 = vunpack.c.h.b16 %v1322
        %v2488 = vunpack.c.l.b16 %v1323
        %v2489 = vunpack.c.h.b16 %v1323
        %v2490 = vunpack.c.l.b16 %v1324
        %v2491 = vunpack.c.h.b16 %v1324
        %v2492 = vunpack.c.l.b16 %v1325
        %v2493 = vunpack.c.h.b16 %v1325
        %v2494 = vunpack.c.l.b16 %v1326
        %v2495 = vunpack.c.h.b16 %v1326
        %v2496 = vunpack.c.l.b16 %v1327
        %v2497 = vunpack.c.h.b16 %v1327
        %v2498 = vunpack.c.l.b16 %v1328
        %v2499 = vunpack.c.h.b16 %v1328
        %v2500 = vunpack.c.l.b16 %v1329
        %v2501 = vunpack.c.h.b16 %v1329
        %v2502 = vunpack.c.l.b16 %v1330
        %v2503 = vunpack.c.h.b16 %v1330
        %v2504 = vunpack.c.l.b16 %v1331
        %v2505 = vunpack.c.h.b16 %v1331
        %v2506 = vunpack.c.l.b16 %v1332
        %v2507 = vunpack.c.h.b16 %v1332
        %v2508 = vunpack.c.l.b16 %v1333
        %v2509 = vunpack.c.h.b16 %v1333
        %v2510 = vunpack.c.l.b16 %v1334
        %v2511 = vunpack.c.h.b16 %v1334
        %v2512 = vunpack.c.l.b16 %v1335
        %v2513 = vunpack.c.h.b16 %v1335
        %v2514 = vunpack.c.l.b16 %v1336
        %v2515 = vunpack.c.h.b16 %v1336
        %v2516 = vunpack.c.l.b16 %v1337
        %v2517 = vunpack.c.h.b16 %v1337
        %v2518 = vunpack.c.l.b16 %v1338
        %v2519 = vunpack.c.h.b16 %v1338
        %v2520 = vunpack.c.l.b16 %v1339
        %v2521 = vunpack.c.h.b16 %v1339
        %v2522 = vunpack.c.l.b16 %v1340
        %v2523 = vunpack.c.h.b16 %v1340
        %v2524 = vunpack.c.l.b16 %v1341
        %v2525 = vunpack.c.h.b16 %v1341
        %v2526 = vunpack.c.l.b16 %v1342
        %v2527 = vunpack.c.h.b16 %v1342
        %v2528 = vunpack.c.l.b16 %v1343
        %v2529 = vunpack.c.h.b16 %v1343
        %v2530 = vunpack.c.l.b16 %v1344
        %v2531 = vunpack.c.h.b16 %v1344
        %v2532 = vunpack.c.l.b16 %v1345
        %v2533 = vunpack.c.h.b16 %v1345
        %v2534 = vunpack.c.l.b16 %v1346
        %v2535 = vunpack.c.h.b16 %v1346
        %v2536 = vunpack.c.l.b16 %v1347
        %v2537 = vunpack.c.h.b16 %v1347
        %v2538 = vunpack.c.l.b16 %v1348
        %v2539 = vunpack.c.h.b16 %v1348
        %v2540 = vunpack.c.l.b16 %v1349
        %v2541 = vunpack.c.h.b16 %v1349
        %v2542 = vunpack.c.l.b16 %v1350
        %v2543 = vunpack.c.h.b16 %v1350
        %v2544 = vunpack.c.l.b16 %v1351
        %v2545 = vunpack.c.h.b16 %v1351
        %v2546 = vunpack.c.l.b16 %v1352
        %v2547 = vunpack.c.h.b16 %v1352
        %v2548 = vunpack.c.l.b16 %v1353
        %v2549 = vunpack.c.h.b16 %v1353
        %v2550 = vunpack.c.l.b16 %v1354
        %v2551 = vunpack.c.h.b16 %v1354
        %v2552 = vunpack.c.l.b16 %v1355
        %v2553 = vunpack.c.h.b16 %v1355
        %v2554 = vunpack.c.l.b16 %v1356
        %v2555 = vunpack.c.h.b16 %v1356
        %v2556 = vunpack.c.l.b16 %v1357
        %v2557 = vunpack.c.h.b16 %v1357
        %v2558 = vunpack.c.l.b16 %v1358
        %v2559 = vunpack.c.h.b16 %v1358
        %v2560 = vunpack.c.l.b16 %v1359
        %v2561 = vunpack.c.h.b16 %v1359
        %v2562 = vunpack.c.l.b16 %v1360
        %v2563 = vunpack.c.h.b16 %v1360
        %v2564 = vunpack.c.l.b16 %v1361
        %v2565 = vunpack.c.h.b16 %v1361
        %v2566 = vunpack.c.l.b16 %v1362
        %v2567 = vunpack.c.h.b16 %v1362
        %v2568 = vunpack.c.l.b16 %v1363
        %v2569 = vunpack.c.h.b16 %v1363
        %v2570 = vunpack.c.l.b16 %v1364
        %v2571 = vunpack.c.h.b16 %v1364
        %v2572 = vunpack.c.l.b16 %v1365
        %v2573 = vunpack.c.h.b16 %v1365
        %v2574 = vunpack.c.l.b16 %v1366
        %v2575 = vunpack.c.h.b16 %v1366
        %v2576 = vunpack.c.l.b16 %v1367
        %v2577 = vunpack.c.h.b16 %v1367
        %v2578 = vunpack.c.l.b16 %v1368
        %v2579 = vunpack.c.h.b16 %v1368
        %v2580 = vunpack.c.l.b16 %v1369
        %v2581 = vunpack.c.h.b16 %v1369
        %v2582 = vunpack.c.l.b16 %v1370
        %v2583 = vunpack.c.h.b16 %v1370
        %v2584 = vunpack.c.l.b16 %v1371
        %v2585 = vunpack.c.h.b16 %v1371
        %v2586 = vunpack.c.l.b16 %v1372
        %v2587 = vunpack.c.h.b16 %v1372
        %v2588 = vunpack.c.l.b16 %v1373
        %v2589 = vunpack.c.h.b16 %v1373
        %v2590 = vunpack.c.l.b16 %v1374
        %v2591 = vunpack.c.h.b16 %v1374
        %v2592 = vunpack.c.l.b16 %v1375
        %v2593 = vunpack.c.h.b16 %v1375
        %v2594 = vunpack.c.l.b16 %v1376
        %v2595 = vunpack.c.h.b16 %v1376
        %v2596 = vunpack.c.l.b16 %v1377
        %v2597 = vunpack.c.h.b16 %v1377
        %v2598 = vunpack.c.l.b16 %v1378
        %v2599 = vunpack.c.h.b16 %v1378
        %v2600 = vunpack.c.l.b16 %v1379
        %v2601 = vunpack.c.h.b16 %v1379
        %v2602 = vunpack.c.l.b16 %v1380
        %v2603 = vunpack.c.h.b16 %v1380
        %v2604 = vunpack.c.l.b16 %v1381
        %v2605 = vunpack.c.h.b16 %v1381
        %v2606 = vunpack.c.l.b16 %v1382
        %v2607 = vunpack.c.h.b16 %v1382
        %v2608 = vunpack.c.l.b16 %v1383
        %v2609 = vunpack.c.h.b16 %v1383
        %v2610 = vunpack.c.l.b16 %v1384
        %v2611 = vunpack.c.h.b16 %v1384
        %v2612 = vunpack.c.l.b16 %v1385
        %v2613 = vunpack.c.h.b16 %v1385
        %v2614 = vunpack.c.l.b16 %v1386
        %v2615 = vunpack.c.h.b16 %v1386
        %v2616 = vunpack.c.l.b16 %v1387
        %v2617 = vunpack.c.h.b16 %v1387
        %v2618 = vunpack.c.l.b16 %v1388
        %v2619 = vunpack.c.h.b16 %v1388
        %v2620 = vunpack.c.l.b16 %v1389
        %v2621 = vunpack.c.h.b16 %v1389
        %v2622 = vunpack.c.l.b16 %v1390
        %v2623 = vunpack.c.h.b16 %v1390
        %v2624 = vunpack.c.l.b16 %v1391
        %v2625 = vunpack.c.h.b16 %v1391
        %v2626 = vunpack.c.l.b16 %v1392
        %v2627 = vunpack.c.h.b16 %v1392
        %v2628 = vunpack.c.l.b16 %v1393
        %v2629 = vunpack.c.h.b16 %v1393
        %v2630 = vunpack.c.l.b16 %v1394
        %v2631 = vunpack.c.h.b16 %v1394
        %v2632 = vunpack.c.l.b16 %v1395
        %v2633 = vunpack.c.h.b16 %v1395
        %v2634 = vunpack.c.l.b16 %v1396
        %v2635 = vunpack.c.h.b16 %v1396
        %v2636 = vunpack.c.l.b16 %v1397
        %v2637 = vunpack.c.h.b16 %v1397
        %v2638 = vunpack.c.l.b16 %v1398
        %v2639 = vunpack.c.h.b16 %v1398
        %v2640 = vunpack.c.l.b16 %v1399
        %v2641 = vunpack.c.h.b16 %v1399
        %v2642 = vunpack.c.l.b16 %v1400
        %v2643 = vunpack.c.h.b16 %v1400
        %v2644 = vunpack.c.l.b16 %v1401
        %v2645 = vunpack.c.h.b16 %v1401
        %v2646 = vunpack.c.l.b16 %v1402
        %v2647 = vunpack.c.h.b16 %v1402
        %v2648 = vunpack.c.l.b16 %v1403
        %v2649 = vunpack.c.h.b16 %v1403
        %v2650 = vunpack.c.l.b16 %v1404
        %v2651 = vunpack.c.h.b16 %v1404
        %v2652 = vunpack.c.l.b16 %v1405
        %v2653 = vunpack.c.h.b16 %v1405
        %v2654 = vunpack.c.l.b16 %v1406
        %v2655 = vunpack.c.h.b16 %v1406
        %v2656 = vunpack.c.l.b16 %v1407
        %v2657 = vunpack.c.h.b16 %v1407
        %v2658 = vunpack.c.l.b16 %v1408
        %v2659 = vunpack.c.h.b16 %v1408
        %v2660 = vunpack.c.l.b16 %v1409
        %v2661 = vunpack.c.h.b16 %v1409
        %v2662 = vunpack.c.l.b16 %v1410
        %v2663 = vunpack.c.h.b16 %v1410
        %v2664 = vunpack.c.l.b16 %v1411
        %v2665 = vunpack.c.h.b16 %v1411
        %v2666 = vunpack.c.l.b16 %v1412
        %v2667 = vunpack.c.h.b16 %v1412
        %v2668 = vunpack.c.l.b16 %v1413
        %v2669 = vunpack.c.h.b16 %v1413
        %v2670 = vunpack.c.l.b16 %v1414
        %v2671 = vunpack.c.h.b16 %v1414
        %v2672 = vunpack.c.l.b16 %v1415
        %v2673 = vunpack.c.h.b16 %v1415
        %v2674 = vunpack.c.l.b16 %v1416
        %v2675 = vunpack.c.h.b16 %v1416
        %v2676 = vunpack.c.l.b16 %v1417
        %v2677 = vunpack.c.h.b16 %v1417
        %v2678 = vunpack.c.l.b16 %v1418
        %v2679 = vunpack.c.h.b16 %v1418
        %v2680 = vunpack.c.l.b16 %v1419
        %v2681 = vunpack.c.h.b16 %v1419
        %v2682 = vunpack.c.l.b16 %v1420
        %v2683 = vunpack.c.h.b16 %v1420
        %v2684 = vunpack.c.l.b16 %v1421
        %v2685 = vunpack.c.h.b16 %v1421
        %v2686 = vunpack.c.l.b16 %v1422
        %v2687 = vunpack.c.h.b16 %v1422
        %v2688 = vunpack.c.l.b16 %v1423
        %v2689 = vunpack.c.h.b16 %v1423
        %v2690 = vunpack.c.l.b16 %v1424
        %v2691 = vunpack.c.h.b16 %v1424
        %v2692 = vunpack.c.l.b16 %v1425
        %v2693 = vunpack.c.h.b16 %v1425
        %v2694 = vunpack.c.l.b16 %v1426
        %v2695 = vunpack.c.h.b16 %v1426
        %v2696 = vunpack.c.l.b16 %v1427
        %v2697 = vunpack.c.h.b16 %v1427
        %v2698 = vunpack.c.l.b16 %v1428
        %v2699 = vunpack.c.h.b16 %v1428
        %v2700 = vunpack.c.l.b16 %v1429
        %v2701 = vunpack.c.h.b16 %v1429
        %v2702 = vunpack.c.l.b16 %v1430
        %v2703 = vunpack.c.h.b16 %v1430
        %v2704 = vunpack.c.l.b16 %v1431
        %v2705 = vunpack.c.h.b16 %v1431
        %v2706 = vunpack.c.l.b16 %v1432
        %v2707 = vunpack.c.h.b16 %v1432
        %v2708 = vunpack.c.l.b16 %v1433
        %v2709 = vunpack.c.h.b16 %v1433
        %v2710 = vunpack.c.l.b16 %v1434
        %v2711 = vunpack.c.h.b16 %v1434
        %v2712 = vunpack.c.l.b16 %v1435
        %v2713 = vunpack.c.h.b16 %v1435
        %v2714 = vunpack.c.l.b16 %v1436
        %v2715 = vunpack.c.h.b16 %v1436
        %v2716 = vunpack.c.l.b16 %v1437
        %v2717 = vunpack.c.h.b16 %v1437
        %v2718 = vunpack.c.l.b16 %v1438
        %v2719 = vunpack.c.h.b16 %v1438
        %v2720 = vunpack.c.l.b16 %v1439
        %v2721 = vunpack.c.h.b16 %v1439
        %v2722 = vunpack.c.l.b16 %v1440
        %v2723 = vunpack.c.h.b16 %v1440
        %v2724 = vunpack.c.l.b16 %v1441
        %v2725 = vunpack.c.h.b16 %v1441
        %v2726 = vunpack.c.l.b16 %v1442
        %v2727 = vunpack.c.h.b16 %v1442
        %v2728 = vunpack.c.l.b16 %v1443
        %v2729 = vunpack.c.h.b16 %v1443
        %v2730 = vunpack.c.l.b16 %v1444
        %v2731 = vunpack.c.h.b16 %v1444
        %v2732 = vunpack.c.l.b16 %v1445
        %v2733 = vunpack.c.h.b16 %v1445
        %v2734 = vunpack.c.l.b16 %v1446
        %v2735 = vunpack.c.h.b16 %v1446
        %v2736 = vunpack.c.l.b16 %v1447
        %v2737 = vunpack.c.h.b16 %v1447
        %v2738 = vunpack.c.l.b16 %v1448
        %v2739 = vunpack.c.h.b16 %v1448
        %v2740 = vunpack.c.l.b16 %v1449
        %v2741 = vunpack.c.h.b16 %v1449
        %v2742 = vunpack.c.l.b16 %v1450
        %v2743 = vunpack.c.h.b16 %v1450
        %v2744 = vunpack.c.l.b16 %v1451
        %v2745 = vunpack.c.h.b16 %v1451
        %v2746 = vunpack.c.l.b16 %v1452
        %v2747 = vunpack.c.h.b16 %v1452
        %v2748 = vunpack.c.l.b16 %v1453
        %v2749 = vunpack.c.h.b16 %v1453
        %v2750 = vunpack.c.l.b16 %v1454
        %v2751 = vunpack.c.h.b16 %v1454
        %v2752 = vunpack.c.l.b16 %v1455
        %v2753 = vunpack.c.h.b16 %v1455
        %v2754 = vunpack.c.l.b16 %v1456
        %v2755 = vunpack.c.h.b16 %v1456
        %v2756 = vunpack.c.l.b16 %v1457
        %v2757 = vunpack.c.h.b16 %v1457
        %v2758 = vunpack.c.l.b16 %v1458
        %v2759 = vunpack.c.h.b16 %v1458
        %v2760 = vunpack.c.l.b16 %v1459
        %v2761 = vunpack.c.h.b16 %v1459
        %v2762 = vunpack.c.l.b16 %v1460
        %v2763 = vunpack.c.h.b16 %v1460
        %v2764 = vunpack.c.l.b16 %v1461
        %v2765 = vunpack.c.h.b16 %v1461
        %v2766 = vunpack.c.l.b16 %v1462
        %v2767 = vunpack.c.h.b16 %v1462
        %v2768 = vunpack.c.l.b16 %v1463
        %v2769 = vunpack.c.h.b16 %v1463
        %v2770 = vunpack.c.l.b16 %v1464
        %v2771 = vunpack.c.h.b16 %v1464
        %v2772 = vunpack.c.l.b16 %v1465
        %v2773 = vunpack.c.h.b16 %v1465
        %v2774 = vunpack.c.l.b16 %v1466
        %v2775 = vunpack.c.h.b16 %v1466
        %v2776 = vunpack.c.l.b16 %v1467
        %v2777 = vunpack.c.h.b16 %v1467
        %v2778 = vunpack.c.l.b16 %v1468
        %v2779 = vunpack.c.h.b16 %v1468
        %v2780 = vunpack.c.l.b16 %v1469
        %v2781 = vunpack.c.h.b16 %v1469
        %v2782 = vunpack.c.l.b16 %v1470
        %v2783 = vunpack.c.h.b16 %v1470
        %v2784 = vunpack.c.l.b16 %v1471
        %v2785 = vunpack.c.h.b16 %v1471
        %v2786 = vunpack.c.l.b16 %v1472
        %v2787 = vunpack.c.h.b16 %v1472
        %v2788 = vunpack.c.l.b16 %v1473
        %v2789 = vunpack.c.h.b16 %v1473
        %v2790 = vunpack.c.l.b16 %v1474
        %v2791 = vunpack.c.h.b16 %v1474
        %v2792 = vunpack.c.l.b16 %v1475
        %v2793 = vunpack.c.h.b16 %v1475
        %v2794 = vunpack.c.l.b16 %v1476
        %v2795 = vunpack.c.h.b16 %v1476
        %v2796 = vunpack.c.l.b16 %v1477
        %v2797 = vunpack.c.h.b16 %v1477
        %v2798 = vunpack.c.l.b16 %v1478
        %v2799 = vunpack.c.h.b16 %v1478
        %v2800 = vunpack.c.l.b16 %v1479
        %v2801 = vunpack.c.h.b16 %v1479
        %v2802 = vunpack.c.l.b16 %v1480
        %v2803 = vunpack.c.h.b16 %v1480
        %v2804 = vunpack.c.l.b16 %v1481
        %v2805 = vunpack.c.h.b16 %v1481
        %v2806 = vunpack.c.l.b16 %v1482
        %v2807 = vunpack.c.h.b16 %v1482
        %v2808 = vunpack.c.l.b16 %v1483
        %v2809 = vunpack.c.h.b16 %v1483
        %v2810 = vunpack.c.l.b16 %v1484
        %v2811 = vunpack.c.h.b16 %v1484
        %v2812 = vunpack.c.l.b16 %v1485
        %v2813 = vunpack.c.h.b16 %v1485
        %v2814 = vunpack.c.l.b16 %v1486
        %v2815 = vunpack.c.h.b16 %v1486
        %v2816 = vunpack.c.l.b16 %v1487
        %v2817 = vunpack.c.h.b16 %v1487
        %v2818 = vunpack.c.l.b16 %v1488
        %v2819 = vunpack.c.h.b16 %v1488
        %v2820 = vunpack.c.l.b16 %v1489
        %v2821 = vunpack.c.h.b16 %v1489
        %v2822 = vunpack.c.l.b16 %v1490
        %v2823 = vunpack.c.h.b16 %v1490
        %v2824 = vunpack.c.l.b16 %v1491
        %v2825 = vunpack.c.h.b16 %v1491
        %v2826 = vunpack.c.l.b16 %v1492
        %v2827 = vunpack.c.h.b16 %v1492
        %v2828 = vunpack.c.l.b16 %v1493
        %v2829 = vunpack.c.h.b16 %v1493
        %v2830 = vunpack.c.l.b16 %v1494
        %v2831 = vunpack.c.h.b16 %v1494
        %v2832 = vunpack.c.l.b16 %v1495
        %v2833 = vunpack.c.h.b16 %v1495
        %v2834 = vunpack.c.l.b16 %v1496
        %v2835 = vunpack.c.h.b16 %v1496
        %v2836 = vunpack.c.l.b16 %v1497
        %v2837 = vunpack.c.h.b16 %v1497
        %v2838 = vunpack.c.l.b16 %v1498
        %v2839 = vunpack.c.h.b16 %v1498
        %v2840 = vunpack.c.l.b16 %v1499
        %v2841 = vunpack.c.h.b16 %v1499
        %v2842 = vunpack.c.l.b16 %v1500
        %v2843 = vunpack.c.h.b16 %v1500
        %v2844 = vunpack.c.l.b16 %v1501
        %v2845 = vunpack.c.h.b16 %v1501
        %v2846 = vunpack.c.l.b16 %v1502
        %v2847 = vunpack.c.h.b16 %v1502
        %v2848 = vunpack.c.l.b16 %v1503
        %v2849 = vunpack.c.h.b16 %v1503
        %v2850 = vunpack.c.l.b16 %v1504
        %v2851 = vunpack.c.h.b16 %v1504
        %v2852 = vunpack.c.l.b16 %v1505
        %v2853 = vunpack.c.h.b16 %v1505
        %v2854 = vunpack.c.l.b16 %v1506
        %v2855 = vunpack.c.h.b16 %v1506
        %v2856 = vunpack.c.l.b16 %v1507
        %v2857 = vunpack.c.h.b16 %v1507
        %v2858 = vunpack.c.l.b16 %v1508
        %v2859 = vunpack.c.h.b16 %v1508
        %v2860 = vunpack.c.l.b16 %v1509
        %v2861 = vunpack.c.h.b16 %v1509
        %v2862 = vunpack.c.l.b16 %v1510
        %v2863 = vunpack.c.h.b16 %v1510
        %v2864 = vunpack.c.l.b16 %v1511
        %v2865 = vunpack.c.h.b16 %v1511
        %v2866 = vunpack.c.l.b16 %v1512
        %v2867 = vunpack.c.h.b16 %v1512
        %v2868 = vunpack.c.l.b16 %v1513
        %v2869 = vunpack.c.h.b16 %v1513
        %v2870 = vunpack.c.l.b16 %v1514
        %v2871 = vunpack.c.h.b16 %v1514
        %v2872 = vunpack.c.l.b16 %v1515
        %v2873 = vunpack.c.h.b16 %v1515
        %v2874 = vunpack.c.l.b16 %v1516
        %v2875 = vunpack.c.h.b16 %v1516
        %v2876 = vunpack.c.l.b16 %v1517
        %v2877 = vunpack.c.h.b16 %v1517
        %v2878 = vunpack.c.l.b16 %v1518
        %v2879 = vunpack.c.h.b16 %v1518
        %v2880 = vunpack.c.l.b16 %v1519
        %v2881 = vunpack.c.h.b16 %v1519
        %v2882 = vunpack.c.l.b16 %v1520
        %v2883 = vunpack.c.h.b16 %v1520
        %v2884 = vunpack.c.l.b16 %v1521
        %v2885 = vunpack.c.h.b16 %v1521
        %v2886 = vunpack.c.l.b16 %v1522
        %v2887 = vunpack.c.h.b16 %v1522
        %v2888 = vunpack.c.l.b16 %v1523
        %v2889 = vunpack.c.h.b16 %v1523
        %v2890 = vunpack.c.l.b16 %v1524
        %v2891 = vunpack.c.h.b16 %v1524
        %v2892 = vunpack.c.l.b16 %v1525
        %v2893 = vunpack.c.h.b16 %v1525
        %v2894 = vunpack.c.l.b16 %v1526
        %v2895 = vunpack.c.h.b16 %v1526
        %v2896 = vunpack.c.l.b16 %v1527
        %v2897 = vunpack.c.h.b16 %v1527
        %v2898 = vunpack.c.l.b16 %v1528
        %v2899 = vunpack.c.h.b16 %v1528
        %v2900 = vunpack.c.l.b16 %v1529
        %v2901 = vunpack.c.h.b16 %v1529
        %v2902 = vunpack.c.l.b16 %v1530
        %v2903 = vunpack.c.h.b16 %v1530
        %v2904 = vunpack.c.l.b16 %v1531
        %v2905 = vunpack.c.h.b16 %v1531
        %v2906 = vunpack.c.l.b16 %v1532
        %v2907 = vunpack.c.h.b16 %v1532
        %v2908 = vunpack.c.l.b16 %v1533
        %v2909 = vunpack.c.h.b16 %v1533
        %v2910 = vunpack.c.l.b16 %v1534
        %v2911 = vunpack.c.h.b16 %v1534
        %v2912 = vunpack.c.l.b16 %v1535
        %v2913 = vunpack.c.h.b16 %v1535
        %v2914 = vunpack.c.l.b16 %v1536
        %v2915 = vunpack.c.h.b16 %v1536
        %v2916 = vunpack.c.l.b16 %v1537
        %v2917 = vunpack.c.h.b16 %v1537
        %v2918 = vunpack.c.l.b16 %v1538
        %v2919 = vunpack.c.h.b16 %v1538
        %v2920 = vunpack.c.l.b16 %v1539
        %v2921 = vunpack.c.h.b16 %v1539
        %v2922 = vunpack.c.l.b16 %v1540
        %v2923 = vunpack.c.h.b16 %v1540
        %v2924 = vunpack.c.l.b16 %v1541
        %v2925 = vunpack.c.h.b16 %v1541
        %v2926 = vunpack.c.l.b16 %v1542
        %v2927 = vunpack.c.h.b16 %v1542
        %v2928 = vunpack.c.l.b16 %v1543
        %v2929 = vunpack.c.h.b16 %v1543
        %v2930 = vunpack.c.l.b16 %v1544
        %v2931 = vunpack.c.h.b16 %v1544
        %v2932 = vunpack.c.l.b16 %v1545
        %v2933 = vunpack.c.h.b16 %v1545
        %v2934 = vunpack.c.l.b16 %v1546
        %v2935 = vunpack.c.h.b16 %v1546
        %v2936 = vunpack.c.l.b16 %v1547
        %v2937 = vunpack.c.h.b16 %v1547
        %v2938 = vunpack.c.l.b16 %v1548
        %v2939 = vunpack.c.h.b16 %v1548
        %v2940 = vunpack.c.l.b16 %v1549
        %v2941 = vunpack.c.h.b16 %v1549
        %v2942 = vunpack.c.l.b16 %v1550
        %v2943 = vunpack.c.h.b16 %v1550
        %v2944 = vunpack.c.l.b16 %v1551
        %v2945 = vunpack.c.h.b16 %v1551
        %v2946 = vunpack.c.l.b16 %v1552
        %v2947 = vunpack.c.h.b16 %v1552
        %v2948 = vunpack.c.l.b16 %v1553
        %v2949 = vunpack.c.h.b16 %v1553
        %v2950 = vunpack.c.l.b16 %v1554
        %v2951 = vunpack.c.h.b16 %v1554
        %v2952 = vunpack.c.l.b16 %v1555
        %v2953 = vunpack.c.h.b16 %v1555
        %v2954 = vunpack.c.l.b16 %v1556
        %v2955 = vunpack.c.h.b16 %v1556
        %v2956 = vunpack.c.l.b16 %v1557
        %v2957 = vunpack.c.h.b16 %v1557
        %v2958 = vunpack.c.l.b16 %v1558
        %v2959 = vunpack.c.h.b16 %v1558
        %v2960 = vunpack.c.l.b16 %v1559
        %v2961 = vunpack.c.h.b16 %v1559
        %v2962 = vunpack.c.l.b16 %v1560
        %v2963 = vunpack.c.h.b16 %v1560
        %v2964 = vunpack.c.l.b16 %v1561
        %v2965 = vunpack.c.h.b16 %v1561
        %v2966 = vunpack.c.l.b16 %v1562
        %v2967 = vunpack.c.h.b16 %v1562
        %v2968 = vunpack.c.l.b16 %v1563
        %v2969 = vunpack.c.h.b16 %v1563
        %v2970 = vunpack.c.l.b16 %v1564
        %v2971 = vunpack.c.h.b16 %v1564
        %v2972 = vunpack.c.l.b16 %v1565
        %v2973 = vunpack.c.h.b16 %v1565
        %v2974 = vunpack.c.l.b16 %v1566
        %v2975 = vunpack.c.h.b16 %v1566
        %v2976 = vunpack.c.l.b16 %v1567
        %v2977 = vunpack.c.h.b16 %v1567
        %v2978 = vunpack.c.l.b16 %v1568
        %v2979 = vunpack.c.h.b16 %v1568
        %v2980 = vunpack.c.l.b16 %v1569
        %v2981 = vunpack.c.h.b16 %v1569
        %v2982 = vunpack.c.l.b16 %v1570
        %v2983 = vunpack.c.h.b16 %v1570
        %v2984 = vunpack.c.l.b16 %v1571
        %v2985 = vunpack.c.h.b16 %v1571
        %v2986 = vunpack.c.l.b16 %v1572
        %v2987 = vunpack.c.h.b16 %v1572
        %v2988 = vunpack.c.l.b16 %v1573
        %v2989 = vunpack.c.h.b16 %v1573
        %v2990 = vunpack.c.l.b16 %v1574
        %v2991 = vunpack.c.h.b16 %v1574
        %v2992 = vunpack.c.l.b16 %v1575
        %v2993 = vunpack.c.h.b16 %v1575
        %v2994 = vunpack.c.l.b16 %v1576
        %v2995 = vunpack.c.h.b16 %v1576
        %v2996 = vunpack.c.l.b16 %v1577
        %v2997 = vunpack.c.h.b16 %v1577
        %v2998 = vunpack.c.l.b16 %v1578
        %v2999 = vunpack.c.h.b16 %v1578
        %v3000 = vunpack.c.l.b16 %v1579
        %v3001 = vunpack.c.h.b16 %v1579
        %v3002 = vunpack.c.l.b16 %v1580
        %v3003 = vunpack.c.h.b16 %v1580
        %v3004 = vunpack.c.l.b16 %v1581
        %v3005 = vunpack.c.h.b16 %v1581
        %v3006 = vunpack.c.l.b16 %v1582
        %v3007 = vunpack.c.h.b16 %v1582
        %v3008 = vunpack.c.l.b16 %v1583
        %v3009 = vunpack.c.h.b16 %v1583
        %v3010 = vunpack.c.l.b16 %v1584
        %v3011 = vunpack.c.h.b16 %v1584
        %v3012 = vunpack.c.l.b16 %v1585
        %v3013 = vunpack.c.h.b16 %v1585
        %v3014 = vunpack.c.l.b16 %v1586
        %v3015 = vunpack.c.h.b16 %v1586
        %v3016 = vunpack.c.l.b16 %v1587
        %v3017 = vunpack.c.h.b16 %v1587
        %v3018 = vunpack.c.l.b16 %v1588
        %v3019 = vunpack.c.h.b16 %v1588
        %v3020 = vunpack.c.l.b16 %v1589
        %v3021 = vunpack.c.h.b16 %v1589
        %v3022 = vunpack.c.l.b16 %v1590
        %v3023 = vunpack.c.h.b16 %v1590
        %v3024 = vunpack.c.l.b16 %v1591
        %v3025 = vunpack.c.h.b16 %v1591
        %v3026 = vunpack.c.l.b16 %v1592
        %v3027 = vunpack.c.h.b16 %v1592
        %v3028 = vunpack.c.l.b16 %v1593
        %v3029 = vunpack.c.h.b16 %v1593
        %v3030 = vunpack.c.l.b16 %v1594
        %v3031 = vunpack.c.h.b16 %v1594
        %v3032 = vunpack.c.l.b16 %v1595
        %v3033 = vunpack.c.h.b16 %v1595
        %v3034 = vunpack.c.l.b16 %v1596
        %v3035 = vunpack.c.h.b16 %v1596
        %v3036 = vunpack.c.l.b16 %v1597
        %v3037 = vunpack.c.h.b16 %v1597
        %v3038 = vunpack.c.l.b16 %v1598
        %v3039 = vunpack.c.h.b16 %v1598
        %v3040 = vunpack.c.l.b16 %v1599
        %v3041 = vunpack.c.h.b16 %v1599
        %v3042 = vunpack.c.l.b16 %v1600
        %v3043 = vunpack.c.h.b16 %v1600
        %v3044 = vunpack.c.l.b16 %v1601
        %v3045 = vunpack.c.h.b16 %v1601
        %v3046 = vunpack.c.l.b16 %v1602
        %v3047 = vunpack.c.h.b16 %v1602
        %v3048 = vunpack.c.l.b16 %v1603
        %v3049 = vunpack.c.h.b16 %v1603
        %v3050 = vunpack.c.l.b16 %v1604
        %v3051 = vunpack.c.h.b16 %v1604
        %v3052 = vunpack.c.l.b16 %v1605
        %v3053 = vunpack.c.h.b16 %v1605
        %v3054 = vunpack.c.l.b16 %v1606
        %v3055 = vunpack.c.h.b16 %v1606
        %v3056 = vunpack.c.l.b16 %v1607
        %v3057 = vunpack.c.h.b16 %v1607
        %v3058 = vunpack.c.l.b16 %v1608
        %v3059 = vunpack.c.h.b16 %v1608
        %v3060 = vunpack.c.l.b16 %v1609
        %v3061 = vunpack.c.h.b16 %v1609
        %v3062 = vunpack.c.l.b16 %v1610
        %v3063 = vunpack.c.h.b16 %v1610
        %v3064 = vunpack.c.l.b16 %v1611
        %v3065 = vunpack.c.h.b16 %v1611
        %v3066 = vunpack.c.l.b16 %v1612
        %v3067 = vunpack.c.h.b16 %v1612
        %v3068 = vunpack.c.l.b16 %v1613
        %v3069 = vunpack.c.h.b16 %v1613
        %v3070 = vunpack.c.l.b16 %v1614
        %v3071 = vunpack.c.h.b16 %v1614
        %v3072 = vunpack.c.l.b16 %v1615
        %v3073 = vunpack.c.h.b16 %v1615
        %v3074 = vunpack.c.l.b16 %v1616
        %v3075 = vunpack.c.h.b16 %v1616
        %v3076 = vunpack.c.l.b16 %v1617
        %v3077 = vunpack.c.h.b16 %v1617
        %v3078 = vunpack.c.l.b16 %v1618
        %v3079 = vunpack.c.h.b16 %v1618
        %v3080 = vunpack.c.l.b16 %v1619
        %v3081 = vunpack.c.h.b16 %v1619
        %v3082 = vunpack.c.l.b16 %v1620
        %v3083 = vunpack.c.h.b16 %v1620
        %v3084 = vunpack.c.l.b16 %v1621
        %v3085 = vunpack.c.h.b16 %v1621
        %v3086 = vunpack.c.l.b16 %v1622
        %v3087 = vunpack.c.h.b16 %v1622
        %v3088 = vunpack.c.l.b16 %v1623
        %v3089 = vunpack.c.h.b16 %v1623
        %v3090 = vunpack.c.l.b16 %v1624
        %v3091 = vunpack.c.h.b16 %v1624
        %v3092 = vunpack.c.l.b16 %v1625
        %v3093 = vunpack.c.h.b16 %v1625
        %v3094 = vunpack.c.l.b16 %v1626
        %v3095 = vunpack.c.h.b16 %v1626
        %v3096 = vunpack.c.l.b16 %v1627
        %v3097 = vunpack.c.h.b16 %v1627
        %v3098 = vunpack.c.l.b16 %v1628
        %v3099 = vunpack.c.h.b16 %v1628
        %v3100 = vunpack.c.l.b16 %v1629
        %v3101 = vunpack.c.h.b16 %v1629
        %v3102 = vunpack.c.l.b16 %v1630
        %v3103 = vunpack.c.h.b16 %v1630
        %v3104 = vunpack.c.l.b16 %v1631
        %v3105 = vunpack.c.h.b16 %v1631
        %v3106 = vunpack.c.l.b16 %v1632
        %v3107 = vunpack.c.h.b16 %v1632
        %v3108 = vunpack.c.l.b16 %v1633
        %v3109 = vunpack.c.h.b16 %v1633
        %v3110 = vunpack.c.l.b16 %v1634
        %v3111 = vunpack.c.h.b16 %v1634
        %v3112 = vunpack.c.l.b16 %v1635
        %v3113 = vunpack.c.h.b16 %v1635
        %v3114 = vunpack.c.l.b16 %v1636
        %v3115 = vunpack.c.h.b16 %v1636
        %v3116 = vunpack.c.l.b16 %v1637
        %v3117 = vunpack.c.h.b16 %v1637
        %v3118 = vunpack.c.l.b16 %v1638
        %v3119 = vunpack.c.h.b16 %v1638
        %v3120 = vunpack.c.l.b16 %v1639
        %v3121 = vunpack.c.h.b16 %v1639
        %v3122 = vunpack.c.l.b16 %v1640
        %v3123 = vunpack.c.h.b16 %v1640
        %v3124 = vunpack.c.l.b16 %v1641
        %v3125 = vunpack.c.h.b16 %v1641
        %v3126 = vunpack.c.l.b16 %v1642
        %v3127 = vunpack.c.h.b16 %v1642
        %v3128 = vunpack.c.l.b16 %v1643
        %v3129 = vunpack.c.h.b16 %v1643
        %v3130 = vunpack.c.l.b16 %v1644
        %v3131 = vunpack.c.h.b16 %v1644
        %v3132 = vunpack.c.l.b16 %v1645
        %v3133 = vunpack.c.h.b16 %v1645
        %v3134 = vunpack.c.l.b16 %v1646
        %v3135 = vunpack.c.h.b16 %v1646
        %v3136 = vunpack.c.l.b16 %v1647
        %v3137 = vunpack.c.h.b16 %v1647
        %v3138 = vunpack.c.l.b16 %v1648
        %v3139 = vunpack.c.h.b16 %v1648
        %v3140 = vunpack.c.l.b16 %v1649
        %v3141 = vunpack.c.h.b16 %v1649
        %v3142 = vunpack.c.l.b16 %v1650
        %v3143 = vunpack.c.h.b16 %v1650
        %v3144 = vunpack.c.l.b16 %v1651
        %v3145 = vunpack.c.h.b16 %v1651
        %v3146 = vunpack.c.l.b16 %v1652
        %v3147 = vunpack.c.h.b16 %v1652
        %v3148 = vunpack.c.l.b16 %v1653
        %v3149 = vunpack.c.h.b16 %v1653
        %v3150 = vunpack.c.l.b16 %v1654
        %v3151 = vunpack.c.h.b16 %v1654
        %v3152 = vunpack.c.l.b16 %v1655
        %v3153 = vunpack.c.h.b16 %v1655
        %v3154 = vunpack.c.l.b16 %v1656
        %v3155 = vunpack.c.h.b16 %v1656
        %v3156 = vunpack.c.l.b16 %v1657
        %v3157 = vunpack.c.h.b16 %v1657
        %v3158 = vunpack.c.l.b16 %v1658
        %v3159 = vunpack.c.h.b16 %v1658
        %v3160 = vunpack.c.l.b16 %v1659
        %v3161 = vunpack.c.h.b16 %v1659
        %v3162 = vunpack.c.l.b16 %v1660
        %v3163 = vunpack.c.h.b16 %v1660
        %v3164 = vunpack.c.l.b16 %v1661
        %v3165 = vunpack.c.h.b16 %v1661
        %v3166 = vunpack.c.l.b16 %v1662
        %v3167 = vunpack.c.h.b16 %v1662
        %v3168 = vunpack.c.l.b16 %v1663
        %v3169 = vunpack.c.h.b16 %v1663
        %v3170 = vunpack.c.l.b16 %v1664
        %v3171 = vunpack.c.h.b16 %v1664
        %v3172 = vunpack.c.l.b16 %v1665
        %v3173 = vunpack.c.h.b16 %v1665
        %v3174 = vunpack.c.l.b16 %v1666
        %v3175 = vunpack.c.h.b16 %v1666
        %v3176 = vunpack.c.l.b16 %v1667
        %v3177 = vunpack.c.h.b16 %v1667
        %v3178 = vunpack.c.l.b16 %v1668
        %v3179 = vunpack.c.h.b16 %v1668
        %v3180 = vunpack.c.l.b16 %v1669
        %v3181 = vunpack.c.h.b16 %v1669
        %v3182 = vunpack.c.l.b16 %v1670
        %v3183 = vunpack.c.h.b16 %v1670
        %v3184 = vunpack.c.l.b16 %v1671
        %v3185 = vunpack.c.h.b16 %v1671
        %v3186 = vunpack.c.l.b16 %v1672
        %v3187 = vunpack.c.h.b16 %v1672
        %v3188 = vunpack.c.l.b16 %v1673
        %v3189 = vunpack.c.h.b16 %v1673
        %v3190 = vunpack.c.l.b16 %v1674
        %v3191 = vunpack.c.h.b16 %v1674
        %v3192 = vunpack.c.l.b16 %v1675
        %v3193 = vunpack.c.h.b16 %v1675
        %v3194 = vunpack.c.l.b16 %v1676
        %v3195 = vunpack.c.h.b16 %v1676
        %v3196 = vunpack.c.l.b16 %v1677
        %v3197 = vunpack.c.h.b16 %v1677
        %v3198 = vunpack.c.l.b16 %v1678
        %v3199 = vunpack.c.h.b16 %v1678
        %v3200 = vunpack.c.l.b16 %v1679
        %v3201 = vunpack.c.h.b16 %v1679
        %v3202 = vunpack.c.l.b16 %v1680
        %v3203 = vunpack.c.h.b16 %v1680
        %v3204 = vunpack.c.l.b16 %v1681
        %v3205 = vunpack.c.h.b16 %v1681
        %v3206 = vunpack.c.l.b16 %v1682
        %v3207 = vunpack.c.h.b16 %v1682
        %v3208 = vunpack.c.l.b16 %v1683
        %v3209 = vunpack.c.h.b16 %v1683
        %v3210 = vunpack.c.l.b16 %v1684
        %v3211 = vunpack.c.h.b16 %v1684
        %v3212 = vunpack.c.l.b16 %v1685
        %v3213 = vunpack.c.h.b16 %v1685
        %v3214 = vunpack.c.l.b16 %v1686
        %v3215 = vunpack.c.h.b16 %v1686
        %v3216 = vunpack.c.l.b16 %v1687
        %v3217 = vunpack.c.h.b16 %v1687
        %v3218 = vunpack.c.l.b16 %v1688
        %v3219 = vunpack.c.h.b16 %v1688
        %v3220 = vunpack.c.l.b16 %v1689
        %v3221 = vunpack.c.h.b16 %v1689
        %v3222 = vunpack.c.l.b16 %v1690
        %v3223 = vunpack.c.h.b16 %v1690
        %v3224 = vunpack.c.l.b16 %v1691
        %v3225 = vunpack.c.h.b16 %v1691
        %v3226 = vunpack.c.l.b16 %v1692
        %v3227 = vunpack.c.h.b16 %v1692
        %v3228 = vunpack.c.l.b16 %v1693
        %v3229 = vunpack.c.h.b16 %v1693
        %v3230 = vunpack.c.l.b16 %v1694
        %v3231 = vunpack.c.h.b16 %v1694
        %v3232 = vunpack.c.l.b16 %v1695
        %v3233 = vunpack.c.h.b16 %v1695
        %v3234 = vunpack.c.l.b16 %v1696
        %v3235 = vunpack.c.h.b16 %v1696
        %v3236 = vunpack.c.l.b16 %v1697
        %v3237 = vunpack.c.h.b16 %v1697
        %v3238 = vunpack.c.l.b16 %v1698
        %v3239 = vunpack.c.h.b16 %v1698
        %v3240 = vunpack.c.l.b16 %v1699
        %v3241 = vunpack.c.h.b16 %v1699
        %v3242 = vunpack.c.l.b16 %v1700
        %v3243 = vunpack.c.h.b16 %v1700
        %v3244 = vunpack.c.l.b16 %v1701
        %v3245 = vunpack.c.h.b16 %v1701
        %v3246 = vunpack.c.l.b16 %v1702
        %v3247 = vunpack.c.h.b16 %v1702
        %v3248 = vunpack.c.l.b16 %v1703
        %v3249 = vunpack.c.h.b16 %v1703
        %v3250 = vunpack.c.l.b16 %v1704
        %v3251 = vunpack.c.h.b16 %v1704
        %v3252 = vunpack.c.l.b16 %v1705
        %v3253 = vunpack.c.h.b16 %v1705
        %v3254 = vunpack.c.l.b16 %v1706
        %v3255 = vunpack.c.h.b16 %v1706
        %v3256 = vunpack.c.l.b16 %v1707
        %v3257 = vunpack.c.h.b16 %v1707
        %v3258 = vunpack.c.l.b16 %v1708
        %v3259 = vunpack.c.h.b16 %v1708
        %v3260 = vunpack.c.l.b16 %v1709
        %v3261 = vunpack.c.h.b16 %v1709
        %v3262 = vunpack.c.l.b16 %v1710
        %v3263 = vunpack.c.h.b16 %v1710
        %v3264 = vunpack.c.l.b16 %v1711
        %v3265 = vunpack.c.h.b16 %v1711
        %v3266 = vunpack.c.l.b16 %v1712
        %v3267 = vunpack.c.h.b16 %v1712
        %v3268 = vunpack.c.l.b16 %v1713
        %v3269 = vunpack.c.h.b16 %v1713
        %v3270 = vunpack.c.l.b16 %v1714
        %v3271 = vunpack.c.h.b16 %v1714
        %v3272 = vunpack.c.l.b16 %v1715
        %v3273 = vunpack.c.h.b16 %v1715
        %v3274 = vunpack.c.l.b16 %v1716
        %v3275 = vunpack.c.h.b16 %v1716
        %v3276 = vunpack.c.l.b16 %v1717
        %v3277 = vunpack.c.h.b16 %v1717
        %v3278 = vunpack.c.l.b16 %v1718
        %v3279 = vunpack.c.h.b16 %v1718
        %v3280 = vunpack.c.l.b16 %v1719
        %v3281 = vunpack.c.h.b16 %v1719
        %v3282 = vunpack.c.l.b16 %v1720
        %v3283 = vunpack.c.h.b16 %v1720
        %v3284 = vunpack.c.l.b16 %v1721
        %v3285 = vunpack.c.h.b16 %v1721
        %v3286 = vunpack.c.l.b16 %v1722
        %v3287 = vunpack.c.h.b16 %v1722
        %v3288 = vunpack.c.l.b16 %v1723
        %v3289 = vunpack.c.h.b16 %v1723
        %v3290 = vunpack.c.l.b16 %v1724
        %v3291 = vunpack.c.h.b16 %v1724
        %v3292 = vunpack.c.l.b16 %v1725
        %v3293 = vunpack.c.h.b16 %v1725
        %v3294 = vunpack.c.l.b16 %v1726
        %v3295 = vunpack.c.h.b16 %v1726
        %v3296 = vunpack.c.l.b16 %v1727
        %v3297 = vunpack.c.h.b16 %v1727
        %v3298 = vunpack.c.l.b16 %v1728
        %v3299 = vunpack.c.h.b16 %v1728
        %v3300 = vunpack.c.l.b16 %v1729
        %v3301 = vunpack.c.h.b16 %v1729
        %v3302 = vunpack.c.l.b16 %v1730
        %v3303 = vunpack.c.h.b16 %v1730
        %v3304 = vunpack.c.l.b16 %v1731
        %v3305 = vunpack.c.h.b16 %v1731
        %v3306 = vunpack.c.l.b16 %v1732
        %v3307 = vunpack.c.h.b16 %v1732
        %v3308 = vunpack.c.l.b16 %v1733
        %v3309 = vunpack.c.h.b16 %v1733
        %v3310 = vunpack.c.l.b16 %v1734
        %v3311 = vunpack.c.h.b16 %v1734
        %v3312 = vunpack.c.l.b16 %v1735
        %v3313 = vunpack.c.h.b16 %v1735
        %v3314 = vunpack.c.l.b16 %v1736
        %v3315 = vunpack.c.h.b16 %v1736
        %v3316 = vunpack.c.l.b16 %v1737
        %v3317 = vunpack.c.h.b16 %v1737
        %v3318 = vunpack.c.l.b16 %v1738
        %v3319 = vunpack.c.h.b16 %v1738
        %v3320 = vunpack.c.l.b16 %v1739
        %v3321 = vunpack.c.h.b16 %v1739
        %v3322 = vunpack.c.l.b16 %v1740
        %v3323 = vunpack.c.h.b16 %v1740
        %v3324 = vunpack.c.l.b16 %v1741
        %v3325 = vunpack.c.h.b16 %v1741
        %v3326 = vunpack.c.l.b16 %v1742
        %v3327 = vunpack.c.h.b16 %v1742
        %v3328 = vunpack.c.l.b16 %v1743
        %v3329 = vunpack.c.h.b16 %v1743
        %v3330 = vunpack.c.l.b16 %v1744
        %v3331 = vunpack.c.h.b16 %v1744
        %v3332 = vunpack.c.l.b16 %v1745
        %v3333 = vunpack.c.h.b16 %v1745
        %v3334 = vunpack.c.l.b16 %v1746
        %v3335 = vunpack.c.h.b16 %v1746
        %v3336 = vunpack.c.l.b16 %v1747
        %v3337 = vunpack.c.h.b16 %v1747
        %v3338 = vunpack.c.l.b16 %v1748
        %v3339 = vunpack.c.h.b16 %v1748
        %v3340 = vunpack.c.l.b16 %v1749
        %v3341 = vunpack.c.h.b16 %v1749
        %v3342 = vunpack.c.l.b16 %v1750
        %v3343 = vunpack.c.h.b16 %v1750
        %v3344 = vunpack.c.l.b16 %v1751
        %v3345 = vunpack.c.h.b16 %v1751
        %v3346 = vunpack.c.l.b16 %v1752
        %v3347 = vunpack.c.h.b16 %v1752
        %v3348 = vunpack.c.l.b16 %v1753
        %v3349 = vunpack.c.h.b16 %v1753
        %v3350 = vunpack.c.l.b16 %v1754
        %v3351 = vunpack.c.h.b16 %v1754
        %v3352 = vunpack.c.l.b16 %v1755
        %v3353 = vunpack.c.h.b16 %v1755
        %v3354 = vunpack.c.l.b16 %v1756
        %v3355 = vunpack.c.h.b16 %v1756
        %v3356 = vunpack.c.l.b16 %v1757
        %v3357 = vunpack.c.h.b16 %v1757
        %v3358 = vunpack.c.l.b16 %v1758
        %v3359 = vunpack.c.h.b16 %v1758
        %v3360 = vunpack.c.l.b16 %v1759
        %v3361 = vunpack.c.h.b16 %v1759
        %v3362 = vunpack.c.l.b16 %v1760
        %v3363 = vunpack.c.h.b16 %v1760
        %v3364 = vunpack.c.l.b16 %v1761
        %v3365 = vunpack.c.h.b16 %v1761
        %v3366 = vunpack.c.l.b16 %v1762
        %v3367 = vunpack.c.h.b16 %v1762
        %v3368 = vunpack.c.l.b16 %v1763
        %v3369 = vunpack.c.h.b16 %v1763
        %v3370 = vunpack.c.l.b16 %v1764
        %v3371 = vunpack.c.h.b16 %v1764
        %v3372 = vunpack.c.l.b16 %v1765
        %v3373 = vunpack.c.h.b16 %v1765
        %v3374 = vunpack.c.l.b16 %v1766
        %v3375 = vunpack.c.h.b16 %v1766
        %v3376 = vunpack.c.l.b16 %v1767
        %v3377 = vunpack.c.h.b16 %v1767
        %v3378 = vunpack.c.l.b16 %v1768
        %v3379 = vunpack.c.h.b16 %v1768
        %v3380 = vunpack.c.l.b16 %v1769
        %v3381 = vunpack.c.h.b16 %v1769
        %v3382 = vunpack.c.l.b16 %v1770
        %v3383 = vunpack.c.h.b16 %v1770
        %v3384 = vunpack.c.l.b16 %v1771
        %v3385 = vunpack.c.h.b16 %v1771
        %v3386 = vunpack.c.l.b16 %v1772
        %v3387 = vunpack.c.h.b16 %v1772
        %v3388 = vunpack.c.l.b16 %v1773
        %v3389 = vunpack.c.h.b16 %v1773
        %v3390 = vunpack.c.l.b16 %v1774
        %v3391 = vunpack.c.h.b16 %v1774
        %v3392 = vunpack.c.l.b16 %v1775
        %v3393 = vunpack.c.h.b16 %v1775
        %v3394 = vunpack.c.l.b16 %v1776
        %v3395 = vunpack.c.h.b16 %v1776
        %v3396 = vunpack.c.l.b16 %v1777
        %v3397 = vunpack.c.h.b16 %v1777
        %v3398 = vunpack.c.l.b16 %v1778
        %v3399 = vunpack.c.h.b16 %v1778
        %v3400 = vunpack.c.l.b16 %v1779
        %v3401 = vunpack.c.h.b16 %v1779
        %v3402 = vunpack.c.l.b16 %v1780
        %v3403 = vunpack.c.h.b16 %v1780
        %v3404 = vunpack.c.l.b16 %v1781
        %v3405 = vunpack.c.h.b16 %v1781
        %v3406 = vunpack.c.l.b16 %v1782
        %v3407 = vunpack.c.h.b16 %v1782
        %v3408 = vunpack.c.l.b16 %v1783
        %v3409 = vunpack.c.h.b16 %v1783
        %v3410 = vunpack.c.l.b16 %v1784
        %v3411 = vunpack.c.h.b16 %v1784
        %v3412 = vunpack.c.l.b16 %v1785
        %v3413 = vunpack.c.h.b16 %v1785
        %v3414 = vunpack.c.l.b16 %v1786
        %v3415 = vunpack.c.h.b16 %v1786
        %v3416 = vunpack.c.l.b16 %v1787
        %v3417 = vunpack.c.h.b16 %v1787
        %v3418 = vunpack.c.l.b16 %v1788
        %v3419 = vunpack.c.h.b16 %v1788
        %v3420 = vunpack.c.l.b16 %v1789
        %v3421 = vunpack.c.h.b16 %v1789
        %v3422 = vunpack.c.l.b16 %v1790
        %v3423 = vunpack.c.h.b16 %v1790
        %v3424 = vunpack.c.l.b16 %v1791
        %v3425 = vunpack.c.h.b16 %v1791
        %v3426 = vunpack.c.l.b16 %v1792
        %v3427 = vunpack.c.h.b16 %v1792
        %v3428 = vunpack.c.l.b16 %v1793
        %v3429 = vunpack.c.h.b16 %v1793
        %v3430 = vunpack.c.l.b16 %v1794
        %v3431 = vunpack.c.h.b16 %v1794
        %v3432 = vunpack.c.l.b16 %v1795
        %v3433 = vunpack.c.h.b16 %v1795
        %v3434 = vpack.c.b16 %v2414, %v2410
        %v3435 = vpack.c.b16 %v2415, %v2411
        %v3436 = vpack.c.b16 %v2416, %v2412
        %v3437 = vpack.c.b16 %v2417, %v2413
        %v3438 = vpack.c.b16 %v2422, %v2418
        %v3439 = vpack.c.b16 %v2423, %v2419
        %v3440 = vpack.c.b16 %v2424, %v2420
        %v3441 = vpack.c.b16 %v2425, %v2421
        %v3442 = vpack.c.b16 %v2430, %v2426
        %v3443 = vpack.c.b16 %v2431, %v2427
        %v3444 = vpack.c.b16 %v2432, %v2428
        %v3445 = vpack.c.b16 %v2433, %v2429
        %v3446 = vpack.c.b16 %v2438, %v2434
        %v3447 = vpack.c.b16 %v2439, %v2435
        %v3448 = vpack.c.b16 %v2440, %v2436
        %v3449 = vpack.c.b16 %v2441, %v2437
        %v3450 = vpack.c.b16 %v2446, %v2442
        %v3451 = vpack.c.b16 %v2447, %v2443
        %v3452 = vpack.c.b16 %v2448, %v2444
        %v3453 = vpack.c.b16 %v2449, %v2445
        %v3454 = vpack.c.b16 %v2454, %v2450
        %v3455 = vpack.c.b16 %v2455, %v2451
        %v3456 = vpack.c.b16 %v2456, %v2452
        %v3457 = vpack.c.b16 %v2457, %v2453
        %v3458 = vpack.c.b16 %v2462, %v2458
        %v3459 = vpack.c.b16 %v2463, %v2459
        %v3460 = vpack.c.b16 %v2464, %v2460
        %v3461 = vpack.c.b16 %v2465, %v2461
        %v3462 = vpack.c.b16 %v2470, %v2466
        %v3463 = vpack.c.b16 %v2471, %v2467
        %v3464 = vpack.c.b16 %v2472, %v2468
        %v3465 = vpack.c.b16 %v2473, %v2469
        %v3466 = vpack.c.b16 %v2478, %v2474
        %v3467 = vpack.c.b16 %v2479, %v2475
        %v3468 = vpack.c.b16 %v2480, %v2476
        %v3469 = vpack.c.b16 %v2481, %v2477
        %v3470 = vpack.c.b16 %v2486, %v2482
        %v3471 = vpack.c.b16 %v2487, %v2483
        %v3472 = vpack.c.b16 %v2488, %v2484
        %v3473 = vpack.c.b16 %v2489, %v2485
        %v3474 = vpack.c.b16 %v2494, %v2490
        %v3475 = vpack.c.b16 %v2495, %v2491
        %v3476 = vpack.c.b16 %v2496, %v2492
        %v3477 = vpack.c.b16 %v2497, %v2493
        %v3478 = vpack.c.b16 %v2502, %v2498
        %v3479 = vpack.c.b16 %v2503, %v2499
        %v3480 = vpack.c.b16 %v2504, %v2500
        %v3481 = vpack.c.b16 %v2505, %v2501
        %v3482 = vpack.c.b16 %v2510, %v2506
        %v3483 = vpack.c.b16 %v2511, %v2507
        %v3484 = vpack.c.b16 %v2512, %v2508
        %v3485 = vpack.c.b16 %v2513, %v2509
        %v3486 = vpack.c.b16 %v2518, %v2514
        %v3487 = vpack.c.b16 %v2519, %v2515
        %v3488 = vpack.c.b16 %v2520, %v2516
        %v3489 = vpack.c.b16 %v2521, %v2517
        %v3490 = vpack.c.b16 %v2526, %v2522
        %v3491 = vpack.c.b16 %v2527, %v2523
        %v3492 = vpack.c.b16 %v2528, %v2524
        %v3493 = vpack.c.b16 %v2529, %v2525
        %v3494 = vpack.c.b16 %v2534, %v2530
        %v3495 = vpack.c.b16 %v2535, %v2531
        %v3496 = vpack.c.b16 %v2536, %v2532
        %v3497 = vpack.c.b16 %v2537, %v2533
        %v3498 = vpack.c.b16 %v2542, %v2538
        %v3499 = vpack.c.b16 %v2543, %v2539
        %v3500 = vpack.c.b16 %v2544, %v2540
        %v3501 = vpack.c.b16 %v2545, %v2541
        %v3502 = vpack.c.b16 %v2550, %v2546
        %v3503 = vpack.c.b16 %v2551, %v2547
        %v3504 = vpack.c.b16 %v2552, %v2548
        %v3505 = vpack.c.b16 %v2553, %v2549
        %v3506 = vpack.c.b16 %v2558, %v2554
        %v3507 = vpack.c.b16 %v2559, %v2555
        %v3508 = vpack.c.b16 %v2560, %v2556
        %v3509 = vpack.c.b16 %v2561, %v2557
        %v3510 = vpack.c.b16 %v2566, %v2562
        %v3511 = vpack.c.b16 %v2567, %v2563
        %v3512 = vpack.c.b16 %v2568, %v2564
        %v3513 = vpack.c.b16 %v2569, %v2565
        %v3514 = vpack.c.b16 %v2574, %v2570
        %v3515 = vpack.c.b16 %v2575, %v2571
        %v3516 = vpack.c.b16 %v2576, %v2572
        %v3517 = vpack.c.b16 %v2577, %v2573
        %v3518 = vpack.c.b16 %v2582, %v2578
        %v3519 = vpack.c.b16 %v2583, %v2579
        %v3520 = vpack.c.b16 %v2584, %v2580
        %v3521 = vpack.c.b16 %v2585, %v2581
        %v3522 = vpack.c.b16 %v2590, %v2586
        %v3523 = vpack.c.b16 %v2591, %v2587
        %v3524 = vpack.c.b16 %v2592, %v2588
        %v3525 = vpack.c.b16 %v2593, %v2589
        %v3526 = vpack.c.b16 %v2598, %v2594
        %v3527 = vpack.c.b16 %v2599, %v2595
        %v3528 = vpack.c.b16 %v2600, %v2596
        %v3529 = vpack.c.b16 %v2601, %v2597
        %v3530 = vpack.c.b16 %v2606, %v2602
        %v3531 = vpack.c.b16 %v2607, %v2603
        %v3532 = vpack.c.b16 %v2608, %v2604
        %v3533 = vpack.c.b16 %v2609, %v2605
        %v3534 = vpack.c.b16 %v2614, %v2610
        %v3535 = vpack.c.b16 %v2615, %v2611
        %v3536 = vpack.c.b16 %v2616, %v2612
        %v3537 = vpack.c.b16 %v2617, %v2613
        %v3538 = vpack.c.b16 %v2622, %v2618
        %v3539 = vpack.c.b16 %v2623, %v2619
        %v3540 = vpack.c.b16 %v2624, %v2620
        %v3541 = vpack.c.b16 %v2625, %v2621
        %v3542 = vpack.c.b16 %v2630, %v2626
        %v3543 = vpack.c.b16 %v2631, %v2627
        %v3544 = vpack.c.b16 %v2632, %v2628
        %v3545 = vpack.c.b16 %v2633, %v2629
        %v3546 = vpack.c.b16 %v2638, %v2634
        %v3547 = vpack.c.b16 %v2639, %v2635
        %v3548 = vpack.c.b16 %v2640, %v2636
        %v3549 = vpack.c.b16 %v2641, %v2637
        %v3550 = vpack.c.b16 %v2646, %v2642
        %v3551 = vpack.c.b16 %v2647, %v2643
        %v3552 = vpack.c.b16 %v2648, %v2644
        %v3553 = vpack.c.b16 %v2649, %v2645
        %v3554 = vpack.c.b16 %v2654, %v2650
        %v3555 = vpack.c.b16 %v2655, %v2651
        %v3556 = vpack.c.b16 %v2656, %v2652
        %v3557 = vpack.c.b16 %v2657, %v2653
        %v3558 = vpack.c.b16 %v2662, %v2658
        %v3559 = vpack.c.b16 %v2663, %v2659
        %v3560 = vpack.c.b16 %v2664, %v2660
        %v3561 = vpack.c.b16 %v2665, %v2661
        %v3562 = vpack.c.b16 %v2670, %v2666
        %v3563 = vpack.c.b16 %v2671, %v2667
        %v3564 = vpack.c.b16 %v2672, %v2668
        %v3565 = vpack.c.b16 %v2673, %v2669
        %v3566 = vpack.c.b16 %v2678, %v2674
        %v3567 = vpack.c.b16 %v2679, %v2675
        %v3568 = vpack.c.b16 %v2680, %v2676
        %v3569 = vpack.c.b16 %v2681, %v2677
        %v3570 = vpack.c.b16 %v2686, %v2682
        %v3571 = vpack.c.b16 %v2687, %v2683
        %v3572 = vpack.c.b16 %v2688, %v2684
        %v3573 = vpack.c.b16 %v2689, %v2685
        %v3574 = vpack.c.b16 %v2694, %v2690
        %v3575 = vpack.c.b16 %v2695, %v2691
        %v3576 = vpack.c.b16 %v2696, %v2692
        %v3577 = vpack.c.b16 %v2697, %v2693
        %v3578 = vpack.c.b16 %v2702, %v2698
        %v3579 = vpack.c.b16 %v2703, %v2699
        %v3580 = vpack.c.b16 %v2704, %v2700
        %v3581 = vpack.c.b16 %v2705, %v2701
        %v3582 = vpack.c.b16 %v2710, %v2706
        %v3583 = vpack.c.b16 %v2711, %v2707
        %v3584 = vpack.c.b16 %v2712, %v2708
        %v3585 = vpack.c.b16 %v2713, %v2709
        %v3586 = vpack.c.b16 %v2718, %v2714
        %v3587 = vpack.c.b16 %v2719, %v2715
        %v3588 = vpack.c.b16 %v2720, %v2716
        %v3589 = vpack.c.b16 %v2721, %v2717
        %v3590 = vpack.c.b16 %v2726, %v2722
        %v3591 = vpack.c.b16 %v2727, %v2723
        %v3592 = vpack.c.b16 %v2728, %v2724
        %v3593 = vpack.c.b16 %v2729, %v2725
        %v3594 = vpack.c.b16 %v2734, %v2730
        %v3595 = vpack.c.b16 %v2735, %v2731
        %v3596 = vpack.c.b16 %v2736, %v2732
        %v3597 = vpack.c.b16 %v2737, %v2733
        %v3598 = vpack.c.b16 %v2742, %v2738
        %v3599 = vpack.c.b16 %v2743, %v2739
        %v3600 = vpack.c.b16 %v2744, %v2740
        %v3601 = vpack.c.b16 %v2745, %v2741
        %v3602 = vpack.c.b16 %v2750, %v2746
        %v3603 = vpack.c.b16 %v2751, %v2747
        %v3604 = vpack.c.b16 %v2752, %v2748
        %v3605 = vpack.c.b16 %v2753, %v2749
        %v3606 = vpack.c.b16 %v2758, %v2754
        %v3607 = vpack.c.b16 %v2759, %v2755
        %v3608 = vpack.c.b16 %v2760, %v2756
        %v3609 = vpack.c.b16 %v2761, %v2757
        %v3610 = vpack.c.b16 %v2766, %v2762
        %v3611 = vpack.c.b16 %v2767, %v2763
        %v3612 = vpack.c.b16 %v2768, %v2764
        %v3613 = vpack.c.b16 %v2769, %v2765
        %v3614 = vpack.c.b16 %v2774, %v2770
        %v3615 = vpack.c.b16 %v2775, %v2771
        %v3616 = vpack.c.b16 %v2776, %v2772
        %v3617 = vpack.c.b16 %v2777, %v2773
        %v3618 = vpack.c.b16 %v2782, %v2778
        %v3619 = vpack.c.b16 %v2783, %v2779
        %v3620 = vpack.c.b16 %v2784, %v2780
        %v3621 = vpack.c.b16 %v2785, %v2781
        %v3622 = vpack.c.b16 %v2790, %v2786
        %v3623 = vpack.c.b16 %v2791, %v2787
        %v3624 = vpack.c.b16 %v2792, %v2788
        %v3625 = vpack.c.b16 %v2793, %v2789
        %v3626 = vpack.c.b16 %v2798, %v2794
        %v3627 = vpack.c.b16 %v2799, %v2795
        %v3628 = vpack.c.b16 %v2800, %v2796
        %v3629 = vpack.c.b16 %v2801, %v2797
        %v3630 = vpack.c.b16 %v2806, %v2802
        %v3631 = vpack.c.b16 %v2807, %v2803
        %v3632 = vpack.c.b16 %v2808, %v2804
        %v3633 = vpack.c.b16 %v2809, %v2805
        %v3634 = vpack.c.b16 %v2814, %v2810
        %v3635 = vpack.c.b16 %v2815, %v2811
        %v3636 = vpack.c.b16 %v2816, %v2812
        %v3637 = vpack.c.b16 %v2817, %v2813
        %v3638 = vpack.c.b16 %v2822, %v2818
        %v3639 = vpack.c.b16 %v2823, %v2819
        %v3640 = vpack.c.b16 %v2824, %v2820
        %v3641 = vpack.c.b16 %v2825, %v2821
        %v3642 = vpack.c.b16 %v2830, %v2826
        %v3643 = vpack.c.b16 %v2831, %v2827
        %v3644 = vpack.c.b16 %v2832, %v2828
        %v3645 = vpack.c.b16 %v2833, %v2829
        %v3646 = vpack.c.b16 %v2838, %v2834
        %v3647 = vpack.c.b16 %v2839, %v2835
        %v3648 = vpack.c.b16 %v2840, %v2836
        %v3649 = vpack.c.b16 %v2841, %v2837
        %v3650 = vpack.c.b16 %v2846, %v2842
        %v3651 = vpack.c.b16 %v2847, %v2843
        %v3652 = vpack.c.b16 %v2848, %v2844
        %v3653 = vpack.c.b16 %v2849, %v2845
        %v3654 = vpack.c.b16 %v2854, %v2850
        %v3655 = vpack.c.b16 %v2855, %v2851
        %v3656 = vpack.c.b16 %v2856, %v2852
        %v3657 = vpack.c.b16 %v2857, %v2853
        %v3658 = vpack.c.b16 %v2862, %v2858
        %v3659 = vpack.c.b16 %v2863, %v2859
        %v3660 = vpack.c.b16 %v2864, %v2860
        %v3661 = vpack.c.b16 %v2865, %v2861
        %v3662 = vpack.c.b16 %v2870, %v2866
        %v3663 = vpack.c.b16 %v2871, %v2867
        %v3664 = vpack.c.b16 %v2872, %v2868
        %v3665 = vpack.c.b16 %v2873, %v2869
        %v3666 = vpack.c.b16 %v2878, %v2874
        %v3667 = vpack.c.b16 %v2879, %v2875
        %v3668 = vpack.c.b16 %v2880, %v2876
        %v3669 = vpack.c.b16 %v2881, %v2877
        %v3670 = vpack.c.b16 %v2886, %v2882
        %v3671 = vpack.c.b16 %v2887, %v2883
        %v3672 = vpack.c.b16 %v2888, %v2884
        %v3673 = vpack.c.b16 %v2889, %v2885
        %v3674 = vpack.c.b16 %v2894, %v2890
        %v3675 = vpack.c.b16 %v2895, %v2891
        %v3676 = vpack.c.b16 %v2896, %v2892
        %v3677 = vpack.c.b16 %v2897, %v2893
        %v3678 = vpack.c.b16 %v2902, %v2898
        %v3679 = vpack.c.b16 %v2903, %v2899
        %v3680 = vpack.c.b16 %v2904, %v2900
        %v3681 = vpack.c.b16 %v2905, %v2901
        %v3682 = vpack.c.b16 %v2910, %v2906
        %v3683 = vpack.c.b16 %v2911, %v2907
        %v3684 = vpack.c.b16 %v2912, %v2908
        %v3685 = vpack.c.b16 %v2913, %v2909
        %v3686 = vpack.c.b16 %v2918, %v2914
        %v3687 = vpack.c.b16 %v2919, %v2915
        %v3688 = vpack.c.b16 %v2920, %v2916
        %v3689 = vpack.c.b16 %v2921, %v2917
        %v3690 = vpack.c.b16 %v2926, %v2922
        %v3691 = vpack.c.b16 %v2927, %v2923
        %v3692 = vpack.c.b16 %v2928, %v2924
        %v3693 = vpack.c.b16 %v2929, %v2925
        %v3694 = vpack.c.b16 %v2934, %v2930
        %v3695 = vpack.c.b16 %v2935, %v2931
        %v3696 = vpack.c.b16 %v2936, %v2932
        %v3697 = vpack.c.b16 %v2937, %v2933
        %v3698 = vpack.c.b16 %v2942, %v2938
        %v3699 = vpack.c.b16 %v2943, %v2939
        %v3700 = vpack.c.b16 %v2944, %v2940
        %v3701 = vpack.c.b16 %v2945, %v2941
        %v3702 = vpack.c.b16 %v2950, %v2946
        %v3703 = vpack.c.b16 %v2951, %v2947
        %v3704 = vpack.c.b16 %v2952, %v2948
        %v3705 = vpack.c.b16 %v2953, %v2949
        %v3706 = vpack.c.b16 %v2958, %v2954
        %v3707 = vpack.c.b16 %v2959, %v2955
        %v3708 = vpack.c.b16 %v2960, %v2956
        %v3709 = vpack.c.b16 %v2961, %v2957
        %v3710 = vpack.c.b16 %v2966, %v2962
        %v3711 = vpack.c.b16 %v2967, %v2963
        %v3712 = vpack.c.b16 %v2968, %v2964
        %v3713 = vpack.c.b16 %v2969, %v2965
        %v3714 = vpack.c.b16 %v2974, %v2970
        %v3715 = vpack.c.b16 %v2975, %v2971
        %v3716 = vpack.c.b16 %v2976, %v2972
        %v3717 = vpack.c.b16 %v2977, %v2973
        %v3718 = vpack.c.b16 %v2982, %v2978
        %v3719 = vpack.c.b16 %v2983, %v2979
        %v3720 = vpack.c.b16 %v2984, %v2980
        %v3721 = vpack.c.b16 %v2985, %v2981
        %v3722 = vpack.c.b16 %v2990, %v2986
        %v3723 = vpack.c.b16 %v2991, %v2987
        %v3724 = vpack.c.b16 %v2992, %v2988
        %v3725 = vpack.c.b16 %v2993, %v2989
        %v3726 = vpack.c.b16 %v2998, %v2994
        %v3727 = vpack.c.b16 %v2999, %v2995
        %v3728 = vpack.c.b16 %v3000, %v2996
        %v3729 = vpack.c.b16 %v3001, %v2997
        %v3730 = vpack.c.b16 %v3006, %v3002
        %v3731 = vpack.c.b16 %v3007, %v3003
        %v3732 = vpack.c.b16 %v3008, %v3004
        %v3733 = vpack.c.b16 %v3009, %v3005
        %v3734 = vpack.c.b16 %v3014, %v3010
        %v3735 = vpack.c.b16 %v3015, %v3011
        %v3736 = vpack.c.b16 %v3016, %v3012
        %v3737 = vpack.c.b16 %v3017, %v3013
        %v3738 = vpack.c.b16 %v3022, %v3018
        %v3739 = vpack.c.b16 %v3023, %v3019
        %v3740 = vpack.c.b16 %v3024, %v3020
        %v3741 = vpack.c.b16 %v3025, %v3021
        %v3742 = vpack.c.b16 %v3030, %v3026
        %v3743 = vpack.c.b16 %v3031, %v3027
        %v3744 = vpack.c.b16 %v3032, %v3028
        %v3745 = vpack.c.b16 %v3033, %v3029
        %v3746 = vpack.c.b16 %v3038, %v3034
        %v3747 = vpack.c.b16 %v3039, %v3035
        %v3748 = vpack.c.b16 %v3040, %v3036
        %v3749 = vpack.c.b16 %v3041, %v3037
        %v3750 = vpack.c.b16 %v3046, %v3042
        %v3751 = vpack.c.b16 %v3047, %v3043
        %v3752 = vpack.c.b16 %v3048, %v3044
        %v3753 = vpack.c.b16 %v3049, %v3045
        %v3754 = vpack.c.b16 %v3054, %v3050
        %v3755 = vpack.c.b16 %v3055, %v3051
        %v3756 = vpack.c.b16 %v3056, %v3052
        %v3757 = vpack.c.b16 %v3057, %v3053
        %v3758 = vpack.c.b16 %v3062, %v3058
        %v3759 = vpack.c.b16 %v3063, %v3059
        %v3760 = vpack.c.b16 %v3064, %v3060
        %v3761 = vpack.c.b16 %v3065, %v3061
        %v3762 = vpack.c.b16 %v3070, %v3066
        %v3763 = vpack.c.b16 %v3071, %v3067
        %v3764 = vpack.c.b16 %v3072, %v3068
        %v3765 = vpack.c.b16 %v3073, %v3069
        %v3766 = vpack.c.b16 %v3078, %v3074
        %v3767 = vpack.c.b16 %v3079, %v3075
        %v3768 = vpack.c.b16 %v3080, %v3076
        %v3769 = vpack.c.b16 %v3081, %v3077
        %v3770 = vpack.c.b16 %v3086, %v3082
        %v3771 = vpack.c.b16 %v3087, %v3083
        %v3772 = vpack.c.b16 %v3088, %v3084
        %v3773 = vpack.c.b16 %v3089, %v3085
        %v3774 = vpack.c.b16 %v3094, %v3090
        %v3775 = vpack.c.b16 %v3095, %v3091
        %v3776 = vpack.c.b16 %v3096, %v3092
        %v3777 = vpack.c.b16 %v3097, %v3093
        %v3778 = vpack.c.b16 %v3102, %v3098
        %v3779 = vpack.c.b16 %v3103, %v3099
        %v3780 = vpack.c.b16 %v3104, %v3100
        %v3781 = vpack.c.b16 %v3105, %v3101
        %v3782 = vpack.c.b16 %v3110, %v3106
        %v3783 = vpack.c.b16 %v3111, %v3107
        %v3784 = vpack.c.b16 %v3112, %v3108
        %v3785 = vpack.c.b16 %v3113, %v3109
        %v3786 = vpack.c.b16 %v3118, %v3114
        %v3787 = vpack.c.b16 %v3119, %v3115
        %v3788 = vpack.c.b16 %v3120, %v3116
        %v3789 = vpack.c.b16 %v3121, %v3117
        %v3790 = vpack.c.b16 %v3126, %v3122
        %v3791 = vpack.c.b16 %v3127, %v3123
        %v3792 = vpack.c.b16 %v3128, %v3124
        %v3793 = vpack.c.b16 %v3129, %v3125
        %v3794 = vpack.c.b16 %v3134, %v3130
        %v3795 = vpack.c.b16 %v3135, %v3131
        %v3796 = vpack.c.b16 %v3136, %v3132
        %v3797 = vpack.c.b16 %v3137, %v3133
        %v3798 = vpack.c.b16 %v3142, %v3138
        %v3799 = vpack.c.b16 %v3143, %v3139
        %v3800 = vpack.c.b16 %v3144, %v3140
        %v3801 = vpack.c.b16 %v3145, %v3141
        %v3802 = vpack.c.b16 %v3150, %v3146
        %v3803 = vpack.c.b16 %v3151, %v3147
        %v3804 = vpack.c.b16 %v3152, %v3148
        %v3805 = vpack.c.b16 %v3153, %v3149
        %v3806 = vpack.c.b16 %v3158, %v3154
        %v3807 = vpack.c.b16 %v3159, %v3155
        %v3808 = vpack.c.b16 %v3160, %v3156
        %v3809 = vpack.c.b16 %v3161, %v3157
        %v3810 = vpack.c.b16 %v3166, %v3162
        %v3811 = vpack.c.b16 %v3167, %v3163
        %v3812 = vpack.c.b16 %v3168, %v3164
        %v3813 = vpack.c.b16 %v3169, %v3165
        %v3814 = vpack.c.b16 %v3174, %v3170
        %v3815 = vpack.c.b16 %v3175, %v3171
        %v3816 = vpack.c.b16 %v3176, %v3172
        %v3817 = vpack.c.b16 %v3177, %v3173
        %v3818 = vpack.c.b16 %v3182, %v3178
        %v3819 = vpack.c.b16 %v3183, %v3179
        %v3820 = vpack.c.b16 %v3184, %v3180
        %v3821 = vpack.c.b16 %v3185, %v3181
        %v3822 = vpack.c.b16 %v3190, %v3186
        %v3823 = vpack.c.b16 %v3191, %v3187
        %v3824 = vpack.c.b16 %v3192, %v3188
        %v3825 = vpack.c.b16 %v3193, %v3189
        %v3826 = vpack.c.b16 %v3198, %v3194
        %v3827 = vpack.c.b16 %v3199, %v3195
        %v3828 = vpack.c.b16 %v3200, %v3196
        %v3829 = vpack.c.b16 %v3201, %v3197
        %v3830 = vpack.c.b16 %v3206, %v3202
        %v3831 = vpack.c.b16 %v3207, %v3203
        %v3832 = vpack.c.b16 %v3208, %v3204
        %v3833 = vpack.c.b16 %v3209, %v3205
        %v3834 = vpack.c.b16 %v3214, %v3210
        %v3835 = vpack.c.b16 %v3215, %v3211
        %v3836 = vpack.c.b16 %v3216, %v3212
        %v3837 = vpack.c.b16 %v3217, %v3213
        %v3838 = vpack.c.b16 %v3222, %v3218
        %v3839 = vpack.c.b16 %v3223, %v3219
        %v3840 = vpack.c.b16 %v3224, %v3220
        %v3841 = vpack.c.b16 %v3225, %v3221
        %v3842 = vpack.c.b16 %v3230, %v3226
        %v3843 = vpack.c.b16 %v3231, %v3227
        %v3844 = vpack.c.b16 %v3232, %v3228
        %v3845 = vpack.c.b16 %v3233, %v3229
        %v3846 = vpack.c.b16 %v3238, %v3234
        %v3847 = vpack.c.b16 %v3239, %v3235
        %v3848 = vpack.c.b16 %v3240, %v3236
        %v3849 = vpack.c.b16 %v3241, %v3237
        %v3850 = vpack.c.b16 %v3246, %v3242
        %v3851 = vpack.c.b16 %v3247, %v3243
        %v3852 = vpack.c.b16 %v3248, %v3244
        %v3853 = vpack.c.b16 %v3249, %v3245
        %v3854 = vpack.c.b16 %v3254, %v3250
        %v3855 = vpack.c.b16 %v3255, %v3251
        %v3856 = vpack.c.b16 %v3256, %v3252
        %v3857 = vpack.c.b16 %v3257, %v3253
        %v3858 = vpack.c.b16 %v3262, %v3258
        %v3859 = vpack.c.b16 %v3263, %v3259
        %v3860 = vpack.c.b16 %v3264, %v3260
        %v3861 = vpack.c.b16 %v3265, %v3261
        %v3862 = vpack.c.b16 %v3270, %v3266
        %v3863 = vpack.c.b16 %v3271, %v3267
        %v3864 = vpack.c.b16 %v3272, %v3268
        %v3865 = vpack.c.b16 %v3273, %v3269
        %v3866 = vpack.c.b16 %v3278, %v3274
        %v3867 = vpack.c.b16 %v3279, %v3275
        %v3868 = vpack.c.b16 %v3280, %v3276
        %v3869 = vpack.c.b16 %v3281, %v3277
        %v3870 = vpack.c.b16 %v3286, %v3282
        %v3871 = vpack.c.b16 %v3287, %v3283
        %v3872 = vpack.c.b16 %v3288, %v3284
        %v3873 = vpack.c.b16 %v3289, %v3285
        %v3874 = vpack.c.b16 %v3294, %v3290
        %v3875 = vpack.c.b16 %v3295, %v3291
        %v3876 = vpack.c.b16 %v3296, %v3292
        %v3877 = vpack.c.b16 %v3297, %v3293
        %v3878 = vpack.c.b16 %v3302, %v3298
        %v3879 = vpack.c.b16 %v3303, %v3299
        %v3880 = vpack.c.b16 %v3304, %v3300
        %v3881 = vpack.c.b16 %v3305, %v3301
        %v3882 = vpack.c.b16 %v3310, %v3306
        %v3883 = vpack.c.b16 %v3311, %v3307
        %v3884 = vpack.c.b16 %v3312, %v3308
        %v3885 = vpack.c.b16 %v3313, %v3309
        %v3886 = vpack.c.b16 %v3318, %v3314
        %v3887 = vpack.c.b16 %v3319, %v3315
        %v3888 = vpack.c.b16 %v3320, %v3316
        %v3889 = vpack.c.b16 %v3321, %v3317
        %v3890 = vpack.c.b16 %v3326, %v3322
        %v3891 = vpack.c.b16 %v3327, %v3323
        %v3892 = vpack.c.b16 %v3328, %v3324
        %v3893 = vpack.c.b16 %v3329, %v3325
        %v3894 = vpack.c.b16 %v3334, %v3330
        %v3895 = vpack.c.b16 %v3335, %v3331
        %v3896 = vpack.c.b16 %v3336, %v3332
        %v3897 = vpack.c.b16 %v3337, %v3333
        %v3898 = vpack.c.b16 %v3342, %v3338
        %v3899 = vpack.c.b16 %v3343, %v3339
        %v3900 = vpack.c.b16 %v3344, %v3340
        %v3901 = vpack.c.b16 %v3345, %v3341
        %v3902 = vpack.c.b16 %v3350, %v3346
        %v3903 = vpack.c.b16 %v3351, %v3347
        %v3904 = vpack.c.b16 %v3352, %v3348
        %v3905 = vpack.c.b16 %v3353, %v3349
        %v3906 = vpack.c.b16 %v3358, %v3354
        %v3907 = vpack.c.b16 %v3359, %v3355
        %v3908 = vpack.c.b16 %v3360, %v3356
        %v3909 = vpack.c.b16 %v3361, %v3357
        %v3910 = vpack.c.b16 %v3366, %v3362
        %v3911 = vpack.c.b16 %v3367, %v3363
        %v3912 = vpack.c.b16 %v3368, %v3364
        %v3913 = vpack.c.b16 %v3369, %v3365
        %v3914 = vpack.c.b16 %v3374, %v3370
        %v3915 = vpack.c.b16 %v3375, %v3371
        %v3916 = vpack.c.b16 %v3376, %v3372
        %v3917 = vpack.c.b16 %v3377, %v3373
        %v3918 = vpack.c.b16 %v3382, %v3378
        %v3919 = vpack.c.b16 %v3383, %v3379
        %v3920 = vpack.c.b16 %v3384, %v3380
        %v3921 = vpack.c.b16 %v3385, %v3381
        %v3922 = vpack.c.b16 %v3390, %v3386
        %v3923 = vpack.c.b16 %v3391, %v3387
        %v3924 = vpack.c.b16 %v3392, %v3388
        %v3925 = vpack.c.b16 %v3393, %v3389
        %v3926 = vpack.c.b16 %v3398, %v3394
        %v3927 = vpack.c.b16 %v3399, %v3395
        %v3928 = vpack.c.b16 %v3400, %v3396
        %v3929 = vpack.c.b16 %v3401, %v3397
        %v3930 = vpack.c.b16 %v3406, %v3402
        %v3931 = vpack.c.b16 %v3407, %v3403
        %v3932 = vpack.c.b16 %v3408, %v3404
        %v3933 = vpack.c.b16 %v3409, %v3405
        %v3934 = vpack.c.b16 %v3414, %v3410
        %v3935 = vpack.c.b16 %v3415, %v3411
        %v3936 = vpack.c.b16 %v3416, %v3412
        %v3937 = vpack.c.b16 %v3417, %v3413
        %v3938 = vpack.c.b16 %v3422, %v3418
        %v3939 = vpack.c.b16 %v3423, %v3419
        %v3940 = vpack.c.b16 %v3424, %v3420
        %v3941 = vpack.c.b16 %v3425, %v3421
        %v3942 = vpack.c.b16 %v3430, %v3426
        %v3943 = vpack.c.b16 %v3431, %v3427
        %v3944 = vpack.c.b16 %v3432, %v3428
        %v3945 = vpack.c.b16 %v3433, %v3429
        %4458 = vmatprep.subr.bf16.mxu0 %v3435
        %4459 = vmatpush1.bf16.msra.mxu0 %v3434
        %4460 = vmatprep.subr.bf16.mxu0 %v3439
        %4461 = vmatpush1.bf16.msra.mxu0 %v3438
        %4462 = vmatprep.subr.bf16.mxu0 %v3443
        %4463 = vmatpush1.bf16.msra.mxu0 %v3442
        %4464 = vmatprep.subr.bf16.mxu0 %v3447
        %4465 = vmatpush1.bf16.msra.mxu0 %v3446
        %4466 = vmatprep.subr.bf16.mxu0 %v3451
        %4467 = vmatpush1.bf16.msra.mxu0 %v3450
        %4468 = vmatprep.subr.bf16.mxu0 %v3455
        %4469 = vmatpush1.bf16.msra.mxu0 %v3454
        %4470 = vmatprep.subr.bf16.mxu0 %v3459
        %4471 = vmatpush1.bf16.msra.mxu0 %v3458
        %4472 = vmatprep.subr.bf16.mxu0 %v3463
        %4473 = vmatpush1.bf16.msra.mxu0 %v3462
        %4474 = vmatprep.subr.bf16.mxu0 %v3467
        %4475 = vmatpush1.bf16.msra.mxu0 %v3466
        %4476 = vmatprep.subr.bf16.mxu0 %v3471
        %4477 = vmatpush1.bf16.msra.mxu0 %v3470
        %4478 = vmatprep.subr.bf16.mxu0 %v3475
        %4479 = vmatpush1.bf16.msra.mxu0 %v3474
        %4480 = vmatprep.subr.bf16.mxu0 %v3479
        %4481 = vmatpush1.bf16.msra.mxu0 %v3478
        %4482 = vmatprep.subr.bf16.mxu0 %v3483
        %4483 = vmatpush1.bf16.msra.mxu0 %v3482
        %4484 = vmatprep.subr.bf16.mxu0 %v3487
        %4485 = vmatpush1.bf16.msra.mxu0 %v3486
        %4486 = vmatprep.subr.bf16.mxu0 %v3491
        %4487 = vmatpush1.bf16.msra.mxu0 %v3490
        %4488 = vmatprep.subr.bf16.mxu0 %v3495
        %4489 = vmatpush1.bf16.msra.mxu0 %v3494
        %4490 = vmatprep.mubr.bf16.mxu0 %v1867
        %4491 = vmatmul.mubr.bf16.gmra.mrb[0].mxu0 %v1866
        %v4492 = vpop.f32.mrb[0].mxu0
        %v4493 = vadd.f32 %v1801, %v4492
        %v4494 = vpop.f32.mrb[0].mxu0
        %v4495 = vadd.f32 %v1805, %v4494
        %v4496 = vpop.f32.mrb[0].mxu0
        %v4497 = vadd.f32 %v1801, %v4496
        %v4498 = vpop.f32.mrb[0].mxu0
        %v4499 = vadd.f32 %v1805, %v4498
        %4500 = vdwg.mxu0
        %4501 = vmatprep.subr.bf16.mxu0 %v3499
        %4502 = vmatpush1.bf16.msra.mxu0 %v3498
        %4503 = vmatprep.subr.bf16.mxu0 %v3503
        %4504 = vmatpush1.bf16.msra.mxu0 %v3502
        %4505 = vmatprep.subr.bf16.mxu0 %v3507
        %4506 = vmatpush1.bf16.msra.mxu0 %v3506
        %4507 = vmatprep.subr.bf16.mxu0 %v3511
        %4508 = vmatpush1.bf16.msra.mxu0 %v3510
        %4509 = vmatprep.subr.bf16.mxu0 %v3515
        %4510 = vmatpush1.bf16.msra.mxu0 %v3514
        %4511 = vmatprep.subr.bf16.mxu0 %v3519
        %4512 = vmatpush1.bf16.msra.mxu0 %v3518
        %4513 = vmatprep.subr.bf16.mxu0 %v3523
        %4514 = vmatpush1.bf16.msra.mxu0 %v3522
        %4515 = vmatprep.subr.bf16.mxu0 %v3527
        %4516 = vmatpush1.bf16.msra.mxu0 %v3526
        %4517 = vmatprep.subr.bf16.mxu0 %v3531
        %4518 = vmatpush1.bf16.msra.mxu0 %v3530
        %4519 = vmatprep.subr.bf16.mxu0 %v3535
        %4520 = vmatpush1.bf16.msra.mxu0 %v3534
        %4521 = vmatprep.subr.bf16.mxu0 %v3539
        %4522 = vmatpush1.bf16.msra.mxu0 %v3538
        %4523 = vmatprep.subr.bf16.mxu0 %v3543
        %4524 = vmatpush1.bf16.msra.mxu0 %v3542
        %4525 = vmatprep.subr.bf16.mxu0 %v3547
        %4526 = vmatpush1.bf16.msra.mxu0 %v3546
        %4527 = vmatprep.subr.bf16.mxu0 %v3551
        %4528 = vmatpush1.bf16.msra.mxu0 %v3550
        %4529 = vmatprep.subr.bf16.mxu0 %v3555
        %4530 = vmatpush1.bf16.msra.mxu0 %v3554
        %4531 = vmatprep.subr.bf16.mxu0 %v3559
        %4532 = vmatpush1.bf16.msra.mxu0 %v3558
        %4533 = vmatprep.mubr.bf16.mxu0 %v1869
        %4534 = vmatmul.mubr.bf16.gmra.mrb[0].mxu0 %v1868
        %v4535 = vpop.f32.mrb[0].mxu0
        %v4536 = vadd.f32 %v4493, %v4535
        %v4537 = vpop.f32.mrb[0].mxu0
        %v4538 = vadd.f32 %v4495, %v4537
        %v4539 = vpop.f32.mrb[0].mxu0
        %v4540 = vadd.f32 %v4497, %v4539
        %v4541 = vpop.f32.mrb[0].mxu0
        %v4542 = vadd.f32 %v4499, %v4541
        %4543 = vdwg.mxu0
        %4544 = vmatprep.subr.bf16.mxu0 %v3563
        %4545 = vmatpush1.bf16.msra.mxu0 %v3562
        %4546 = vmatprep.subr.bf16.mxu0 %v3567
        %4547 = vmatpush1.bf16.msra.mxu0 %v3566
        %4548 = vmatprep.subr.bf16.mxu0 %v3571
        %4549 = vmatpush1.bf16.msra.mxu0 %v3570
        %4550 = vmatprep.subr.bf16.mxu0 %v3575
        %4551 = vmatpush1.bf16.msra.mxu0 %v3574
        %4552 = vmatprep.subr.bf16.mxu0 %v3579
        %4553 = vmatpush1.bf16.msra.mxu0 %v3578
        %4554 = vmatprep.subr.bf16.mxu0 %v3583
        %4555 = vmatpush1.bf16.msra.mxu0 %v3582
        %4556 = vmatprep.subr.bf16.mxu0 %v3587
        %4557 = vmatpush1.bf16.msra.mxu0 %v3586
        %4558 = vmatprep.subr.bf16.mxu0 %v3591
        %4559 = vmatpush1.bf16.msra.mxu0 %v3590
        %4560 = vmatprep.subr.bf16.mxu0 %v3595
        %4561 = vmatpush1.bf16.msra.mxu0 %v3594
        %4562 = vmatprep.subr.bf16.mxu0 %v3599
        %4563 = vmatpush1.bf16.msra.mxu0 %v3598
        %4564 = vmatprep.subr.bf16.mxu0 %v3603
        %4565 = vmatpush1.bf16.msra.mxu0 %v3602
        %4566 = vmatprep.subr.bf16.mxu0 %v3607
        %4567 = vmatpush1.bf16.msra.mxu0 %v3606
        %4568 = vmatprep.subr.bf16.mxu0 %v3611
        %4569 = vmatpush1.bf16.msra.mxu0 %v3610
        %4570 = vmatprep.subr.bf16.mxu0 %v3615
        %4571 = vmatpush1.bf16.msra.mxu0 %v3614
        %4572 = vmatprep.subr.bf16.mxu0 %v3619
        %4573 = vmatpush1.bf16.msra.mxu0 %v3618
        %4574 = vmatprep.subr.bf16.mxu0 %v3623
        %4575 = vmatpush1.bf16.msra.mxu0 %v3622
        %4576 = vmatprep.mubr.bf16.mxu0 %v1871
        %4577 = vmatmul.mubr.bf16.gmra.mrb[0].mxu0 %v1870
        %v4578 = vpop.f32.mrb[0].mxu0
        %v4579 = vadd.f32 %v4536, %v4578
        %v4580 = vpop.f32.mrb[0].mxu0
        %v4581 = vadd.f32 %v4538, %v4580
        %v4582 = vpop.f32.mrb[0].mxu0
        %v4583 = vadd.f32 %v4540, %v4582
        %v4584 = vpop.f32.mrb[0].mxu0
        %v4585 = vadd.f32 %v4542, %v4584
        %4586 = vdwg.mxu0
        %4587 = vmatprep.subr.bf16.mxu0 %v3627
        %4588 = vmatpush1.bf16.msra.mxu0 %v3626
        %4589 = vmatprep.subr.bf16.mxu0 %v3631
        %4590 = vmatpush1.bf16.msra.mxu0 %v3630
        %4591 = vmatprep.subr.bf16.mxu0 %v3635
        %4592 = vmatpush1.bf16.msra.mxu0 %v3634
        %4593 = vmatprep.subr.bf16.mxu0 %v3639
        %4594 = vmatpush1.bf16.msra.mxu0 %v3638
        %4595 = vmatprep.subr.bf16.mxu0 %v3643
        %4596 = vmatpush1.bf16.msra.mxu0 %v3642
        %4597 = vmatprep.subr.bf16.mxu0 %v3647
        %4598 = vmatpush1.bf16.msra.mxu0 %v3646
        %4599 = vmatprep.subr.bf16.mxu0 %v3651
        %4600 = vmatpush1.bf16.msra.mxu0 %v3650
        %4601 = vmatprep.subr.bf16.mxu0 %v3655
        %4602 = vmatpush1.bf16.msra.mxu0 %v3654
        %4603 = vmatprep.subr.bf16.mxu0 %v3659
        %4604 = vmatpush1.bf16.msra.mxu0 %v3658
        %4605 = vmatprep.subr.bf16.mxu0 %v3663
        %4606 = vmatpush1.bf16.msra.mxu0 %v3662
        %4607 = vmatprep.subr.bf16.mxu0 %v3667
        %4608 = vmatpush1.bf16.msra.mxu0 %v3666
        %4609 = vmatprep.subr.bf16.mxu0 %v3671
        %4610 = vmatpush1.bf16.msra.mxu0 %v3670
        %4611 = vmatprep.subr.bf16.mxu0 %v3675
        %4612 = vmatpush1.bf16.msra.mxu0 %v3674
        %4613 = vmatprep.subr.bf16.mxu0 %v3679
        %4614 = vmatpush1.bf16.msra.mxu0 %v3678
        %4615 = vmatprep.subr.bf16.mxu0 %v3683
        %4616 = vmatpush1.bf16.msra.mxu0 %v3682
        %4617 = vmatprep.subr.bf16.mxu0 %v3687
        %4618 = vmatpush1.bf16.msra.mxu0 %v3686
        %4619 = vmatprep.mubr.bf16.mxu0 %v1873
        %4620 = vmatmul.mubr.bf16.gmra.mrb[0].mxu0 %v1872
        %v4621 = vpop.f32.mrb[0].mxu0
        %v4622 = vadd.f32 %v4579, %v4621
        %v4623 = vpop.f32.mrb[0].mxu0
        %v4624 = vadd.f32 %v4581, %v4623
        %v4625 = vpop.f32.mrb[0].mxu0
        %v4626 = vadd.f32 %v4583, %v4625
        %v4627 = vpop.f32.mrb[0].mxu0
        %v4628 = vadd.f32 %v4585, %v4627
        %4629 = vdwg.mxu0
        %4630 = vmatprep.subr.bf16.mxu0 %v3691
        %4631 = vmatpush1.bf16.msra.mxu0 %v3690
        %4632 = vmatprep.subr.bf16.mxu0 %v3695
        %4633 = vmatpush1.bf16.msra.mxu0 %v3694
        %4634 = vmatprep.subr.bf16.mxu0 %v3699
        %4635 = vmatpush1.bf16.msra.mxu0 %v3698
        %4636 = vmatprep.subr.bf16.mxu0 %v3703
        %4637 = vmatpush1.bf16.msra.mxu0 %v3702
        %4638 = vmatprep.subr.bf16.mxu0 %v3707
        %4639 = vmatpush1.bf16.msra.mxu0 %v3706
        %4640 = vmatprep.subr.bf16.mxu0 %v3711
        %4641 = vmatpush1.bf16.msra.mxu0 %v3710
        %4642 = vmatprep.subr.bf16.mxu0 %v3715
        %4643 = vmatpush1.bf16.msra.mxu0 %v3714
        %4644 = vmatprep.subr.bf16.mxu0 %v3719
        %4645 = vmatpush1.bf16.msra.mxu0 %v3718
        %4646 = vmatprep.subr.bf16.mxu0 %v3723
        %4647 = vmatpush1.bf16.msra.mxu0 %v3722
        %4648 = vmatprep.subr.bf16.mxu0 %v3727
        %4649 = vmatpush1.bf16.msra.mxu0 %v3726
        %4650 = vmatprep.subr.bf16.mxu0 %v3731
        %4651 = vmatpush1.bf16.msra.mxu0 %v3730
        %4652 = vmatprep.subr.bf16.mxu0 %v3735
        %4653 = vmatpush1.bf16.msra.mxu0 %v3734
        %4654 = vmatprep.subr.bf16.mxu0 %v3739
        %4655 = vmatpush1.bf16.msra.mxu0 %v3738
        %4656 = vmatprep.subr.bf16.mxu0 %v3743
        %4657 = vmatpush1.bf16.msra.mxu0 %v3742
        %4658 = vmatprep.subr.bf16.mxu0 %v3747
        %4659 = vmatpush1.bf16.msra.mxu0 %v3746
        %4660 = vmatprep.subr.bf16.mxu0 %v3751
        %4661 = vmatpush1.bf16.msra.mxu0 %v3750
        %4662 = vmatprep.mubr.bf16.mxu0 %v1875
        %4663 = vmatmul.mubr.bf16.gmra.mrb[0].mxu0 %v1874
        %v4664 = vpop.f32.mrb[0].mxu0
        %v4665 = vadd.f32 %v4622, %v4664
        %v4666 = vpop.f32.mrb[0].mxu0
        %v4667 = vadd.f32 %v4624, %v4666
        %v4668 = vpop.f32.mrb[0].mxu0
        %v4669 = vadd.f32 %v4626, %v4668
        %v4670 = vpop.f32.mrb[0].mxu0
        %v4671 = vadd.f32 %v4628, %v4670
        %4672 = vdwg.mxu0
        %4673 = vmatprep.subr.bf16.mxu0 %v3755
        %4674 = vmatpush1.bf16.msra.mxu0 %v3754
        %4675 = vmatprep.subr.bf16.mxu0 %v3759
        %4676 = vmatpush1.bf16.msra.mxu0 %v3758
        %4677 = vmatprep.subr.bf16.mxu0 %v3763
        %4678 = vmatpush1.bf16.msra.mxu0 %v3762
        %4679 = vmatprep.subr.bf16.mxu0 %v3767
        %4680 = vmatpush1.bf16.msra.mxu0 %v3766
        %4681 = vmatprep.subr.bf16.mxu0 %v3771
        %4682 = vmatpush1.bf16.msra.mxu0 %v3770
        %4683 = vmatprep.subr.bf16.mxu0 %v3775
        %4684 = vmatpush1.bf16.msra.mxu0 %v3774
        %4685 = vmatprep.subr.bf16.mxu0 %v3779
        %4686 = vmatpush1.bf16.msra.mxu0 %v3778
        %4687 = vmatprep.subr.bf16.mxu0 %v3783
        %4688 = vmatpush1.bf16.msra.mxu0 %v3782
        %4689 = vmatprep.subr.bf16.mxu0 %v3787
        %4690 = vmatpush1.bf16.msra.mxu0 %v3786
        %4691 = vmatprep.subr.bf16.mxu0 %v3791
        %4692 = vmatpush1.bf16.msra.mxu0 %v3790
        %4693 = vmatprep.subr.bf16.mxu0 %v3795
        %4694 = vmatpush1.bf16.msra.mxu0 %v3794
        %4695 = vmatprep.subr.bf16.mxu0 %v3799
        %4696 = vmatpush1.bf16.msra.mxu0 %v3798
        %4697 = vmatprep.subr.bf16.mxu0 %v3803
        %4698 = vmatpush1.bf16.msra.mxu0 %v3802
        %4699 = vmatprep.subr.bf16.mxu0 %v3807
        %4700 = vmatpush1.bf16.msra.mxu0 %v3806
        %4701 = vmatprep.subr.bf16.mxu0 %v3811
        %4702 = vmatpush1.bf16.msra.mxu0 %v3810
        %4703 = vmatprep.subr.bf16.mxu0 %v3815
        %4704 = vmatpush1.bf16.msra.mxu0 %v3814
        %4705 = vmatprep.mubr.bf16.mxu0 %v1877
        %4706 = vmatmul.mubr.bf16.gmra.mrb[0].mxu0 %v1876
        %v4707 = vpop.f32.mrb[0].mxu0
        %v4708 = vadd.f32 %v4665, %v4707
        %v4709 = vpop.f32.mrb[0].mxu0
        %v4710 = vadd.f32 %v4667, %v4709
        %v4711 = vpop.f32.mrb[0].mxu0
        %v4712 = vadd.f32 %v4669, %v4711
        %v4713 = vpop.f32.mrb[0].mxu0
        %v4714 = vadd.f32 %v4671, %v4713
        %4715 = vdwg.mxu0
        %4716 = vmatprep.subr.bf16.mxu0 %v3819
        %4717 = vmatpush1.bf16.msra.mxu0 %v3818
        %4718 = vmatprep.subr.bf16.mxu0 %v3823
        %4719 = vmatpush1.bf16.msra.mxu0 %v3822
        %4720 = vmatprep.subr.bf16.mxu0 %v3827
        %4721 = vmatpush1.bf16.msra.mxu0 %v3826
        %4722 = vmatprep.subr.bf16.mxu0 %v3831
        %4723 = vmatpush1.bf16.msra.mxu0 %v3830
        %4724 = vmatprep.subr.bf16.mxu0 %v3835
        %4725 = vmatpush1.bf16.msra.mxu0 %v3834
        %4726 = vmatprep.subr.bf16.mxu0 %v3839
        %4727 = vmatpush1.bf16.msra.mxu0 %v3838
        %4728 = vmatprep.subr.bf16.mxu0 %v3843
        %4729 = vmatpush1.bf16.msra.mxu0 %v3842
        %4730 = vmatprep.subr.bf16.mxu0 %v3847
        %4731 = vmatpush1.bf16.msra.mxu0 %v3846
        %4732 = vmatprep.subr.bf16.mxu0 %v3851
        %4733 = vmatpush1.bf16.msra.mxu0 %v3850
        %4734 = vmatprep.subr.bf16.mxu0 %v3855
        %4735 = vmatpush1.bf16.msra.mxu0 %v3854
        %4736 = vmatprep.subr.bf16.mxu0 %v3859
        %4737 = vmatpush1.bf16.msra.mxu0 %v3858
        %4738 = vmatprep.subr.bf16.mxu0 %v3863
        %4739 = vmatpush1.bf16.msra.mxu0 %v3862
        %4740 = vmatprep.subr.bf16.mxu0 %v3867
        %4741 = vmatpush1.bf16.msra.mxu0 %v3866
        %4742 = vmatprep.subr.bf16.mxu0 %v3871
        %4743 = vmatpush1.bf16.msra.mxu0 %v3870
        %4744 = vmatprep.subr.bf16.mxu0 %v3875
        %4745 = vmatpush1.bf16.msra.mxu0 %v3874
        %4746 = vmatprep.subr.bf16.mxu0 %v3879
        %4747 = vmatpush1.bf16.msra.mxu0 %v3878
        %4748 = vmatprep.mubr.bf16.mxu0 %v1879
        %4749 = vmatmul.mubr.bf16.gmra.mrb[0].mxu0 %v1878
        %v4750 = vpop.f32.mrb[0].mxu0
        %v4751 = vadd.f32 %v4708, %v4750
        %v4752 = vpop.f32.mrb[0].mxu0
        %v4753 = vadd.f32 %v4710, %v4752
        %v4754 = vpop.f32.mrb[0].mxu0
        %v4755 = vadd.f32 %v4712, %v4754
        %v4756 = vpop.f32.mrb[0].mxu0
        %v4757 = vadd.f32 %v4714, %v4756
        %4758 = vdwg.mxu0
        %4759 = vmatprep.subr.bf16.mxu0 %v3883
        %4760 = vmatpush1.bf16.msra.mxu0 %v3882
        %4761 = vmatprep.subr.bf16.mxu0 %v3887
        %4762 = vmatpush1.bf16.msra.mxu0 %v3886
        %4763 = vmatprep.subr.bf16.mxu0 %v3891
        %4764 = vmatpush1.bf16.msra.mxu0 %v3890
        %4765 = vmatprep.subr.bf16.mxu0 %v3895
        %4766 = vmatpush1.bf16.msra.mxu0 %v3894
        %4767 = vmatprep.subr.bf16.mxu0 %v3899
        %4768 = vmatpush1.bf16.msra.mxu0 %v3898
        %4769 = vmatprep.subr.bf16.mxu0 %v3903
        %4770 = vmatpush1.bf16.msra.mxu0 %v3902
        %4771 = vmatprep.subr.bf16.mxu0 %v3907
        %4772 = vmatpush1.bf16.msra.mxu0 %v3906
        %4773 = vmatprep.subr.bf16.mxu0 %v3911
        %4774 = vmatpush1.bf16.msra.mxu0 %v3910
        %4775 = vmatprep.subr.bf16.mxu0 %v3915
        %4776 = vmatpush1.bf16.msra.mxu0 %v3914
        %4777 = vmatprep.subr.bf16.mxu0 %v3919
        %4778 = vmatpush1.bf16.msra.mxu0 %v3918
        %4779 = vmatprep.subr.bf16.mxu0 %v3923
        %4780 = vmatpush1.bf16.msra.mxu0 %v3922
        %4781 = vmatprep.subr.bf16.mxu0 %v3927
        %4782 = vmatpush1.bf16.msra.mxu0 %v3926
        %4783 = vmatprep.subr.bf16.mxu0 %v3931
        %4784 = vmatpush1.bf16.msra.mxu0 %v3930
        %4785 = vmatprep.subr.bf16.mxu0 %v3935
        %4786 = vmatpush1.bf16.msra.mxu0 %v3934
        %4787 = vmatprep.subr.bf16.mxu0 %v3939
        %4788 = vmatpush1.bf16.msra.mxu0 %v3938
        %4789 = vmatprep.subr.bf16.mxu0 %v3943
        %4790 = vmatpush1.bf16.msra.mxu0 %v3942
        %4791 = vmatprep.mubr.bf16.mxu0 %v1881
        %4792 = vmatmul.mubr.bf16.gmra.mrb[0].mxu0 %v1880
        %v4793 = vpop.f32.mrb[0].mxu0
        %v4794 = vadd.f32 %v4751, %v4793
        %v4795 = vpop.f32.mrb[0].mxu0
        %v4796 = vadd.f32 %v4753, %v4795
        %v4797 = vpop.f32.mrb[0].mxu0
        %v4798 = vadd.f32 %v4755, %v4797
        %v4799 = vpop.f32.mrb[0].mxu0
        %v4800 = vadd.f32 %v4757, %v4799
        %4801 = vdwg.mxu0
        %4802 = vmatprep.subr.bf16.mxu0 %v3437
        %4803 = vmatpush1.bf16.msra.mxu0 %v3436
        %4804 = vmatprep.subr.bf16.mxu0 %v3441
        %4805 = vmatpush1.bf16.msra.mxu0 %v3440
        %4806 = vmatprep.subr.bf16.mxu0 %v3445
        %4807 = vmatpush1.bf16.msra.mxu0 %v3444
        %4808 = vmatprep.subr.bf16.mxu0 %v3449
        %4809 = vmatpush1.bf16.msra.mxu0 %v3448
        %4810 = vmatprep.subr.bf16.mxu0 %v3453
        %4811 = vmatpush1.bf16.msra.mxu0 %v3452
        %4812 = vmatprep.subr.bf16.mxu0 %v3457
        %4813 = vmatpush1.bf16.msra.mxu0 %v3456
        %4814 = vmatprep.subr.bf16.mxu0 %v3461
        %4815 = vmatpush1.bf16.msra.mxu0 %v3460
        %4816 = vmatprep.subr.bf16.mxu0 %v3465
        %4817 = vmatpush1.bf16.msra.mxu0 %v3464
        %4818 = vmatprep.subr.bf16.mxu0 %v3469
        %4819 = vmatpush1.bf16.msra.mxu0 %v3468
        %4820 = vmatprep.subr.bf16.mxu0 %v3473
        %4821 = vmatpush1.bf16.msra.mxu0 %v3472
        %4822 = vmatprep.subr.bf16.mxu0 %v3477
        %4823 = vmatpush1.bf16.msra.mxu0 %v3476
        %4824 = vmatprep.subr.bf16.mxu0 %v3481
        %4825 = vmatpush1.bf16.msra.mxu0 %v3480
        %4826 = vmatprep.subr.bf16.mxu0 %v3485
        %4827 = vmatpush1.bf16.msra.mxu0 %v3484
        %4828 = vmatprep.subr.bf16.mxu0 %v3489
        %4829 = vmatpush1.bf16.msra.mxu0 %v3488
        %4830 = vmatprep.subr.bf16.mxu0 %v3493
        %4831 = vmatpush1.bf16.msra.mxu0 %v3492
        %4832 = vmatprep.subr.bf16.mxu0 %v3497
        %4833 = vmatpush1.bf16.msra.mxu0 %v3496
        %4834 = vmatprep.mubr.bf16.mxu0 %v1867
        %4835 = vmatmul.mubr.bf16.gmra.mrb[0].mxu0 %v1866
        %v4836 = vpop.f32.mrb[0].mxu0
        %v4837 = vadd.f32 %v1809, %v4836
        %v4838 = vpop.f32.mrb[0].mxu0
        %v4839 = vadd.f32 %v1813, %v4838
        %v4840 = vpop.f32.mrb[0].mxu0
        %v4841 = vadd.f32 %v1809, %v4840
        %v4842 = vpop.f32.mrb[0].mxu0
        %v4843 = vadd.f32 %v1813, %v4842
        %4844 = vdwg.mxu0
        %4845 = vmatprep.subr.bf16.mxu0 %v3501
        %4846 = vmatpush1.bf16.msra.mxu0 %v3500
        %4847 = vmatprep.subr.bf16.mxu0 %v3505
        %4848 = vmatpush1.bf16.msra.mxu0 %v3504
        %4849 = vmatprep.subr.bf16.mxu0 %v3509
        %4850 = vmatpush1.bf16.msra.mxu0 %v3508
        %4851 = vmatprep.subr.bf16.mxu0 %v3513
        %4852 = vmatpush1.bf16.msra.mxu0 %v3512
        %4853 = vmatprep.subr.bf16.mxu0 %v3517
        %4854 = vmatpush1.bf16.msra.mxu0 %v3516
        %4855 = vmatprep.subr.bf16.mxu0 %v3521
        %4856 = vmatpush1.bf16.msra.mxu0 %v3520
        %4857 = vmatprep.subr.bf16.mxu0 %v3525
        %4858 = vmatpush1.bf16.msra.mxu0 %v3524
        %4859 = vmatprep.subr.bf16.mxu0 %v3529
        %4860 = vmatpush1.bf16.msra.mxu0 %v3528
        %4861 = vmatprep.subr.bf16.mxu0 %v3533
        %4862 = vmatpush1.bf16.msra.mxu0 %v3532
        %4863 = vmatprep.subr.bf16.mxu0 %v3537
        %4864 = vmatpush1.bf16.msra.mxu0 %v3536
        %4865 = vmatprep.subr.bf16.mxu0 %v3541
        %4866 = vmatpush1.bf16.msra.mxu0 %v3540
        %4867 = vmatprep.subr.bf16.mxu0 %v3545
        %4868 = vmatpush1.bf16.msra.mxu0 %v3544
        %4869 = vmatprep.subr.bf16.mxu0 %v3549
        %4870 = vmatpush1.bf16.msra.mxu0 %v3548
        %4871 = vmatprep.subr.bf16.mxu0 %v3553
        %4872 = vmatpush1.bf16.msra.mxu0 %v3552
        %4873 = vmatprep.subr.bf16.mxu0 %v3557
        %4874 = vmatpush1.bf16.msra.mxu0 %v3556
        %4875 = vmatprep.subr.bf16.mxu0 %v3561
        %4876 = vmatpush1.bf16.msra.mxu0 %v3560
        %4877 = vmatprep.mubr.bf16.mxu0 %v1869
        %4878 = vmatmul.mubr.bf16.gmra.mrb[0].mxu0 %v1868
        %v4879 = vpop.f32.mrb[0].mxu0
        %v4880 = vadd.f32 %v4837, %v4879
        %v4881 = vpop.f32.mrb[0].mxu0
        %v4882 = vadd.f32 %v4839, %v4881
        %v4883 = vpop.f32.mrb[0].mxu0
        %v4884 = vadd.f32 %v4841, %v4883
        %v4885 = vpop.f32.mrb[0].mxu0
        %v4886 = vadd.f32 %v4843, %v4885
        %4887 = vdwg.mxu0
        %4888 = vmatprep.subr.bf16.mxu0 %v3565
        %4889 = vmatpush1.bf16.msra.mxu0 %v3564
        %4890 = vmatprep.subr.bf16.mxu0 %v3569
        %4891 = vmatpush1.bf16.msra.mxu0 %v3568
        %4892 = vmatprep.subr.bf16.mxu0 %v3573
        %4893 = vmatpush1.bf16.msra.mxu0 %v3572
        %4894 = vmatprep.subr.bf16.mxu0 %v3577
        %4895 = vmatpush1.bf16.msra.mxu0 %v3576
        %4896 = vmatprep.subr.bf16.mxu0 %v3581
        %4897 = vmatpush1.bf16.msra.mxu0 %v3580
        %4898 = vmatprep.subr.bf16.mxu0 %v3585
        %4899 = vmatpush1.bf16.msra.mxu0 %v3584
        %4900 = vmatprep.subr.bf16.mxu0 %v3589
        %4901 = vmatpush1.bf16.msra.mxu0 %v3588
        %4902 = vmatprep.subr.bf16.mxu0 %v3593
        %4903 = vmatpush1.bf16.msra.mxu0 %v3592
        %4904 = vmatprep.subr.bf16.mxu0 %v3597
        %4905 = vmatpush1.bf16.msra.mxu0 %v3596
        %4906 = vmatprep.subr.bf16.mxu0 %v3601
        %4907 = vmatpush1.bf16.msra.mxu0 %v3600
        %4908 = vmatprep.subr.bf16.mxu0 %v3605
        %4909 = vmatpush1.bf16.msra.mxu0 %v3604
        %4910 = vmatprep.subr.bf16.mxu0 %v3609
        %4911 = vmatpush1.bf16.msra.mxu0 %v3608
        %4912 = vmatprep.subr.bf16.mxu0 %v3613
        %4913 = vmatpush1.bf16.msra.mxu0 %v3612
        %4914 = vmatprep.subr.bf16.mxu0 %v3617
        %4915 = vmatpush1.bf16.msra.mxu0 %v3616
        %4916 = vmatprep.subr.bf16.mxu0 %v3621
        %4917 = vmatpush1.bf16.msra.mxu0 %v3620
        %4918 = vmatprep.subr.bf16.mxu0 %v3625
        %4919 = vmatpush1.bf16.msra.mxu0 %v3624
        %4920 = vmatprep.mubr.bf16.mxu0 %v1871
        %4921 = vmatmul.mubr.bf16.gmra.mrb[0].mxu0 %v1870
        %v4922 = vpop.f32.mrb[0].mxu0
        %v4923 = vadd.f32 %v4880, %v4922
        %v4924 = vpop.f32.mrb[0].mxu0
        %v4925 = vadd.f32 %v4882, %v4924
        %v4926 = vpop.f32.mrb[0].mxu0
        %v4927 = vadd.f32 %v4884, %v4926
        %v4928 = vpop.f32.mrb[0].mxu0
        %v4929 = vadd.f32 %v4886, %v4928
        %4930 = vdwg.mxu0
        %4931 = vmatprep.subr.bf16.mxu0 %v3629
        %4932 = vmatpush1.bf16.msra.mxu0 %v3628
        %4933 = vmatprep.subr.bf16.mxu0 %v3633
        %4934 = vmatpush1.bf16.msra.mxu0 %v3632
        %4935 = vmatprep.subr.bf16.mxu0 %v3637
        %4936 = vmatpush1.bf16.msra.mxu0 %v3636
        %4937 = vmatprep.subr.bf16.mxu0 %v3641
        %4938 = vmatpush1.bf16.msra.mxu0 %v3640
        %4939 = vmatprep.subr.bf16.mxu0 %v3645
        %4940 = vmatpush1.bf16.msra.mxu0 %v3644
        %4941 = vmatprep.subr.bf16.mxu0 %v3649
        %4942 = vmatpush1.bf16.msra.mxu0 %v3648
        %4943 = vmatprep.subr.bf16.mxu0 %v3653
        %4944 = vmatpush1.bf16.msra.mxu0 %v3652
        %4945 = vmatprep.subr.bf16.mxu0 %v3657
        %4946 = vmatpush1.bf16.msra.mxu0 %v3656
        %4947 = vmatprep.subr.bf16.mxu0 %v3661
        %4948 = vmatpush1.bf16.msra.mxu0 %v3660
        %4949 = vmatprep.subr.bf16.mxu0 %v3665
        %4950 = vmatpush1.bf16.msra.mxu0 %v3664
        %4951 = vmatprep.subr.bf16.mxu0 %v3669
        %4952 = vmatpush1.bf16.msra.mxu0 %v3668
        %4953 = vmatprep.subr.bf16.mxu0 %v3673
        %4954 = vmatpush1.bf16.msra.mxu0 %v3672
        %4955 = vmatprep.subr.bf16.mxu0 %v3677
        %4956 = vmatpush1.bf16.msra.mxu0 %v3676
        %4957 = vmatprep.subr.bf16.mxu0 %v3681
        %4958 = vmatpush1.bf16.msra.mxu0 %v3680
        %4959 = vmatprep.subr.bf16.mxu0 %v3685
        %4960 = vmatpush1.bf16.msra.mxu0 %v3684
        %4961 = vmatprep.subr.bf16.mxu0 %v3689
        %4962 = vmatpush1.bf16.msra.mxu0 %v3688
        %4963 = vmatprep.mubr.bf16.mxu0 %v1873
        %4964 = vmatmul.mubr.bf16.gmra.mrb[0].mxu0 %v1872
        %v4965 = vpop.f32.mrb[0].mxu0
        %v4966 = vadd.f32 %v4923, %v4965
        %v4967 = vpop.f32.mrb[0].mxu0
        %v4968 = vadd.f32 %v4925, %v4967
        %v4969 = vpop.f32.mrb[0].mxu0
        %v4970 = vadd.f32 %v4927, %v4969
        %v4971 = vpop.f32.mrb[0].mxu0
        %v4972 = vadd.f32 %v4929, %v4971
        %4973 = vdwg.mxu0
        %4974 = vmatprep.subr.bf16.mxu0 %v3693
        %4975 = vmatpush1.bf16.msra.mxu0 %v3692
        %4976 = vmatprep.subr.bf16.mxu0 %v3697
        %4977 = vmatpush1.bf16.msra.mxu0 %v3696
        %4978 = vmatprep.subr.bf16.mxu0 %v3701
        %4979 = vmatpush1.bf16.msra.mxu0 %v3700
        %4980 = vmatprep.subr.bf16.mxu0 %v3705
        %4981 = vmatpush1.bf16.msra.mxu0 %v3704
        %4982 = vmatprep.subr.bf16.mxu0 %v3709
        %4983 = vmatpush1.bf16.msra.mxu0 %v3708
        %4984 = vmatprep.subr.bf16.mxu0 %v3713
        %4985 = vmatpush1.bf16.msra.mxu0 %v3712
        %4986 = vmatprep.subr.bf16.mxu0 %v3717
        %4987 = vmatpush1.bf16.msra.mxu0 %v3716
        %4988 = vmatprep.subr.bf16.mxu0 %v3721
        %4989 = vmatpush1.bf16.msra.mxu0 %v3720
        %4990 = vmatprep.subr.bf16.mxu0 %v3725
        %4991 = vmatpush1.bf16.msra.mxu0 %v3724
        %4992 = vmatprep.subr.bf16.mxu0 %v3729
        %4993 = vmatpush1.bf16.msra.mxu0 %v3728
        %4994 = vmatprep.subr.bf16.mxu0 %v3733
        %4995 = vmatpush1.bf16.msra.mxu0 %v3732
        %4996 = vmatprep.subr.bf16.mxu0 %v3737
        %4997 = vmatpush1.bf16.msra.mxu0 %v3736
        %4998 = vmatprep.subr.bf16.mxu0 %v3741
        %4999 = vmatpush1.bf16.msra.mxu0 %v3740
        %5000 = vmatprep.subr.bf16.mxu0 %v3745
        %5001 = vmatpush1.bf16.msra.mxu0 %v3744
        %5002 = vmatprep.subr.bf16.mxu0 %v3749
        %5003 = vmatpush1.bf16.msra.mxu0 %v3748
        %5004 = vmatprep.subr.bf16.mxu0 %v3753
        %5005 = vmatpush1.bf16.msra.mxu0 %v3752
        %5006 = vmatprep.mubr.bf16.mxu0 %v1875
        %5007 = vmatmul.mubr.bf16.gmra.mrb[0].mxu0 %v1874
        %v5008 = vpop.f32.mrb[0].mxu0
        %v5009 = vadd.f32 %v4966, %v5008
        %v5010 = vpop.f32.mrb[0].mxu0
        %v5011 = vadd.f32 %v4968, %v5010
        %v5012 = vpop.f32.mrb[0].mxu0
        %v5013 = vadd.f32 %v4970, %v5012
        %v5014 = vpop.f32.mrb[0].mxu0
        %v5015 = vadd.f32 %v4972, %v5014
        %5016 = vdwg.mxu0
        %5017 = vmatprep.subr.bf16.mxu0 %v3757
        %5018 = vmatpush1.bf16.msra.mxu0 %v3756
        %5019 = vmatprep.subr.bf16.mxu0 %v3761
        %5020 = vmatpush1.bf16.msra.mxu0 %v3760
        %5021 = vmatprep.subr.bf16.mxu0 %v3765
        %5022 = vmatpush1.bf16.msra.mxu0 %v3764
        %5023 = vmatprep.subr.bf16.mxu0 %v3769
        %5024 = vmatpush1.bf16.msra.mxu0 %v3768
        %5025 = vmatprep.subr.bf16.mxu0 %v3773
        %5026 = vmatpush1.bf16.msra.mxu0 %v3772
        %5027 = vmatprep.subr.bf16.mxu0 %v3777
        %5028 = vmatpush1.bf16.msra.mxu0 %v3776
        %5029 = vmatprep.subr.bf16.mxu0 %v3781
        %5030 = vmatpush1.bf16.msra.mxu0 %v3780
        %5031 = vmatprep.subr.bf16.mxu0 %v3785
        %5032 = vmatpush1.bf16.msra.mxu0 %v3784
        %5033 = vmatprep.subr.bf16.mxu0 %v3789
        %5034 = vmatpush1.bf16.msra.mxu0 %v3788
        %5035 = vmatprep.subr.bf16.mxu0 %v3793
        %5036 = vmatpush1.bf16.msra.mxu0 %v3792
        %5037 = vmatprep.subr.bf16.mxu0 %v3797
        %5038 = vmatpush1.bf16.msra.mxu0 %v3796
        %5039 = vmatprep.subr.bf16.mxu0 %v3801
        %5040 = vmatpush1.bf16.msra.mxu0 %v3800
        %5041 = vmatprep.subr.bf16.mxu0 %v3805
        %5042 = vmatpush1.bf16.msra.mxu0 %v3804
        %5043 = vmatprep.subr.bf16.mxu0 %v3809
        %5044 = vmatpush1.bf16.msra.mxu0 %v3808
        %5045 = vmatprep.subr.bf16.mxu0 %v3813
        %5046 = vmatpush1.bf16.msra.mxu0 %v3812
        %5047 = vmatprep.subr.bf16.mxu0 %v3817
        %5048 = vmatpush1.bf16.msra.mxu0 %v3816
        %5049 = vmatprep.mubr.bf16.mxu0 %v1877
        %5050 = vmatmul.mubr.bf16.gmra.mrb[0].mxu0 %v1876
        %v5051 = vpop.f32.mrb[0].mxu0
        %v5052 = vadd.f32 %v5009, %v5051
        %v5053 = vpop.f32.mrb[0].mxu0
        %v5054 = vadd.f32 %v5011, %v5053
        %v5055 = vpop.f32.mrb[0].mxu0
        %v5056 = vadd.f32 %v5013, %v5055
        %v5057 = vpop.f32.mrb[0].mxu0
        %v5058 = vadd.f32 %v5015, %v5057
        %5059 = vdwg.mxu0
        %5060 = vmatprep.subr.bf16.mxu0 %v3821
        %5061 = vmatpush1.bf16.msra.mxu0 %v3820
        %5062 = vmatprep.subr.bf16.mxu0 %v3825
        %5063 = vmatpush1.bf16.msra.mxu0 %v3824
        %5064 = vmatprep.subr.bf16.mxu0 %v3829
        %5065 = vmatpush1.bf16.msra.mxu0 %v3828
        %5066 = vmatprep.subr.bf16.mxu0 %v3833
        %5067 = vmatpush1.bf16.msra.mxu0 %v3832
        %5068 = vmatprep.subr.bf16.mxu0 %v3837
        %5069 = vmatpush1.bf16.msra.mxu0 %v3836
        %5070 = vmatprep.subr.bf16.mxu0 %v3841
        %5071 = vmatpush1.bf16.msra.mxu0 %v3840
        %5072 = vmatprep.subr.bf16.mxu0 %v3845
        %5073 = vmatpush1.bf16.msra.mxu0 %v3844
        %5074 = vmatprep.subr.bf16.mxu0 %v3849
        %5075 = vmatpush1.bf16.msra.mxu0 %v3848
        %5076 = vmatprep.subr.bf16.mxu0 %v3853
        %5077 = vmatpush1.bf16.msra.mxu0 %v3852
        %5078 = vmatprep.subr.bf16.mxu0 %v3857
        %5079 = vmatpush1.bf16.msra.mxu0 %v3856
        %5080 = vmatprep.subr.bf16.mxu0 %v3861
        %5081 = vmatpush1.bf16.msra.mxu0 %v3860
        %5082 = vmatprep.subr.bf16.mxu0 %v3865
        %5083 = vmatpush1.bf16.msra.mxu0 %v3864
        %5084 = vmatprep.subr.bf16.mxu0 %v3869
        %5085 = vmatpush1.bf16.msra.mxu0 %v3868
        %5086 = vmatprep.subr.bf16.mxu0 %v3873
        %5087 = vmatpush1.bf16.msra.mxu0 %v3872
        %5088 = vmatprep.subr.bf16.mxu0 %v3877
        %5089 = vmatpush1.bf16.msra.mxu0 %v3876
        %5090 = vmatprep.subr.bf16.mxu0 %v3881
        %5091 = vmatpush1.bf16.msra.mxu0 %v3880
        %5092 = vmatprep.mubr.bf16.mxu0 %v1879
        %5093 = vmatmul.mubr.bf16.gmra.mrb[0].mxu0 %v1878
        %v5094 = vpop.f32.mrb[0].mxu0
        %v5095 = vadd.f32 %v5052, %v5094
        %v5096 = vpop.f32.mrb[0].mxu0
        %v5097 = vadd.f32 %v5054, %v5096
        %v5098 = vpop.f32.mrb[0].mxu0
        %v5099 = vadd.f32 %v5056, %v5098
        %v5100 = vpop.f32.mrb[0].mxu0
        %v5101 = vadd.f32 %v5058, %v5100
        %5102 = vdwg.mxu0
        %5103 = vmatprep.subr.bf16.mxu0 %v3885
        %5104 = vmatpush1.bf16.msra.mxu0 %v3884
        %5105 = vmatprep.subr.bf16.mxu0 %v3889
        %5106 = vmatpush1.bf16.msra.mxu0 %v3888
        %5107 = vmatprep.subr.bf16.mxu0 %v3893
        %5108 = vmatpush1.bf16.msra.mxu0 %v3892
        %5109 = vmatprep.subr.bf16.mxu0 %v3897
        %5110 = vmatpush1.bf16.msra.mxu0 %v3896
        %5111 = vmatprep.subr.bf16.mxu0 %v3901
        %5112 = vmatpush1.bf16.msra.mxu0 %v3900
        %5113 = vmatprep.subr.bf16.mxu0 %v3905
        %5114 = vmatpush1.bf16.msra.mxu0 %v3904
        %5115 = vmatprep.subr.bf16.mxu0 %v3909
        %5116 = vmatpush1.bf16.msra.mxu0 %v3908
        %5117 = vmatprep.subr.bf16.mxu0 %v3913
        %5118 = vmatpush1.bf16.msra.mxu0 %v3912
        %5119 = vmatprep.subr.bf16.mxu0 %v3917
        %5120 = vmatpush1.bf16.msra.mxu0 %v3916
        %5121 = vmatprep.subr.bf16.mxu0 %v3921
        %5122 = vmatpush1.bf16.msra.mxu0 %v3920
        %5123 = vmatprep.subr.bf16.mxu0 %v3925
        %5124 = vmatpush1.bf16.msra.mxu0 %v3924
        %5125 = vmatprep.subr.bf16.mxu0 %v3929
        %5126 = vmatpush1.bf16.msra.mxu0 %v3928
        %5127 = vmatprep.subr.bf16.mxu0 %v3933
        %5128 = vmatpush1.bf16.msra.mxu0 %v3932
        %5129 = vmatprep.subr.bf16.mxu0 %v3937
        %5130 = vmatpush1.bf16.msra.mxu0 %v3936
        %5131 = vmatprep.subr.bf16.mxu0 %v3941
        %5132 = vmatpush1.bf16.msra.mxu0 %v3940
        %5133 = vmatprep.subr.bf16.mxu0 %v3945
        %5134 = vmatpush1.bf16.msra.mxu0 %v3944
        %5135 = vmatprep.mubr.bf16.mxu0 %v1881
        %5136 = vmatmul.mubr.bf16.gmra.mrb[0].mxu0 %v1880
        %v5137 = vpop.f32.mrb[0].mxu0
        %v5138 = vadd.f32 %v5095, %v5137
        %v5139 = vpop.f32.mrb[0].mxu0
        %v5140 = vadd.f32 %v5097, %v5139
        %v5141 = vpop.f32.mrb[0].mxu0
        %v5142 = vadd.f32 %v5099, %v5141
        %v5143 = vpop.f32.mrb[0].mxu0
        %v5144 = vadd.f32 %v5101, %v5143
        %5145 = vdwg.mxu0
        %5146 = vst [vmem:[%s1252] sm:$0xff] %v4794
        %5147 = vst [vmem:[%s1252 + $0x8] sm:$0xff] %v4796
        %5148 = vst [vmem:[%s1252 + $0x10] sm:$0xff] %v5138
        %5149 = vst [vmem:[%s1252 + $0x18] sm:$0xff] %v5140
        %5150 = vst [vmem:[%s1252 + $0x20] sm:$0xff] %v4798
        %5151 = vst [vmem:[%s1252 + $0x28] sm:$0xff] %v4800
        %5152 = vst [vmem:[%s1252 + $0x30] sm:$0xff] %v5142
        %5153 = vst [vmem:[%s1252 + $0x38] sm:$0xff] %v5144
        %s5154 = sand.u32 %s114, 1
        %s5155 = sand.u32 %s114, 1
        %s5156 = smul.addr %s5155, 64
        %s5157 = scalar_lea.vmem [#allocation3], %s5156
        // Predicated region
        $region56: #{res50_head_forward.2} parent=50 // pred_check
          %p5158 = pneg %p124
        $region57: #{res50_head_forward.2} parent=50 // pred_check_branch
          %5160 = sbr.rel (%p5158) target = $region59
        $region58: #{res50_head_forward.2} parent=50 // pred_region
          %s5161 = smul.u32 2, %s19
          %s5162 = smul.u32 4, %s18
          %s5163 = smul.addr %s5161, 8
          %s5164 = sadd.s32 %s5162, %s5163
          %s5165 = smul.addr %s5164, 8
          %s5166 = scalar_lea.vmem %s3, %s5165
          // Predicated region
          $region60: #{res50_head_forward.2} parent=58 // pred_check
            _
          $region61: #{res50_head_forward.2} parent=58 // pred_check_branch
            %5168 = sbr.rel (0) target = $region63
          $region62: #{res50_head_forward.2} parent=58 // pred_region
            // Predicated region
            $region64: #{res50_head_forward.2} parent=62 // pred_check
              _
            $region65: #{res50_head_forward.2} parent=62 // pred_check_branch
              %5170 = sbr.rel (0) target = $region67
            $region66: #{res50_head_forward.2} parent=62 // pred_region
              loop: start=0, step=1, limit=1
              $region68: #{res50_head_forward.2} parent=66 // loop_pre_header
                _
              $region69: #{res50_head_forward.2} parent=66 // loop_header
                %s5172 = sphi 0, %s5176
                %p5173 = scmp.ge.s32.totalorder %s5172, 1
                %s5177 = sphi %s5157, %s5157
                %s5178 = sphi %s5166, %s5166
              $region70: #{res50_head_forward.2} parent=66 // loop_header_branch
                %5175 = sbr.rel (%p5173) target = $region74
              $region71: #{res50_head_forward.2} parent=66 // loop_body
                %v5179 = vld [vmem:[%s5177] sm:$0xff]
                %5180 = vst [vmem:[%s5178] sm:$0xff] %v5179
                %v5181 = vld [vmem:[%s5177 + $0x8] sm:$0xff]
                %5182 = vst [vmem:[%s5178 + $0x8] sm:$0xff] %v5181
                %v5183 = vld [vmem:[%s5177 + $0x10] sm:$0xff]
                %5184 = vst [vmem:[%s5178 + $0x10] sm:$0xff] %v5183
                %v5185 = vld [vmem:[%s5177 + $0x18] sm:$0xff]
                %5186 = vst [vmem:[%s5178 + $0x18] sm:$0xff] %v5185
                %v5187 = vld [vmem:[%s5177 + $0x20] sm:$0xff]
                %5188 = vst [vmem:[%s5178 + $0x40] sm:$0xff] %v5187
                %v5189 = vld [vmem:[%s5177 + $0x28] sm:$0xff]
                %5190 = vst [vmem:[%s5178 + $0x48] sm:$0xff] %v5189
                %v5191 = vld [vmem:[%s5177 + $0x30] sm:$0xff]
                %5192 = vst [vmem:[%s5178 + $0x50] sm:$0xff] %v5191
                %v5193 = vld [vmem:[%s5177 + $0x38] sm:$0xff]
                %5194 = vst [vmem:[%s5178 + $0x58] sm:$0xff] %v5193
              $region72: #{res50_head_forward.2} parent=66 // loop_footer
                %s5176 = sadd.s32 1, %s5172
              $region73: #{res50_head_forward.2} parent=66 // loop_footer_branch
                %5171 = sbr.rel target = $region69
              $region74: #{res50_head_forward.2} parent=66 // loop_exit
                _
            $region67: #{res50_head_forward.2} parent=62 // pred_fallthru
              _
            // Predicated region
            $region75: #{res50_head_forward.2} parent=62 // pred_check
              _
            $region76: #{res50_head_forward.2} parent=62 // pred_check_branch
              %5196 = sbr.rel target = $region78
            $region77: #{res50_head_forward.2} parent=62 // pred_region
              _
            $region78: #{res50_head_forward.2} parent=62 // pred_fallthru
              _
          $region63: #{res50_head_forward.2} parent=58 // pred_fallthru
            _
          %5197 = vnop
        $region59: #{res50_head_forward.2} parent=50 // pred_fallthru
          _
      $region51: #{res50_head_forward.2} parent=5 // pred_fallthru
        _
      %p5198 = scmp.le.s32.totalorder 2, %s9
      // Predicated region
      $region79: #{res50_head_forward.2} parent=5 // pred_check
        %p5199 = pneg %p5198
      $region80: #{res50_head_forward.2} parent=5 // pred_check_branch
        %5201 = sbr.rel (%p5199) target = $region82
      $region81: #{res50_head_forward.2} parent=5 // pred_region
        %s5202 = ssub.s32 %s9, 2
        // Predicated region
        $region83: #{res50_head_forward.2} parent=81 // pred_check
          %p5203 = pneg %p130
        $region84: #{res50_head_forward.2} parent=81 // pred_check_branch
          %5205 = sbr.rel (%p5203) target = $region86
        $region85: #{res50_head_forward.2} parent=81 // pred_region
          %s5206 = sand.u32 %s115, 1
          %s5207 = sand.u32 %s115, 1
          %s5208 = smul.addr %s5207, 64
          %s5209 = scalar_lea.vmem [#allocation3], %s5208
        $region86: #{res50_head_forward.2} parent=81 // pred_fallthru
          _
      $region82: #{res50_head_forward.2} parent=5 // pred_fallthru
        _
    $region6: #{res50_head_forward.2} parent=1 // loop_footer
      %s13 = sadd.s32 1, %s9
    $region7: #{res50_head_forward.2} parent=1 // loop_footer_branch
      %8 = sbr.rel target = $region3
    $region8: #{res50_head_forward.2} parent=1 // loop_exit
      _

// kernel: res50_head_forward.3
$region0: #{res50_head_forward.3}
  #allocation0 [shape = 'u32[]', space=smem, size = 0x4, offset = 0x4, fixed_abs, tag = 'smem constant byte address 0x4 - core index']
  #allocation1 [shape = 'u32[144,128]{1,0:T(1,128)}', space=vmem, size = 0x12000, scoped, tag = 'internal scratch']
  %s0 = inlined_call_operand.vmem [shape: f32[8,2048], index: 0, kind: input, shape index: {}]
  %s1 = inlined_call_operand.hbm [shape: f32[8,2048], index: 1, kind: output, shape index: {}]
  %s2 = sld [smem:[#allocation0]]
  $region14: #{res50_head_forward.3} parent=0
    _
  %s4 = ssub.s32 1, %s2
  %s5 = scalar_select 0, %s4, %s2
  $region1: #{res50_head_forward.3} parent=0
    #allocation2 [shape = 'u8[65536]{0}', space=vmem, size = 0x10000, scoped, tag = 'output window, operand 0, single buffered']
    #allocation3 [shape = 's32[1]{0}', space=sflag, size = 0x4, scoped, tag = 'scoped memory for res50_head_forward.3']
    %6 = vsyncpa [#allocation3], 0
    // Predicated region
    $region2: #{res50_head_forward.3} parent=1 // pred_check
      _
    $region3: #{res50_head_forward.3} parent=1 // pred_check_branch
      %8 = sbr.rel (0) target = $region5
    $region4: #{res50_head_forward.3} parent=1 // pred_region
      _
    $region5: #{res50_head_forward.3} parent=1 // pred_fallthru
      _
    %v9 = vld [vmem:[%s0] sm:$0xff]
    %v10 = vld [vmem:[%s0 + $0x8] sm:$0xff]
    %v11 = vld [vmem:[%s0 + $0x10] sm:$0xff]
    %v12 = vld [vmem:[%s0 + $0x18] sm:$0xff]
    %v13 = vld [vmem:[%s0 + $0x20] sm:$0xff]
    %v14 = vld [vmem:[%s0 + $0x28] sm:$0xff]
    %v15 = vld [vmem:[%s0 + $0x30] sm:$0xff]
    %v16 = vld [vmem:[%s0 + $0x38] sm:$0xff]
    %v17 = vld [vmem:[%s0 + $0x40] sm:$0xff]
    %v18 = vld [vmem:[%s0 + $0x48] sm:$0xff]
    %v19 = vld [vmem:[%s0 + $0x50] sm:$0xff]
    %v20 = vld [vmem:[%s0 + $0x58] sm:$0xff]
    %v21 = vld [vmem:[%s0 + $0x60] sm:$0xff]
    %v22 = vld [vmem:[%s0 + $0x68] sm:$0xff]
    %v23 = vld [vmem:[%s0 + $0x70] sm:$0xff]
    %v24 = vld [vmem:[%s0 + $0x78] sm:$0xff]
    %v25 = vmax.f32 %v9, 0.0
    %v26 = vmax.f32 %v10, 0.0
    %v27 = vmax.f32 %v11, 0.0
    %v28 = vmax.f32 %v12, 0.0
    %v29 = vmax.f32 %v13, 0.0
    %v30 = vmax.f32 %v14, 0.0
    %v31 = vmax.f32 %v15, 0.0
    %v32 = vmax.f32 %v16, 0.0
    %v33 = vmax.f32 %v17, 0.0
    %v34 = vmax.f32 %v18, 0.0
    %v35 = vmax.f32 %v19, 0.0
    %v36 = vmax.f32 %v20, 0.0
    %v37 = vmax.f32 %v21, 0.0
    %v38 = vmax.f32 %v22, 0.0
    %v39 = vmax.f32 %v23, 0.0
    %v40 = vmax.f32 %v24, 0.0
    %v41 = vand.u32 2147483647, %v9
    %v42 = vand.u32 2147483647, %v10
    %v43 = vand.u32 2147483647, %v11
    %v44 = vand.u32 2147483647, %v12
    %v45 = vand.u32 2147483647, %v13
    %v46 = vand.u32 2147483647, %v14
    %v47 = vand.u32 2147483647, %v15
    %v48 = vand.u32 2147483647, %v16
    %v49 = vand.u32 2147483647, %v17
    %v50 = vand.u32 2147483647, %v18
    %v51 = vand.u32 2147483647, %v19
    %v52 = vand.u32 2147483647, %v20
    %v53 = vand.u32 2147483647, %v21
    %v54 = vand.u32 2147483647, %v22
    %v55 = vand.u32 2147483647, %v23
    %v56 = vand.u32 2147483647, %v24
    %v57 = vsub.f32 0.0, %v41
    %v58 = vsub.f32 0.0, %v42
    %v59 = vsub.f32 0.0, %v43
    %v60 = vsub.f32 0.0, %v44
    %v61 = vsub.f32 0.0, %v45
    %v62 = vsub.f32 0.0, %v46
    %v63 = vsub.f32 0.0, %v47
    %v64 = vsub.f32 0.0, %v48
    %v65 = vsub.f32 0.0, %v49
    %v66 = vsub.f32 0.0, %v50
    %v67 = vsub.f32 0.0, %v51
    %v68 = vsub.f32 0.0, %v52
    %v69 = vsub.f32 0.0, %v53
    %v70 = vsub.f32 0.0, %v54
    %v71 = vsub.f32 0.0, %v55
    %v72 = vsub.f32 0.0, %v56
    %v73 = vmul.f32 %v57, 1.442695
    %v74 = vpow.pop %v73
    %v75 = vmul.f32 %v58, 1.442695
    %v76 = vpow.pop %v75
    %v77 = vmul.f32 %v59, 1.442695
    %v78 = vpow.pop %v77
    %v79 = vmul.f32 %v60, 1.442695
    %v80 = vpow.pop %v79
    %v81 = vmul.f32 %v61, 1.442695
    %v82 = vpow.pop %v81
    %v83 = vmul.f32 %v62, 1.442695
    %v84 = vpow.pop %v83
    %v85 = vmul.f32 %v63, 1.442695
    %v86 = vpow.pop %v85
    %v87 = vmul.f32 %v64, 1.442695
    %v88 = vpow.pop %v87
    %v89 = vmul.f32 %v65, 1.442695
    %v90 = vpow.pop %v89
    %v91 = vmul.f32 %v66, 1.442695
    %v92 = vpow.pop %v91
    %v93 = vmul.f32 %v67, 1.442695
    %v94 = vpow.pop %v93
    %v95 = vmul.f32 %v68, 1.442695
    %v96 = vpow.pop %v95
    %v97 = vmul.f32 %v69, 1.442695
    %v98 = vpow.pop %v97
    %v99 = vmul.f32 %v70, 1.442695
    %v100 = vpow.pop %v99
    %v101 = vmul.f32 %v71, 1.442695
    %v102 = vpow.pop %v101
    %v103 = vmul.f32 %v72, 1.442695
    %v104 = vpow.pop %v103
    %v105 = vadd.f32 %v74, 1.0
    %v106 = vlog2.pop %v105
    %v107 = vmul.f32 %v106, 0.6931472
    %v108 = vmul.f32 -0.5, %v74
    %v109 = vadd.f32 %v108, 1.0
    %v110 = vmul.f32 %v109, %v74
    %v111 = vand.u32 2147483647, %v74
    %vm112 = vcmp.lt.f32.partialorder %v111, 0.0004427343
    %v113 = vsel %vm112, %v110, %v107
    %v114 = vadd.f32 %v76, 1.0
    %v115 = vlog2.pop %v114
    %v116 = vmul.f32 %v115, 0.6931472
    %v117 = vmul.f32 -0.5, %v76
    %v118 = vadd.f32 %v117, 1.0
    %v119 = vmul.f32 %v118, %v76
    %v120 = vand.u32 2147483647, %v76
    %vm121 = vcmp.lt.f32.partialorder %v120, 0.0004427343
    %v122 = vsel %vm121, %v119, %v116
    %v123 = vadd.f32 %v78, 1.0
    %v124 = vlog2.pop %v123
    %v125 = vmul.f32 %v124, 0.6931472
    %v126 = vmul.f32 -0.5, %v78
    %v127 = vadd.f32 %v126, 1.0
    %v128 = vmul.f32 %v127, %v78
    %v129 = vand.u32 2147483647, %v78
    %vm130 = vcmp.lt.f32.partialorder %v129, 0.0004427343
    %v131 = vsel %vm130, %v128, %v125
    %v132 = vadd.f32 %v80, 1.0
    %v133 = vlog2.pop %v132
    %v134 = vmul.f32 %v133, 0.6931472
    %v135 = vmul.f32 -0.5, %v80
    %v136 = vadd.f32 %v135, 1.0
    %v137 = vmul.f32 %v136, %v80
    %v138 = vand.u32 2147483647, %v80
    %vm139 = vcmp.lt.f32.partialorder %v138, 0.0004427343
    %v140 = vsel %vm139, %v137, %v134
    %v141 = vadd.f32 %v82, 1.0
    %v142 = vlog2.pop %v141
    %v143 = vmul.f32 %v142, 0.6931472
    %v144 = vmul.f32 -0.5, %v82
    %v145 = vadd.f32 %v144, 1.0
    %v146 = vmul.f32 %v145, %v82
    %v147 = vand.u32 2147483647, %v82
    %vm148 = vcmp.lt.f32.partialorder %v147, 0.0004427343
    %v149 = vsel %vm148, %v146, %v143
    %v150 = vadd.f32 %v84, 1.0
    %v151 = vlog2.pop %v150
    %v152 = vmul.f32 %v151, 0.6931472
    %v153 = vmul.f32 -0.5, %v84
    %v154 = vadd.f32 %v153, 1.0
    %v155 = vmul.f32 %v154, %v84
    %v156 = vand.u32 2147483647, %v84
    %vm157 = vcmp.lt.f32.partialorder %v156, 0.0004427343
    %v158 = vsel %vm157, %v155, %v152
    %v159 = vadd.f32 %v86, 1.0
    %v160 = vlog2.pop %v159
    %v161 = vmul.f32 %v160, 0.6931472
    %v162 = vmul.f32 -0.5, %v86
    %v163 = vadd.f32 %v162, 1.0
    %v164 = vmul.f32 %v163, %v86
    %v165 = vand.u32 2147483647, %v86
    %vm166 = vcmp.lt.f32.partialorder %v165, 0.0004427343
    %v167 = vsel %vm166, %v164, %v161
    %v168 = vadd.f32 %v88, 1.0
    %v169 = vlog2.pop %v168
    %v170 = vmul.f32 %v169, 0.6931472
    %v171 = vmul.f32 -0.5, %v88
    %v172 = vadd.f32 %v171, 1.0
    %v173 = vmul.f32 %v172, %v88
    %v174 = vand.u32 2147483647, %v88
    %vm175 = vcmp.lt.f32.partialorder %v174, 0.0004427343
    %v176 = vsel %vm175, %v173, %v170
    %v177 = vadd.f32 %v90, 1.0
    %v178 = vlog2.pop %v177
    %v179 = vmul.f32 %v178, 0.6931472
    %v180 = vmul.f32 -0.5, %v90
    %v181 = vadd.f32 %v180, 1.0
    %v182 = vmul.f32 %v181, %v90
    %v183 = vand.u32 2147483647, %v90
    %vm184 = vcmp.lt.f32.partialorder %v183, 0.0004427343
    %v185 = vsel %vm184, %v182, %v179
    %v186 = vadd.f32 %v92, 1.0
    %v187 = vlog2.pop %v186
    %v188 = vmul.f32 %v187, 0.6931472
    %v189 = vmul.f32 -0.5, %v92
    %v190 = vadd.f32 %v189, 1.0
    %v191 = vmul.f32 %v190, %v92
    %v192 = vand.u32 2147483647, %v92
    %vm193 = vcmp.lt.f32.partialorder %v192, 0.0004427343
    %v194 = vsel %vm193, %v191, %v188
    %v195 = vadd.f32 %v94, 1.0
    %v196 = vlog2.pop %v195
    %v197 = vmul.f32 %v196, 0.6931472
    %v198 = vmul.f32 -0.5, %v94
    %v199 = vadd.f32 %v198, 1.0
    %v200 = vmul.f32 %v199, %v94
    %v201 = vand.u32 2147483647, %v94
    %vm202 = vcmp.lt.f32.partialorder %v201, 0.0004427343
    %v203 = vsel %vm202, %v200, %v197
    %v204 = vadd.f32 %v96, 1.0
    %v205 = vlog2.pop %v204
    %v206 = vmul.f32 %v205, 0.6931472
    %v207 = vmul.f32 -0.5, %v96
    %v208 = vadd.f32 %v207, 1.0
    %v209 = vmul.f32 %v208, %v96
    %v210 = vand.u32 2147483647, %v96
    %vm211 = vcmp.lt.f32.partialorder %v210, 0.0004427343
    %v212 = vsel %vm211, %v209, %v206
    %v213 = vadd.f32 %v98, 1.0
    %v214 = vlog2.pop %v213
    %v215 = vmul.f32 %v214, 0.6931472
    %v216 = vmul.f32 -0.5, %v98
    %v217 = vadd.f32 %v216, 1.0
    %v218 = vmul.f32 %v217, %v98
    %v219 = vand.u32 2147483647, %v98
    %vm220 = vcmp.lt.f32.partialorder %v219, 0.0004427343
    %v221 = vsel %vm220, %v218, %v215
    %v222 = vadd.f32 %v100, 1.0
    %v223 = vlog2.pop %v222
    %v224 = vmul.f32 %v223, 0.6931472
    %v225 = vmul.f32 -0.5, %v100
    %v226 = vadd.f32 %v225, 1.0
    %v227 = vmul.f32 %v226, %v100
    %v228 = vand.u32 2147483647, %v100
    %vm229 = vcmp.lt.f32.partialorder %v228, 0.0004427343
    %v230 = vsel %vm229, %v227, %v224
    %v231 = vadd.f32 %v102, 1.0
    %v232 = vlog2.pop %v231
    %v233 = vmul.f32 %v232, 0.6931472
    %v234 = vmul.f32 -0.5, %v102
    %v235 = vadd.f32 %v234, 1.0
    %v236 = vmul.f32 %v235, %v102
    %v237 = vand.u32 2147483647, %v102
    %vm238 = vcmp.lt.f32.partialorder %v237, 0.0004427343
    %v239 = vsel %vm238, %v236, %v233
    %v240 = vadd.f32 %v104, 1.0
    %v241 = vlog2.pop %v240
    %v242 = vmul.f32 %v241, 0.6931472
    %v243 = vmul.f32 -0.5, %v104
    %v244 = vadd.f32 %v243, 1.0
    %v245 = vmul.f32 %v244, %v104
    %v246 = vand.u32 2147483647, %v104
    %vm247 = vcmp.lt.f32.partialorder %v246, 0.0004427343
    %v248 = vsel %vm247, %v245, %v242
    %v249 = vadd.f32 %v25, %v113
    %v250 = vadd.f32 %v26, %v122
    %v251 = vadd.f32 %v27, %v131
    %v252 = vadd.f32 %v28, %v140
    %v253 = vadd.f32 %v29, %v149
    %v254 = vadd.f32 %v30, %v158
    %v255 = vadd.f32 %v31, %v167
    %v256 = vadd.f32 %v32, %v176
    %v257 = vadd.f32 %v33, %v185
    %v258 = vadd.f32 %v34, %v194
    %v259 = vadd.f32 %v35, %v203
    %v260 = vadd.f32 %v36, %v212
    %v261 = vadd.f32 %v37, %v221
    %v262 = vadd.f32 %v38, %v230
    %v263 = vadd.f32 %v39, %v239
    %v264 = vadd.f32 %v40, %v248
    %265 = vst [vmem:[#allocation2] sm:$0xff] %v249
    %266 = vst [vmem:[#allocation2 + $0x8] sm:$0xff] %v250
    %267 = vst [vmem:[#allocation2 + $0x10] sm:$0xff] %v251
    %268 = vst [vmem:[#allocation2 + $0x18] sm:$0xff] %v252
    %269 = vst [vmem:[#allocation2 + $0x20] sm:$0xff] %v253
    %270 = vst [vmem:[#allocation2 + $0x28] sm:$0xff] %v254
    %271 = vst [vmem:[#allocation2 + $0x30] sm:$0xff] %v255
    %272 = vst [vmem:[#allocation2 + $0x38] sm:$0xff] %v256
    %273 = vst [vmem:[#allocation2 + $0x40] sm:$0xff] %v257
    %274 = vst [vmem:[#allocation2 + $0x48] sm:$0xff] %v258
    %275 = vst [vmem:[#allocation2 + $0x50] sm:$0xff] %v259
    %276 = vst [vmem:[#allocation2 + $0x58] sm:$0xff] %v260
    %277 = vst [vmem:[#allocation2 + $0x60] sm:$0xff] %v261
    %278 = vst [vmem:[#allocation2 + $0x68] sm:$0xff] %v262
    %279 = vst [vmem:[#allocation2 + $0x70] sm:$0xff] %v263
    %280 = vst [vmem:[#allocation2 + $0x78] sm:$0xff] %v264
    // Predicated region
    $region6: #{res50_head_forward.3} parent=1 // pred_check
      _
    $region7: #{res50_head_forward.3} parent=1 // pred_check_branch
      %282 = sbr.rel (0) target = $region9
    $region8: #{res50_head_forward.3} parent=1 // pred_region
      %s284 = ssub.s32 2048, 2048
      %285 = vsyncadd [#allocation3], %s284
      %s287 = sshll.u32 [#allocation2], 4
      %s288 = int_to_ptr.vmem [resolvable:$true] %s287
      %290 = dma.vmem_to_hbm [thread:$0]  %s288, 2048, %s1, [#allocation3]
    $region9: #{res50_head_forward.3} parent=1 // pred_fallthru
      _
    // Predicated region
    $region10: #{res50_head_forward.3} parent=1 // pred_check
      _
    $region11: #{res50_head_forward.3} parent=1 // pred_check_branch
      %292 = sbr.rel (0) target = $region13
    $region12: #{res50_head_forward.3} parent=1 // pred_region
      %293 = dma.done [#allocation3], 2048
    $region13: #{res50_head_forward.3} parent=1 // pred_fallthru
      _
    %294 = vsyncpa [#allocation3], 1

</llo_original>
